<compile_context>
chip_gen: v6e
topology: v6e:2x2x1
jax: 0.10.0
libtpu: 0.0.40
codegen_flags: <defaults>
</compile_context>

<pallas_src>
import math

import jax
import jax.numpy as jnp
from jax.experimental import pallas as pl
from jax.experimental.pallas import tpu as pltpu

# ---------------- hyperparameters (small, consistent with the module) -------
CATEGORIES = (5, 6, 7)          # 3 categorical features
NUM_CONT = 4                    # 4 continuous features
DIM = 32                        # model dim
DEPTH = 2                       # transformer depth
HEADS = 2
DIM_HEAD = 16
DIM_OUT = 1
NUM_SPECIAL = 2
MULT = 4                        # FeedForward mult
INNER = HEADS * DIM_HEAD        # 32
EPS = 1e-5                      # nn.LayerNorm default eps
BATCH = 2
N_TOKENS = 1 + len(CATEGORIES) + NUM_CONT   # cls + categorical + numerical = 8

# bf16 doubles MXU throughput on v6e/v7x and halves vreg pressure; accumulation
# stays f32 via preferred_element_type.  Set to jnp.float32 for bit-exact dots.
MXU_DTYPE = jnp.bfloat16


# ---------------- in-kernel helpers -----------------------------------------
def _layernorm(x, g, b):
    mu = jnp.mean(x, axis=-1, keepdims=True)
    xc = x - mu
    var = jnp.mean(xc * xc, axis=-1, keepdims=True)
    return xc * jax.lax.rsqrt(var + EPS) * g + b


def _gelu_exact(x):
    # exact (erf-based) GELU, matching torch.nn.functional.gelu default
    return 0.5 * x * (1.0 + jax.lax.erf(x * (1.0 / math.sqrt(2.0))))


# ---------------- the Pallas kernel ------------------------------------------
def ft_transformer_kernel(
    x_ref,                                               # (tb*N, D)
    ln1g_ref, ln1b_ref, wqkv_ref, wo_ref,                # attention params
    ln2g_ref, ln2b_ref, w1_ref, b1_ref, w2_ref, b2_ref,  # feed-forward params
    hg_ref, hb_ref, wh_ref, bh_ref,                      # head params
    out_ref,                                             # (tb, 1, DIM_OUT)
):
    rows, d = x_ref.shape                 # rows = tb * N_TOKENS
    tb = rows // N_TOKENS
    x = x_ref[...]                        # (rows, D) f32

    for l in range(DEPTH):                # static unroll over depth
        # ---------------- Attention block ----------------
        xn = _layernorm(x, ln1g_ref[l:l + 1, :], ln1b_ref[l:l + 1, :])

        # single batched projection for q|k|v over g = 3*HEADS heads;
        # attention scale is already folded into the q-slice of wqkv
        xn_g = jnp.broadcast_to(xn.astype(MXU_DTYPE), (3 * HEADS, rows, d))
        qkv = jnp.einsum('grd,gdk->grk', xn_g, wqkv_ref[l],
                         preferred_element_type=jnp.float32)   # (3H, rows, DH)
        q = qkv[:HEADS]                    # (H, rows, DH)
        k = qkv[HEADS:2 * HEADS]
        v = qkv[2 * HEADS:]

        # fuse (head, batch) into one leading batch axis g = h*tb + b
        qh = q.reshape(HEADS * tb, N_TOKENS, DIM_HEAD).astype(MXU_DTYPE)
        kh = k.reshape(HEADS * tb, N_TOKENS, DIM_HEAD).astype(MXU_DTYPE)
        vh = v.reshape(HEADS * tb, N_TOKENS, DIM_HEAD).astype(MXU_DTYPE)

        sim = jnp.einsum('gid,gjd->gij', qh, kh,
                         preferred_element_type=jnp.float32)   # (G, N, N)
        sim = sim - jnp.max(sim, axis=-1, keepdims=True)
        e = jnp.exp(sim)
        inv_den = pl.reciprocal(jnp.sum(e, axis=-1, keepdims=True), approx=False)
        attn = (e * inv_den).astype(MXU_DTYPE)                 # softmax (exact)

        o = jnp.einsum('gij,gjd->gid', attn, vh,
                       preferred_element_type=jnp.float32)     # (G, N, DH)

        # back to (HEADS, rows, DH); contract heads with per-head projection
        # weights -> no lane-axis concat, just HEADS tiny dots + adds.
        o = o.reshape(HEADS, rows, DIM_HEAD).astype(MXU_DTYPE)
        attn_out = jnp.dot(o[0], wo_ref[l, 0],
                           preferred_element_type=jnp.float32)
        for h in range(1, HEADS):
            attn_out = attn_out + jnp.dot(o[h], wo_ref[l, h],
                                          preferred_element_type=jnp.float32)
        x = attn_out + x                                       # residual

        # ------------- FeedForward: LN -> Linear -> GEGLU -> Linear -------------
        xn = _layernorm(x, ln2g_ref[l:l + 1, :], ln2b_ref[l:l + 1, :])
        h1 = jnp.dot(xn.astype(MXU_DTYPE), w1_ref[l],
                     preferred_element_type=jnp.float32) + b1_ref[l:l + 1, :]
        a = h1[:, :MULT * DIM]            # 128-lane-aligned split (tile boundary)
        gates = h1[:, MULT * DIM:]
        geg = a * _gelu_exact(gates)      # GEGLU
        ff = jnp.dot(geg.astype(MXU_DTYPE), w2_ref[l],
                     preferred_element_type=jnp.float32) + b2_ref[l:l + 1, :]
        x = ff + x                        # residual

    # ---------- Head: CLS rows -> LayerNorm -> ReLU -> Linear ----------
    if tb == 1:
        cls = x[0:1, :]                   # CLS is row 0 of this block
    else:
        # sublane reads of the CLS rows (offsets are multiples of N=8)
        cls = jnp.concatenate(
            [x[b * N_TOKENS:b * N_TOKENS + 1, :] for b in range(tb)], axis=0)
    cls = _layernorm(cls, hg_ref[...], hb_ref[...])
    cls = jnp.maximum(cls, 0.0)
    logits = jnp.dot(cls.astype(MXU_DTYPE), wh_ref[...],
                     preferred_element_type=jnp.float32) + bh_ref[...]
    out_ref[...] = logits.reshape(tb, 1, DIM_OUT)


# ---------------- parameter construction (deterministic) ---------------------
def init_params(key):
    keys = jax.random.split(key, 16)
    ki = iter(keys)

    def nrm(shape):
        return jax.random.normal(next(ki), shape, dtype=jnp.float32)

    def uni(shape, fan_in):                          # torch-style Linear init
        bound = 1.0 / math.sqrt(fan_in)
        return jax.random.uniform(next(ki), shape, jnp.float32, -bound, bound)

    total_tokens = sum(CATEGORIES) + NUM_SPECIAL
    # F.pad(categories, (1,0), value=num_special).cumsum()[:-1]
    categories_offset = jnp.cumsum(
        jnp.array((NUM_SPECIAL,) + CATEGORIES[:-1], dtype=jnp.int32))

    # Attention QKV weight: draw torch-style (in, 3*inner), split (3, heads,
    # dim_head), fold the attention scale into the q-slice, and stack with a
    # leading (3*heads) axis so the kernel does ONE batched projection per
    # layer and never slices the lane axis.
    w_qkv = uni((DEPTH, DIM, 3 * INNER), DIM)                    # (L, D, 3*H*DH)
    w_qkv = w_qkv.reshape(DEPTH, DIM, 3, HEADS, DIM_HEAD)
    w_qkv = jnp.transpose(w_qkv, (0, 2, 3, 1, 4))                # (L, 3, H, D, DH)
    scale = jnp.array([DIM_HEAD ** -0.5, 1.0, 1.0],
                      jnp.float32).reshape(1, 3, 1, 1, 1)
    w_qkv = (w_qkv * scale).reshape(DEPTH, 3 * HEADS, DIM, DIM_HEAD)

    # Output projection: torch (inner, dim) with head-major inner layout ->
    # per-head (heads, dim_head, dim).
    w_out = uni((DEPTH, INNER, DIM), INNER).reshape(DEPTH, HEADS, DIM_HEAD, DIM)

    return dict(
        categories_offset=categories_offset,
        cat_embed=nrm((total_tokens, DIM)),          # nn.Embedding (N(0,1))
        num_w=nrm((NUM_CONT, DIM)),                  # NumericalEmbedder weights
        num_b=nrm((NUM_CONT, DIM)),                  # NumericalEmbedder biases
        cls_token=nrm((1, 1, DIM)),
        # transformer layers, stacked over depth; matmul weights kept in bf16
        ln1_g=jnp.ones((DEPTH, DIM), jnp.float32),
        ln1_b=jnp.zeros((DEPTH, DIM), jnp.float32),
        w_qkv=w_qkv.astype(MXU_DTYPE),
        w_out=w_out.astype(MXU_DTYPE),
        ln2_g=jnp.ones((DEPTH, DIM), jnp.float32),
        ln2_b=jnp.zeros((DEPTH, DIM), jnp.float32),
        w1=uni((DEPTH, DIM, 2 * MULT * DIM), DIM).astype(MXU_DTYPE),
        b1=uni((DEPTH, 2 * MULT * DIM), DIM),
        w2=uni((DEPTH, MULT * DIM, DIM), MULT * DIM).astype(MXU_DTYPE),
        b2=uni((DEPTH, DIM), MULT * DIM),
        # head (LayerNorm -> ReLU -> Linear)
        head_g=jnp.ones((1, DIM), jnp.float32),
        head_b=jnp.zeros((1, DIM), jnp.float32),
        w_head=uni((DIM, DIM_OUT), DIM).astype(MXU_DTYPE),
        b_head=uni((1, DIM_OUT), DIM),
    )


# ---------------- wrapper (glue + pallas_call) --------------------------------
WEIGHT_KEYS = ('ln1_g', 'ln1_b', 'w_qkv', 'w_out',
               'ln2_g', 'ln2_b', 'w1', 'b1', 'w2', 'b2',
               'head_g', 'head_b', 'w_head', 'b_head')


def _full_spec(shape):
    # full-array block, constant index map -> stays VMEM-resident across grid
    return pl.BlockSpec(shape, lambda b: (0,) * len(shape))


def ft_transformer_forward(x_categ, x_numer, params, batch_tile=None):
    B = x_categ.shape[0]
    if batch_tile is None:
        # whole (tiny) batch in one grid step: rows stay far below one MXU
        # pass, so this halves per-step overhead on single-TC chips.
        batch_tile = B
    assert B % batch_tile == 0

    # ---- embedding / token assembly (gather glue in plain JAX) ----
    cat_ids = x_categ + params['categories_offset'][None, :]
    cat_emb = jnp.take(params['cat_embed'], cat_ids, axis=0)          # (B, n_cat, D)
    num_emb = x_numer[..., None] * params['num_w'][None] + params['num_b'][None]
    cls = jnp.broadcast_to(params['cls_token'], (B, 1, DIM))
    x = jnp.concatenate([cls, cat_emb, num_emb], axis=1).astype(jnp.float32)
    x_flat = x.reshape(B * N_TOKENS, DIM)       # flatten at trace time (free)

    weights = tuple(params[k] for k in WEIGHT_KEYS)
    tb = batch_tile
    grid = (B // tb,)                           # batch grid (parallel on v7x)

    in_specs = [pl.BlockSpec((tb * N_TOKENS, DIM), lambda b: (b, 0))]
    in_specs += [_full_spec(w.shape) for w in weights]

    out = pl.pallas_call(
        ft_transformer_kernel,
        out_shape=jax.ShapeDtypeStruct((B, 1, DIM_OUT), jnp.float32),
        grid=grid,
        in_specs=in_specs,
        out_specs=pl.BlockSpec((tb, 1, DIM_OUT), lambda b: (b, 0, 0)),
        compiler_params=pltpu.CompilerParams(
            dimension_semantics=("parallel",)),
    )(x_flat, *weights)
    return out.reshape(B, DIM_OUT)


if __name__ == "__main__":
    key = jax.random.PRNGKey(0)
    pkey, ckey, nkey = jax.random.split(key, 3)
    params = init_params(pkey)

    x_categ = jax.random.randint(
        ckey, (BATCH, len(CATEGORIES)), 0,
        jnp.array(CATEGORIES, dtype=jnp.int32), dtype=jnp.int32)
    x_numer = jax.random.normal(nkey, (BATCH, NUM_CONT), dtype=jnp.float32)

    logits = ft_transformer_forward(x_categ, x_numer, params)
    jax.block_until_ready(logits)
    assert logits.shape == (BATCH, DIM_OUT)
    print("KERNEL_OK")
</pallas_src>

<mosaic_0001>
module attributes {stable_mosaic.version = 11 : i64} {
  func.func @ft_transformer_kernel(%arg0: i32, %arg1: memref<16x32xf32, #tpu.memory_space<vmem>>, %arg2: memref<2x32xf32, #tpu.memory_space<vmem>>, %arg3: memref<2x32xf32, #tpu.memory_space<vmem>>, %arg4: memref<2x6x32x16xbf16, #tpu.memory_space<vmem>>, %arg5: memref<2x2x16x32xbf16, #tpu.memory_space<vmem>>, %arg6: memref<2x32xf32, #tpu.memory_space<vmem>>, %arg7: memref<2x32xf32, #tpu.memory_space<vmem>>, %arg8: memref<2x32x256xbf16, #tpu.memory_space<vmem>>, %arg9: memref<2x256xf32, #tpu.memory_space<vmem>>, %arg10: memref<2x128x32xbf16, #tpu.memory_space<vmem>>, %arg11: memref<2x32xf32, #tpu.memory_space<vmem>>, %arg12: memref<1x32xf32, #tpu.memory_space<vmem>>, %arg13: memref<1x32xf32, #tpu.memory_space<vmem>>, %arg14: memref<32x1xbf16, #tpu.memory_space<vmem>>, %arg15: memref<1x1xf32, #tpu.memory_space<vmem>>, %arg16: memref<2x1x1xf32, #tpu.memory_space<vmem>>) attributes {dimension_semantics = [#tpu.dimension_semantics<parallel>], iteration_bounds = array<i64: 1>, scalar_prefetch = 0 : i64, scratch_operands = 0 : i64, tpu.core_type = #tpu.core_type<tc>, window_params = [{transform_indices = @transform_0, window_bounds = array<i64: 16, 32>}, {pipeline_mode = #tpu.pipeline_mode<synchronous>, transform_indices = @transform_1, window_bounds = array<i64: 2, 32>}, {pipeline_mode = #tpu.pipeline_mode<synchronous>, transform_indices = @transform_2, window_bounds = array<i64: 2, 32>}, {pipeline_mode = #tpu.pipeline_mode<synchronous>, transform_indices = @transform_3, window_bounds = array<i64: 2, 6, 32, 16>}, {pipeline_mode = #tpu.pipeline_mode<synchronous>, transform_indices = @transform_4, window_bounds = array<i64: 2, 2, 16, 32>}, {pipeline_mode = #tpu.pipeline_mode<synchronous>, transform_indices = @transform_5, window_bounds = array<i64: 2, 32>}, {pipeline_mode = #tpu.pipeline_mode<synchronous>, transform_indices = @transform_6, window_bounds = array<i64: 2, 32>}, {pipeline_mode = #tpu.pipeline_mode<synchronous>, transform_indices = @transform_7, window_bounds = array<i64: 2, 32, 256>}, {pipeline_mode = #tpu.pipeline_mode<synchronous>, transform_indices = @transform_8, window_bounds = array<i64: 2, 256>}, {pipeline_mode = #tpu.pipeline_mode<synchronous>, transform_indices = @transform_9, window_bounds = array<i64: 2, 128, 32>}, {pipeline_mode = #tpu.pipeline_mode<synchronous>, transform_indices = @transform_10, window_bounds = array<i64: 2, 32>}, {pipeline_mode = #tpu.pipeline_mode<synchronous>, transform_indices = @transform_11, window_bounds = array<i64: 1, 32>}, {pipeline_mode = #tpu.pipeline_mode<synchronous>, transform_indices = @transform_12, window_bounds = array<i64: 1, 32>}, {pipeline_mode = #tpu.pipeline_mode<synchronous>, transform_indices = @transform_13, window_bounds = array<i64: 32, 1>}, {pipeline_mode = #tpu.pipeline_mode<synchronous>, transform_indices = @transform_14, window_bounds = array<i64: 1, 1>}, {transform_indices = @transform_15, window_bounds = array<i64: 2, 1, 1>}]} {
    %c0 = arith.constant 0 : index
    %c0_0 = arith.constant 0 : index
    %0 = vector.load %arg1[%c0, %c0_0] : memref<16x32xf32, #tpu.memory_space<vmem>>, vector<16x32xf32>
    %c0_1 = arith.constant 0 : index
    %c0_2 = arith.constant 0 : index
    %1 = vector.load %arg2[%c0_1, %c0_2] : memref<2x32xf32, #tpu.memory_space<vmem>>, vector<1x32xf32>
    %c0_3 = arith.constant 0 : index
    %c0_4 = arith.constant 0 : index
    %2 = vector.load %arg3[%c0_3, %c0_4] : memref<2x32xf32, #tpu.memory_space<vmem>>, vector<1x32xf32>
    %cst = arith.constant dense<0.000000e+00> : vector<16xf32>
    %3 = vector.multi_reduction <add>, %0, %cst [1] : vector<16x32xf32> to vector<16xf32>
    %4 = vector.shape_cast %3 : vector<16xf32> to vector<16x1xf32>
    %cst_5 = arith.constant 3.200000e+01 : f32
    %5 = vector.broadcast %cst_5 : f32 to vector<16x1xf32>
    %6 = arith.divf %4, %5 : vector<16x1xf32>
    %7 = vector.broadcast %6 : vector<16x1xf32> to vector<16x32xf32>
    %8 = arith.subf %0, %7 : vector<16x32xf32>
    %9 = arith.mulf %8, %8 : vector<16x32xf32>
    %cst_6 = arith.constant dense<0.000000e+00> : vector<16xf32>
    %10 = vector.multi_reduction <add>, %9, %cst_6 [1] : vector<16x32xf32> to vector<16xf32>
    %11 = vector.shape_cast %10 : vector<16xf32> to vector<16x1xf32>
    %cst_7 = arith.constant 3.200000e+01 : f32
    %12 = vector.broadcast %cst_7 : f32 to vector<16x1xf32>
    %13 = arith.divf %11, %12 : vector<16x1xf32>
    %cst_8 = arith.constant 9.99999974E-6 : f32
    %14 = vector.broadcast %cst_8 : f32 to vector<16x1xf32>
    %15 = arith.addf %13, %14 : vector<16x1xf32>
    %16 = math.rsqrt %15 : vector<16x1xf32>
    %17 = vector.broadcast %16 : vector<16x1xf32> to vector<16x32xf32>
    %18 = arith.mulf %8, %17 : vector<16x32xf32>
    %19 = vector.broadcast %1 : vector<1x32xf32> to vector<16x32xf32>
    %20 = arith.mulf %18, %19 : vector<16x32xf32>
    %21 = vector.broadcast %2 : vector<1x32xf32> to vector<16x32xf32>
    %22 = arith.addf %20, %21 : vector<16x32xf32>
    %23 = arith.truncf %22 : vector<16x32xf32> to vector<16x32xbf16>
    %24 = vector.shape_cast %23 : vector<16x32xbf16> to vector<1x16x32xbf16>
    %25 = vector.broadcast %24 : vector<1x16x32xbf16> to vector<6x16x32xbf16>
    %c0_9 = arith.constant 0 : index
    %c0_10 = arith.constant 0 : index
    %c0_11 = arith.constant 0 : index
    %c0_12 = arith.constant 0 : index
    %26 = vector.load %arg4[%c0_9, %c0_10, %c0_11, %c0_12] : memref<2x6x32x16xbf16, #tpu.memory_space<vmem>>, vector<1x6x32x16xbf16>
    %27 = vector.shape_cast %26 : vector<1x6x32x16xbf16> to vector<6x32x16xbf16>
    "tpu.trace_start"() <{level = 10 : i32, message = "grd,gdk->grk"}> : () -> ()
    %cst_13 = arith.constant dense<0.000000e+00> : vector<6x16x16xf32>
    %28 = tpu.matmul %25, %27, %cst_13 {dimension_numbers = #tpu.dot_dimension_numbers<[2], [1], [1], [2], [0, 0, 0, 1, 1, 2], [0], [0]>} : vector<6x16x32xbf16>, vector<6x32x16xbf16>, vector<6x16x16xf32> -> vector<6x16x16xf32>
    "tpu.trace_stop"() : () -> ()
    %29 = vector.extract_strided_slice %28 {offsets = [0, 0, 0], sizes = [2, 16, 16], strides = [1, 1, 1]} : vector<6x16x16xf32> to vector<2x16x16xf32>
    %30 = vector.extract_strided_slice %28 {offsets = [2, 0, 0], sizes = [2, 16, 16], strides = [1, 1, 1]} : vector<6x16x16xf32> to vector<2x16x16xf32>
    %31 = vector.extract_strided_slice %28 {offsets = [4, 0, 0], sizes = [2, 16, 16], strides = [1, 1, 1]} : vector<6x16x16xf32> to vector<2x16x16xf32>
    %32 = vector.shape_cast %29 : vector<2x16x16xf32> to vector<4x8x16xf32>
    %33 = arith.truncf %32 : vector<4x8x16xf32> to vector<4x8x16xbf16>
    %34 = vector.shape_cast %30 : vector<2x16x16xf32> to vector<4x8x16xf32>
    %35 = arith.truncf %34 : vector<4x8x16xf32> to vector<4x8x16xbf16>
    %36 = vector.shape_cast %31 : vector<2x16x16xf32> to vector<4x8x16xf32>
    %37 = arith.truncf %36 : vector<4x8x16xf32> to vector<4x8x16xbf16>
    "tpu.trace_start"() <{level = 10 : i32, message = "gid,gjd->gij"}> : () -> ()
    %cst_14 = arith.constant dense<0.000000e+00> : vector<4x8x8xf32>
    %38 = tpu.matmul %33, %35, %cst_14 {dimension_numbers = #tpu.dot_dimension_numbers<[2], [2], [1], [1], [0, 0, 0, 1, 1, 1], [0], [0]>} : vector<4x8x16xbf16>, vector<4x8x16xbf16>, vector<4x8x8xf32> -> vector<4x8x8xf32>
    "tpu.trace_stop"() : () -> ()
    %cst_15 = arith.constant dense<0xFF800000> : vector<4x8xf32>
    %39 = vector.multi_reduction <maximumf>, %38, %cst_15 [2] : vector<4x8x8xf32> to vector<4x8xf32>
    %40 = vector.shape_cast %39 : vector<4x8xf32> to vector<4x8x1xf32>
    %41 = vector.broadcast %40 : vector<4x8x1xf32> to vector<4x8x8xf32>
    %42 = arith.subf %38, %41 : vector<4x8x8xf32>
    %43 = math.exp %42 : vector<4x8x8xf32>
    %cst_16 = arith.constant dense<0.000000e+00> : vector<4x8xf32>
    %44 = vector.multi_reduction <add>, %43, %cst_16 [2] : vector<4x8x8xf32> to vector<4x8xf32>
    %45 = vector.shape_cast %44 : vector<4x8xf32> to vector<4x8x1xf32>
    %46 = tpu.reciprocal %45 : vector<4x8x1xf32> -> vector<4x8x1xf32>
    %47 = vector.broadcast %46 : vector<4x8x1xf32> to vector<4x8x8xf32>
    %48 = arith.mulf %43, %47 : vector<4x8x8xf32>
    %49 = arith.truncf %48 : vector<4x8x8xf32> to vector<4x8x8xbf16>
    "tpu.trace_start"() <{level = 10 : i32, message = "gij,gjd->gid"}> : () -> ()
    %cst_17 = arith.constant dense<0.000000e+00> : vector<4x8x16xf32>
    %50 = tpu.matmul %49, %37, %cst_17 {dimension_numbers = #tpu.dot_dimension_numbers<[2], [1], [1], [2], [0, 0, 0, 1, 1, 2], [0], [0]>} : vector<4x8x8xbf16>, vector<4x8x16xbf16>, vector<4x8x16xf32> -> vector<4x8x16xf32>
    "tpu.trace_stop"() : () -> ()
    %51 = vector.shape_cast %50 : vector<4x8x16xf32> to vector<2x16x16xf32>
    %52 = arith.truncf %51 : vector<2x16x16xf32> to vector<2x16x16xbf16>
    %53 = vector.extract_strided_slice %52 {offsets = [0, 0, 0], sizes = [1, 16, 16], strides = [1, 1, 1]} : vector<2x16x16xbf16> to vector<1x16x16xbf16>
    %54 = vector.shape_cast %53 : vector<1x16x16xbf16> to vector<16x16xbf16>
    %c0_18 = arith.constant 0 : index
    %c0_19 = arith.constant 0 : index
    %c0_20 = arith.constant 0 : index
    %c0_21 = arith.constant 0 : index
    %55 = vector.load %arg5[%c0_18, %c0_19, %c0_20, %c0_21] : memref<2x2x16x32xbf16, #tpu.memory_space<vmem>>, vector<1x1x16x32xbf16>
    %56 = vector.shape_cast %55 : vector<1x1x16x32xbf16> to vector<16x32xbf16>
    %cst_22 = arith.constant dense<0.000000e+00> : vector<16x32xf32>
    %57 = tpu.matmul %54, %56, %cst_22 {dimension_numbers = #tpu.dot_dimension_numbers<[1], [0], [0], [1], [0, 0, 1, 1], [], []>} : vector<16x16xbf16>, vector<16x32xbf16>, vector<16x32xf32> -> vector<16x32xf32>
    %58 = vector.extract_strided_slice %52 {offsets = [1, 0, 0], sizes = [1, 16, 16], strides = [1, 1, 1]} : vector<2x16x16xbf16> to vector<1x16x16xbf16>
    %59 = vector.shape_cast %58 : vector<1x16x16xbf16> to vector<16x16xbf16>
    %c0_23 = arith.constant 0 : index
    %c1 = arith.constant 1 : index
    %c0_24 = arith.constant 0 : index
    %c0_25 = arith.constant 0 : index
    %60 = vector.load %arg5[%c0_23, %c1, %c0_24, %c0_25] : memref<2x2x16x32xbf16, #tpu.memory_space<vmem>>, vector<1x1x16x32xbf16>
    %61 = vector.shape_cast %60 : vector<1x1x16x32xbf16> to vector<16x32xbf16>
    %cst_26 = arith.constant dense<0.000000e+00> : vector<16x32xf32>
    %62 = tpu.matmul %59, %61, %cst_26 {dimension_numbers = #tpu.dot_dimension_numbers<[1], [0], [0], [1], [0, 0, 1, 1], [], []>} : vector<16x16xbf16>, vector<16x32xbf16>, vector<16x32xf32> -> vector<16x32xf32>
    %63 = arith.addf %57, %62 : vector<16x32xf32>
    %64 = arith.addf %63, %0 : vector<16x32xf32>
    %c0_27 = arith.constant 0 : index
    %c0_28 = arith.constant 0 : index
    %65 = vector.load %arg6[%c0_27, %c0_28] : memref<2x32xf32, #tpu.memory_space<vmem>>, vector<1x32xf32>
    %c0_29 = arith.constant 0 : index
    %c0_30 = arith.constant 0 : index
    %66 = vector.load %arg7[%c0_29, %c0_30] : memref<2x32xf32, #tpu.memory_space<vmem>>, vector<1x32xf32>
    %cst_31 = arith.constant dense<0.000000e+00> : vector<16xf32>
    %67 = vector.multi_reduction <add>, %64, %cst_31 [1] : vector<16x32xf32> to vector<16xf32>
    %68 = vector.shape_cast %67 : vector<16xf32> to vector<16x1xf32>
    %cst_32 = arith.constant 3.200000e+01 : f32
    %69 = vector.broadcast %cst_32 : f32 to vector<16x1xf32>
    %70 = arith.divf %68, %69 : vector<16x1xf32>
    %71 = vector.broadcast %70 : vector<16x1xf32> to vector<16x32xf32>
    %72 = arith.subf %64, %71 : vector<16x32xf32>
    %73 = arith.mulf %72, %72 : vector<16x32xf32>
    %cst_33 = arith.constant dense<0.000000e+00> : vector<16xf32>
    %74 = vector.multi_reduction <add>, %73, %cst_33 [1] : vector<16x32xf32> to vector<16xf32>
    %75 = vector.shape_cast %74 : vector<16xf32> to vector<16x1xf32>
    %cst_34 = arith.constant 3.200000e+01 : f32
    %76 = vector.broadcast %cst_34 : f32 to vector<16x1xf32>
    %77 = arith.divf %75, %76 : vector<16x1xf32>
    %cst_35 = arith.constant 9.99999974E-6 : f32
    %78 = vector.broadcast %cst_35 : f32 to vector<16x1xf32>
    %79 = arith.addf %77, %78 : vector<16x1xf32>
    %80 = math.rsqrt %79 : vector<16x1xf32>
    %81 = vector.broadcast %80 : vector<16x1xf32> to vector<16x32xf32>
    %82 = arith.mulf %72, %81 : vector<16x32xf32>
    %83 = vector.broadcast %65 : vector<1x32xf32> to vector<16x32xf32>
    %84 = arith.mulf %82, %83 : vector<16x32xf32>
    %85 = vector.broadcast %66 : vector<1x32xf32> to vector<16x32xf32>
    %86 = arith.addf %84, %85 : vector<16x32xf32>
    %87 = arith.truncf %86 : vector<16x32xf32> to vector<16x32xbf16>
    %c0_36 = arith.constant 0 : index
    %c0_37 = arith.constant 0 : index
    %c0_38 = arith.constant 0 : index
    %88 = vector.load %arg8[%c0_36, %c0_37, %c0_38] : memref<2x32x256xbf16, #tpu.memory_space<vmem>>, vector<1x32x256xbf16>
    %89 = vector.shape_cast %88 : vector<1x32x256xbf16> to vector<32x256xbf16>
    %cst_39 = arith.constant dense<0.000000e+00> : vector<16x256xf32>
    %90 = tpu.matmul %87, %89, %cst_39 {dimension_numbers = #tpu.dot_dimension_numbers<[1], [0], [0], [1], [0, 0, 1, 1], [], []>} : vector<16x32xbf16>, vector<32x256xbf16>, vector<16x256xf32> -> vector<16x256xf32>
    %c0_40 = arith.constant 0 : index
    %c0_41 = arith.constant 0 : index
    %91 = vector.load %arg9[%c0_40, %c0_41] : memref<2x256xf32, #tpu.memory_space<vmem>>, vector<1x256xf32>
    %92 = vector.broadcast %91 : vector<1x256xf32> to vector<16x256xf32>
    %93 = arith.addf %90, %92 : vector<16x256xf32>
    %94 = vector.extract_strided_slice %93 {offsets = [0, 0], sizes = [16, 128], strides = [1, 1]} : vector<16x256xf32> to vector<16x128xf32>
    %95 = vector.extract_strided_slice %93 {offsets = [0, 128], sizes = [16, 128], strides = [1, 1]} : vector<16x256xf32> to vector<16x128xf32>
    %cst_42 = arith.constant 5.000000e-01 : f32
    %96 = vector.broadcast %cst_42 : f32 to vector<16x128xf32>
    %97 = arith.mulf %96, %95 : vector<16x128xf32>
    %cst_43 = arith.constant 0.707106769 : f32
    %98 = vector.broadcast %cst_43 : f32 to vector<16x128xf32>
    %99 = arith.mulf %95, %98 : vector<16x128xf32>
    %100 = math.erf %99 : vector<16x128xf32>
    %cst_44 = arith.constant 1.000000e+00 : f32
    %101 = vector.broadcast %cst_44 : f32 to vector<16x128xf32>
    %102 = arith.addf %101, %100 : vector<16x128xf32>
    %103 = arith.mulf %97, %102 : vector<16x128xf32>
    %104 = arith.mulf %94, %103 : vector<16x128xf32>
    %105 = arith.truncf %104 : vector<16x128xf32> to vector<16x128xbf16>
    %c0_45 = arith.constant 0 : index
    %c0_46 = arith.constant 0 : index
    %c0_47 = arith.constant 0 : index
    %106 = vector.load %arg10[%c0_45, %c0_46, %c0_47] : memref<2x128x32xbf16, #tpu.memory_space<vmem>>, vector<1x128x32xbf16>
    %107 = vector.shape_cast %106 : vector<1x128x32xbf16> to vector<128x32xbf16>
    %cst_48 = arith.constant dense<0.000000e+00> : vector<16x32xf32>
    %108 = tpu.matmul %105, %107, %cst_48 {dimension_numbers = #tpu.dot_dimension_numbers<[1], [0], [0], [1], [0, 0, 1, 1], [], []>} : vector<16x128xbf16>, vector<128x32xbf16>, vector<16x32xf32> -> vector<16x32xf32>
    %c0_49 = arith.constant 0 : index
    %c0_50 = arith.constant 0 : index
    %109 = vector.load %arg11[%c0_49, %c0_50] : memref<2x32xf32, #tpu.memory_space<vmem>>, vector<1x32xf32>
    %110 = vector.broadcast %109 : vector<1x32xf32> to vector<16x32xf32>
    %111 = arith.addf %108, %110 : vector<16x32xf32>
    %112 = arith.addf %111, %64 : vector<16x32xf32>
    %c1_51 = arith.constant 1 : index
    %c0_52 = arith.constant 0 : index
    %113 = vector.load %arg2[%c1_51, %c0_52] : memref<2x32xf32, #tpu.memory_space<vmem>>, vector<1x32xf32>
    %c1_53 = arith.constant 1 : index
    %c0_54 = arith.constant 0 : index
    %114 = vector.load %arg3[%c1_53, %c0_54] : memref<2x32xf32, #tpu.memory_space<vmem>>, vector<1x32xf32>
    %cst_55 = arith.constant dense<0.000000e+00> : vector<16xf32>
    %115 = vector.multi_reduction <add>, %112, %cst_55 [1] : vector<16x32xf32> to vector<16xf32>
    %116 = vector.shape_cast %115 : vector<16xf32> to vector<16x1xf32>
    %cst_56 = arith.constant 3.200000e+01 : f32
    %117 = vector.broadcast %cst_56 : f32 to vector<16x1xf32>
    %118 = arith.divf %116, %117 : vector<16x1xf32>
    %119 = vector.broadcast %118 : vector<16x1xf32> to vector<16x32xf32>
    %120 = arith.subf %112, %119 : vector<16x32xf32>
    %121 = arith.mulf %120, %120 : vector<16x32xf32>
    %cst_57 = arith.constant dense<0.000000e+00> : vector<16xf32>
    %122 = vector.multi_reduction <add>, %121, %cst_57 [1] : vector<16x32xf32> to vector<16xf32>
    %123 = vector.shape_cast %122 : vector<16xf32> to vector<16x1xf32>
    %cst_58 = arith.constant 3.200000e+01 : f32
    %124 = vector.broadcast %cst_58 : f32 to vector<16x1xf32>
    %125 = arith.divf %123, %124 : vector<16x1xf32>
    %cst_59 = arith.constant 9.99999974E-6 : f32
    %126 = vector.broadcast %cst_59 : f32 to vector<16x1xf32>
    %127 = arith.addf %125, %126 : vector<16x1xf32>
    %128 = math.rsqrt %127 : vector<16x1xf32>
    %129 = vector.broadcast %128 : vector<16x1xf32> to vector<16x32xf32>
    %130 = arith.mulf %120, %129 : vector<16x32xf32>
    %131 = vector.broadcast %113 : vector<1x32xf32> to vector<16x32xf32>
    %132 = arith.mulf %130, %131 : vector<16x32xf32>
    %133 = vector.broadcast %114 : vector<1x32xf32> to vector<16x32xf32>
    %134 = arith.addf %132, %133 : vector<16x32xf32>
    %135 = arith.truncf %134 : vector<16x32xf32> to vector<16x32xbf16>
    %136 = vector.shape_cast %135 : vector<16x32xbf16> to vector<1x16x32xbf16>
    %137 = vector.broadcast %136 : vector<1x16x32xbf16> to vector<6x16x32xbf16>
    %c1_60 = arith.constant 1 : index
    %c0_61 = arith.constant 0 : index
    %c0_62 = arith.constant 0 : index
    %c0_63 = arith.constant 0 : index
    %138 = vector.load %arg4[%c1_60, %c0_61, %c0_62, %c0_63] : memref<2x6x32x16xbf16, #tpu.memory_space<vmem>>, vector<1x6x32x16xbf16>
    %139 = vector.shape_cast %138 : vector<1x6x32x16xbf16> to vector<6x32x16xbf16>
    "tpu.trace_start"() <{level = 10 : i32, message = "grd,gdk->grk"}> : () -> ()
    %cst_64 = arith.constant dense<0.000000e+00> : vector<6x16x16xf32>
    %140 = tpu.matmul %137, %139, %cst_64 {dimension_numbers = #tpu.dot_dimension_numbers<[2], [1], [1], [2], [0, 0, 0, 1, 1, 2], [0], [0]>} : vector<6x16x32xbf16>, vector<6x32x16xbf16>, vector<6x16x16xf32> -> vector<6x16x16xf32>
    "tpu.trace_stop"() : () -> ()
    %141 = vector.extract_strided_slice %140 {offsets = [0, 0, 0], sizes = [2, 16, 16], strides = [1, 1, 1]} : vector<6x16x16xf32> to vector<2x16x16xf32>
    %142 = vector.extract_strided_slice %140 {offsets = [2, 0, 0], sizes = [2, 16, 16], strides = [1, 1, 1]} : vector<6x16x16xf32> to vector<2x16x16xf32>
    %143 = vector.extract_strided_slice %140 {offsets = [4, 0, 0], sizes = [2, 16, 16], strides = [1, 1, 1]} : vector<6x16x16xf32> to vector<2x16x16xf32>
    %144 = vector.shape_cast %141 : vector<2x16x16xf32> to vector<4x8x16xf32>
    %145 = arith.truncf %144 : vector<4x8x16xf32> to vector<4x8x16xbf16>
    %146 = vector.shape_cast %142 : vector<2x16x16xf32> to vector<4x8x16xf32>
    %147 = arith.truncf %146 : vector<4x8x16xf32> to vector<4x8x16xbf16>
    %148 = vector.shape_cast %143 : vector<2x16x16xf32> to vector<4x8x16xf32>
    %149 = arith.truncf %148 : vector<4x8x16xf32> to vector<4x8x16xbf16>
    "tpu.trace_start"() <{level = 10 : i32, message = "gid,gjd->gij"}> : () -> ()
    %cst_65 = arith.constant dense<0.000000e+00> : vector<4x8x8xf32>
    %150 = tpu.matmul %145, %147, %cst_65 {dimension_numbers = #tpu.dot_dimension_numbers<[2], [2], [1], [1], [0, 0, 0, 1, 1, 1], [0], [0]>} : vector<4x8x16xbf16>, vector<4x8x16xbf16>, vector<4x8x8xf32> -> vector<4x8x8xf32>
    "tpu.trace_stop"() : () -> ()
    %cst_66 = arith.constant dense<0xFF800000> : vector<4x8xf32>
    %151 = vector.multi_reduction <maximumf>, %150, %cst_66 [2] : vector<4x8x8xf32> to vector<4x8xf32>
    %152 = vector.shape_cast %151 : vector<4x8xf32> to vector<4x8x1xf32>
    %153 = vector.broadcast %152 : vector<4x8x1xf32> to vector<4x8x8xf32>
    %154 = arith.subf %150, %153 : vector<4x8x8xf32>
    %155 = math.exp %154 : vector<4x8x8xf32>
    %cst_67 = arith.constant dense<0.000000e+00> : vector<4x8xf32>
    %156 = vector.multi_reduction <add>, %155, %cst_67 [2] : vector<4x8x8xf32> to vector<4x8xf32>
    %157 = vector.shape_cast %156 : vector<4x8xf32> to vector<4x8x1xf32>
    %158 = tpu.reciprocal %157 : vector<4x8x1xf32> -> vector<4x8x1xf32>
    %159 = vector.broadcast %158 : vector<4x8x1xf32> to vector<4x8x8xf32>
    %160 = arith.mulf %155, %159 : vector<4x8x8xf32>
    %161 = arith.truncf %160 : vector<4x8x8xf32> to vector<4x8x8xbf16>
    "tpu.trace_start"() <{level = 10 : i32, message = "gij,gjd->gid"}> : () -> ()
    %cst_68 = arith.constant dense<0.000000e+00> : vector<4x8x16xf32>
    %162 = tpu.matmul %161, %149, %cst_68 {dimension_numbers = #tpu.dot_dimension_numbers<[2], [1], [1], [2], [0, 0, 0, 1, 1, 2], [0], [0]>} : vector<4x8x8xbf16>, vector<4x8x16xbf16>, vector<4x8x16xf32> -> vector<4x8x16xf32>
    "tpu.trace_stop"() : () -> ()
    %163 = vector.shape_cast %162 : vector<4x8x16xf32> to vector<2x16x16xf32>
    %164 = arith.truncf %163 : vector<2x16x16xf32> to vector<2x16x16xbf16>
    %165 = vector.extract_strided_slice %164 {offsets = [0, 0, 0], sizes = [1, 16, 16], strides = [1, 1, 1]} : vector<2x16x16xbf16> to vector<1x16x16xbf16>
    %166 = vector.shape_cast %165 : vector<1x16x16xbf16> to vector<16x16xbf16>
    %c1_69 = arith.constant 1 : index
    %c0_70 = arith.constant 0 : index
    %c0_71 = arith.constant 0 : index
    %c0_72 = arith.constant 0 : index
    %167 = vector.load %arg5[%c1_69, %c0_70, %c0_71, %c0_72] : memref<2x2x16x32xbf16, #tpu.memory_space<vmem>>, vector<1x1x16x32xbf16>
    %168 = vector.shape_cast %167 : vector<1x1x16x32xbf16> to vector<16x32xbf16>
    %cst_73 = arith.constant dense<0.000000e+00> : vector<16x32xf32>
    %169 = tpu.matmul %166, %168, %cst_73 {dimension_numbers = #tpu.dot_dimension_numbers<[1], [0], [0], [1], [0, 0, 1, 1], [], []>} : vector<16x16xbf16>, vector<16x32xbf16>, vector<16x32xf32> -> vector<16x32xf32>
    %170 = vector.extract_strided_slice %164 {offsets = [1, 0, 0], sizes = [1, 16, 16], strides = [1, 1, 1]} : vector<2x16x16xbf16> to vector<1x16x16xbf16>
    %171 = vector.shape_cast %170 : vector<1x16x16xbf16> to vector<16x16xbf16>
    %c1_74 = arith.constant 1 : index
    %c1_75 = arith.constant 1 : index
    %c0_76 = arith.constant 0 : index
    %c0_77 = arith.constant 0 : index
    %172 = vector.load %arg5[%c1_74, %c1_75, %c0_76, %c0_77] : memref<2x2x16x32xbf16, #tpu.memory_space<vmem>>, vector<1x1x16x32xbf16>
    %173 = vector.shape_cast %172 : vector<1x1x16x32xbf16> to vector<16x32xbf16>
    %cst_78 = arith.constant dense<0.000000e+00> : vector<16x32xf32>
    %174 = tpu.matmul %171, %173, %cst_78 {dimension_numbers = #tpu.dot_dimension_numbers<[1], [0], [0], [1], [0, 0, 1, 1], [], []>} : vector<16x16xbf16>, vector<16x32xbf16>, vector<16x32xf32> -> vector<16x32xf32>
    %175 = arith.addf %169, %174 : vector<16x32xf32>
    %176 = arith.addf %175, %112 : vector<16x32xf32>
    %c1_79 = arith.constant 1 : index
    %c0_80 = arith.constant 0 : index
    %177 = vector.load %arg6[%c1_79, %c0_80] : memref<2x32xf32, #tpu.memory_space<vmem>>, vector<1x32xf32>
    %c1_81 = arith.constant 1 : index
    %c0_82 = arith.constant 0 : index
    %178 = vector.load %arg7[%c1_81, %c0_82] : memref<2x32xf32, #tpu.memory_space<vmem>>, vector<1x32xf32>
    %cst_83 = arith.constant dense<0.000000e+00> : vector<16xf32>
    %179 = vector.multi_reduction <add>, %176, %cst_83 [1] : vector<16x32xf32> to vector<16xf32>
    %180 = vector.shape_cast %179 : vector<16xf32> to vector<16x1xf32>
    %cst_84 = arith.constant 3.200000e+01 : f32
    %181 = vector.broadcast %cst_84 : f32 to vector<16x1xf32>
    %182 = arith.divf %180, %181 : vector<16x1xf32>
    %183 = vector.broadcast %182 : vector<16x1xf32> to vector<16x32xf32>
    %184 = arith.subf %176, %183 : vector<16x32xf32>
    %185 = arith.mulf %184, %184 : vector<16x32xf32>
    %cst_85 = arith.constant dense<0.000000e+00> : vector<16xf32>
    %186 = vector.multi_reduction <add>, %185, %cst_85 [1] : vector<16x32xf32> to vector<16xf32>
    %187 = vector.shape_cast %186 : vector<16xf32> to vector<16x1xf32>
    %cst_86 = arith.constant 3.200000e+01 : f32
    %188 = vector.broadcast %cst_86 : f32 to vector<16x1xf32>
    %189 = arith.divf %187, %188 : vector<16x1xf32>
    %cst_87 = arith.constant 9.99999974E-6 : f32
    %190 = vector.broadcast %cst_87 : f32 to vector<16x1xf32>
    %191 = arith.addf %189, %190 : vector<16x1xf32>
    %192 = math.rsqrt %191 : vector<16x1xf32>
    %193 = vector.broadcast %192 : vector<16x1xf32> to vector<16x32xf32>
    %194 = arith.mulf %184, %193 : vector<16x32xf32>
    %195 = vector.broadcast %177 : vector<1x32xf32> to vector<16x32xf32>
    %196 = arith.mulf %194, %195 : vector<16x32xf32>
    %197 = vector.broadcast %178 : vector<1x32xf32> to vector<16x32xf32>
    %198 = arith.addf %196, %197 : vector<16x32xf32>
    %199 = arith.truncf %198 : vector<16x32xf32> to vector<16x32xbf16>
    %c1_88 = arith.constant 1 : index
    %c0_89 = arith.constant 0 : index
    %c0_90 = arith.constant 0 : index
    %200 = vector.load %arg8[%c1_88, %c0_89, %c0_90] : memref<2x32x256xbf16, #tpu.memory_space<vmem>>, vector<1x32x256xbf16>
    %201 = vector.shape_cast %200 : vector<1x32x256xbf16> to vector<32x256xbf16>
    %cst_91 = arith.constant dense<0.000000e+00> : vector<16x256xf32>
    %202 = tpu.matmul %199, %201, %cst_91 {dimension_numbers = #tpu.dot_dimension_numbers<[1], [0], [0], [1], [0, 0, 1, 1], [], []>} : vector<16x32xbf16>, vector<32x256xbf16>, vector<16x256xf32> -> vector<16x256xf32>
    %c1_92 = arith.constant 1 : index
    %c0_93 = arith.constant 0 : index
    %203 = vector.load %arg9[%c1_92, %c0_93] : memref<2x256xf32, #tpu.memory_space<vmem>>, vector<1x256xf32>
    %204 = vector.broadcast %203 : vector<1x256xf32> to vector<16x256xf32>
    %205 = arith.addf %202, %204 : vector<16x256xf32>
    %206 = vector.extract_strided_slice %205 {offsets = [0, 0], sizes = [16, 128], strides = [1, 1]} : vector<16x256xf32> to vector<16x128xf32>
    %207 = vector.extract_strided_slice %205 {offsets = [0, 128], sizes = [16, 128], strides = [1, 1]} : vector<16x256xf32> to vector<16x128xf32>
    %cst_94 = arith.constant 5.000000e-01 : f32
    %208 = vector.broadcast %cst_94 : f32 to vector<16x128xf32>
    %209 = arith.mulf %208, %207 : vector<16x128xf32>
    %cst_95 = arith.constant 0.707106769 : f32
    %210 = vector.broadcast %cst_95 : f32 to vector<16x128xf32>
    %211 = arith.mulf %207, %210 : vector<16x128xf32>
    %212 = math.erf %211 : vector<16x128xf32>
    %cst_96 = arith.constant 1.000000e+00 : f32
    %213 = vector.broadcast %cst_96 : f32 to vector<16x128xf32>
    %214 = arith.addf %213, %212 : vector<16x128xf32>
    %215 = arith.mulf %209, %214 : vector<16x128xf32>
    %216 = arith.mulf %206, %215 : vector<16x128xf32>
    %217 = arith.truncf %216 : vector<16x128xf32> to vector<16x128xbf16>
    %c1_97 = arith.constant 1 : index
    %c0_98 = arith.constant 0 : index
    %c0_99 = arith.constant 0 : index
    %218 = vector.load %arg10[%c1_97, %c0_98, %c0_99] : memref<2x128x32xbf16, #tpu.memory_space<vmem>>, vector<1x128x32xbf16>
    %219 = vector.shape_cast %218 : vector<1x128x32xbf16> to vector<128x32xbf16>
    %cst_100 = arith.constant dense<0.000000e+00> : vector<16x32xf32>
    %220 = tpu.matmul %217, %219, %cst_100 {dimension_numbers = #tpu.dot_dimension_numbers<[1], [0], [0], [1], [0, 0, 1, 1], [], []>} : vector<16x128xbf16>, vector<128x32xbf16>, vector<16x32xf32> -> vector<16x32xf32>
    %c1_101 = arith.constant 1 : index
    %c0_102 = arith.constant 0 : index
    %221 = vector.load %arg11[%c1_101, %c0_102] : memref<2x32xf32, #tpu.memory_space<vmem>>, vector<1x32xf32>
    %222 = vector.broadcast %221 : vector<1x32xf32> to vector<16x32xf32>
    %223 = arith.addf %220, %222 : vector<16x32xf32>
    %224 = arith.addf %223, %176 : vector<16x32xf32>
    %225 = vector.extract_strided_slice %224 {offsets = [0, 0], sizes = [1, 32], strides = [1, 1]} : vector<16x32xf32> to vector<1x32xf32>
    %226 = vector.extract_strided_slice %224 {offsets = [8, 0], sizes = [1, 32], strides = [1, 1]} : vector<16x32xf32> to vector<1x32xf32>
    %227 = tpu.concatenate %225, %226 in 0 : vector<1x32xf32>, vector<1x32xf32> -> vector<2x32xf32>
    %c0_103 = arith.constant 0 : index
    %c0_104 = arith.constant 0 : index
    %228 = vector.load %arg12[%c0_103, %c0_104] : memref<1x32xf32, #tpu.memory_space<vmem>>, vector<1x32xf32>
    %c0_105 = arith.constant 0 : index
    %c0_106 = arith.constant 0 : index
    %229 = vector.load %arg13[%c0_105, %c0_106] : memref<1x32xf32, #tpu.memory_space<vmem>>, vector<1x32xf32>
    %cst_107 = arith.constant dense<0.000000e+00> : vector<2xf32>
    %230 = vector.multi_reduction <add>, %227, %cst_107 [1] : vector<2x32xf32> to vector<2xf32>
    %231 = vector.shape_cast %230 : vector<2xf32> to vector<2x1xf32>
    %cst_108 = arith.constant 3.200000e+01 : f32
    %232 = vector.broadcast %cst_108 : f32 to vector<2x1xf32>
    %233 = arith.divf %231, %232 : vector<2x1xf32>
    %234 = vector.broadcast %233 : vector<2x1xf32> to vector<2x32xf32>
    %235 = arith.subf %227, %234 : vector<2x32xf32>
    %236 = arith.mulf %235, %235 : vector<2x32xf32>
    %cst_109 = arith.constant dense<0.000000e+00> : vector<2xf32>
    %237 = vector.multi_reduction <add>, %236, %cst_109 [1] : vector<2x32xf32> to vector<2xf32>
    %238 = vector.shape_cast %237 : vector<2xf32> to vector<2x1xf32>
    %cst_110 = arith.constant 3.200000e+01 : f32
    %239 = vector.broadcast %cst_110 : f32 to vector<2x1xf32>
    %240 = arith.divf %238, %239 : vector<2x1xf32>
    %cst_111 = arith.constant 9.99999974E-6 : f32
    %241 = vector.broadcast %cst_111 : f32 to vector<2x1xf32>
    %242 = arith.addf %240, %241 : vector<2x1xf32>
    %243 = math.rsqrt %242 : vector<2x1xf32>
    %244 = vector.broadcast %243 : vector<2x1xf32> to vector<2x32xf32>
    %245 = arith.mulf %235, %244 : vector<2x32xf32>
    %246 = vector.broadcast %228 : vector<1x32xf32> to vector<2x32xf32>
    %247 = arith.mulf %245, %246 : vector<2x32xf32>
    %248 = vector.broadcast %229 : vector<1x32xf32> to vector<2x32xf32>
    %249 = arith.addf %247, %248 : vector<2x32xf32>
    %cst_112 = arith.constant 0.000000e+00 : f32
    %250 = vector.broadcast %cst_112 : f32 to vector<2x32xf32>
    %251 = arith.maximumf %249, %250 : vector<2x32xf32>
    %252 = arith.truncf %251 : vector<2x32xf32> to vector<2x32xbf16>
    %c0_113 = arith.constant 0 : index
    %c0_114 = arith.constant 0 : index
    %253 = vector.load %arg14[%c0_113, %c0_114] : memref<32x1xbf16, #tpu.memory_space<vmem>>, vector<32x1xbf16>
    %cst_115 = arith.constant dense<0.000000e+00> : vector<2x1xf32>
    %254 = tpu.matmul %252, %253, %cst_115 {dimension_numbers = #tpu.dot_dimension_numbers<[1], [0], [0], [1], [0, 0, 1, 1], [], []>} : vector<2x32xbf16>, vector<32x1xbf16>, vector<2x1xf32> -> vector<2x1xf32>
    %c0_116 = arith.constant 0 : index
    %c0_117 = arith.constant 0 : index
    %255 = vector.load %arg15[%c0_116, %c0_117] : memref<1x1xf32, #tpu.memory_space<vmem>>, vector<1x1xf32>
    %256 = vector.broadcast %255 : vector<1x1xf32> to vector<2x1xf32>
    %257 = arith.addf %254, %256 : vector<2x1xf32>
    %258 = vector.shape_cast %257 : vector<2x1xf32> to vector<2x1x1xf32>
    %c0_118 = arith.constant 0 : index
    %c0_119 = arith.constant 0 : index
    %c0_120 = arith.constant 0 : index
    %259 = vector.load %arg16[%c0_118, %c0_119, %c0_120] : memref<2x1x1xf32, #tpu.memory_space<vmem>>, vector<2x1x1xf32>
    tpu.vector_store %arg16[%c0_118, %c0_119, %c0_120], %258 {strides = array<i32>} : memref<2x1x1xf32, #tpu.memory_space<vmem>>, vector<2x1x1xf32>,
    return
  }
  func.func @transform_0(%arg0: i32) -> (i32, i32) {
    %c0_i32 = arith.constant 0 : i32
    %c0_i32_0 = arith.constant 0 : i32
    return %arg0, %c0_i32 : i32, i32
  }
  func.func @transform_1(%arg0: i32) -> (i32, i32) {
    %c0_i32 = arith.constant 0 : i32
    %c0_i32_0 = arith.constant 0 : i32
    %c0_i32_1 = arith.constant 0 : i32
    return %c0_i32, %c0_i32_0 : i32, i32
  }
  func.func @transform_2(%arg0: i32) -> (i32, i32) {
    %c0_i32 = arith.constant 0 : i32
    %c0_i32_0 = arith.constant 0 : i32
    %c0_i32_1 = arith.constant 0 : i32
    return %c0_i32, %c0_i32_0 : i32, i32
  }
  func.func @transform_3(%arg0: i32) -> (i32, i32, i32, i32) {
    %c0_i32 = arith.constant 0 : i32
    %c0_i32_0 = arith.constant 0 : i32
    %c0_i32_1 = arith.constant 0 : i32
    %c0_i32_2 = arith.constant 0 : i32
    %c0_i32_3 = arith.constant 0 : i32
    return %c0_i32, %c0_i32_0, %c0_i32_1, %c0_i32_2 : i32, i32, i32, i32
  }
  func.func @transform_4(%arg0: i32) -> (i32, i32, i32, i32) {
    %c0_i32 = arith.constant 0 : i32
    %c0_i32_0 = arith.constant 0 : i32
    %c0_i32_1 = arith.constant 0 : i32
    %c0_i32_2 = arith.constant 0 : i32
    %c0_i32_3 = arith.constant 0 : i32
    return %c0_i32, %c0_i32_0, %c0_i32_1, %c0_i32_2 : i32, i32, i32, i32
  }
  func.func @transform_5(%arg0: i32) -> (i32, i32) {
    %c0_i32 = arith.constant 0 : i32
    %c0_i32_0 = arith.constant 0 : i32
    %c0_i32_1 = arith.constant 0 : i32
    return %c0_i32, %c0_i32_0 : i32, i32
  }
  func.func @transform_6(%arg0: i32) -> (i32, i32) {
    %c0_i32 = arith.constant 0 : i32
    %c0_i32_0 = arith.constant 0 : i32
    %c0_i32_1 = arith.constant 0 : i32
    return %c0_i32, %c0_i32_0 : i32, i32
  }
  func.func @transform_7(%arg0: i32) -> (i32, i32, i32) {
    %c0_i32 = arith.constant 0 : i32
    %c0_i32_0 = arith.constant 0 : i32
    %c0_i32_1 = arith.constant 0 : i32
    %c0_i32_2 = arith.constant 0 : i32
    return %c0_i32, %c0_i32_0, %c0_i32_1 : i32, i32, i32
  }
  func.func @transform_8(%arg0: i32) -> (i32, i32) {
    %c0_i32 = arith.constant 0 : i32
    %c0_i32_0 = arith.constant 0 : i32
    %c0_i32_1 = arith.constant 0 : i32
    return %c0_i32, %c0_i32_0 : i32, i32
  }
  func.func @transform_9(%arg0: i32) -> (i32, i32, i32) {
    %c0_i32 = arith.constant 0 : i32
    %c0_i32_0 = arith.constant 0 : i32
    %c0_i32_1 = arith.constant 0 : i32
    %c0_i32_2 = arith.constant 0 : i32
    return %c0_i32, %c0_i32_0, %c0_i32_1 : i32, i32, i32
  }
  func.func @transform_10(%arg0: i32) -> (i32, i32) {
    %c0_i32 = arith.constant 0 : i32
    %c0_i32_0 = arith.constant 0 : i32
    %c0_i32_1 = arith.constant 0 : i32
    return %c0_i32, %c0_i32_0 : i32, i32
  }
  func.func @transform_11(%arg0: i32) -> (i32, i32) {
    %c0_i32 = arith.constant 0 : i32
    %c0_i32_0 = arith.constant 0 : i32
    %c0_i32_1 = arith.constant 0 : i32
    return %c0_i32, %c0_i32_0 : i32, i32
  }
  func.func @transform_12(%arg0: i32) -> (i32, i32) {
    %c0_i32 = arith.constant 0 : i32
    %c0_i32_0 = arith.constant 0 : i32
    %c0_i32_1 = arith.constant 0 : i32
    return %c0_i32, %c0_i32_0 : i32, i32
  }
  func.func @transform_13(%arg0: i32) -> (i32, i32) {
    %c0_i32 = arith.constant 0 : i32
    %c0_i32_0 = arith.constant 0 : i32
    %c0_i32_1 = arith.constant 0 : i32
    return %c0_i32, %c0_i32_0 : i32, i32
  }
  func.func @transform_14(%arg0: i32) -> (i32, i32) {
    %c0_i32 = arith.constant 0 : i32
    %c0_i32_0 = arith.constant 0 : i32
    %c0_i32_1 = arith.constant 0 : i32
    return %c0_i32, %c0_i32_0 : i32, i32
  }
  func.func @transform_15(%arg0: i32) -> (i32, i32, i32) {
    %c0_i32 = arith.constant 0 : i32
    %c0_i32_0 = arith.constant 0 : i32
    %c0_i32_1 = arith.constant 0 : i32
    return %arg0, %c0_i32, %c0_i32_0 : i32, i32, i32
  }
}

</mosaic_0001>

<llo_original>
// kernel: tpu_custom_call.1
$region0: #{tpu_custom_call.1}
  #allocation0 [shape = 'u32[]', space=smem, size = 0x4, offset = 0x4, fixed_abs, tag = 'smem constant byte address 0x4 - core index']
  #allocation1 [shape = 'u32[144,128]{1,0:T(1,128)}', space=vmem, size = 0x12000, scoped, tag = 'internal scratch']
  #allocation2 [shape = 'f32[1,1]{1,0:T(1,128)S(1)}', space=vmem, size = 0x200, scoped, tag = 'scoped memory for tpu_custom_call.1']
  %s0 = inlined_call_operand.vmem [shape: f32[16,32], index: 0, kind: input, shape index: {}]
  %s1 = inlined_call_operand.vmem [shape: f32[2,32], index: 1, kind: input, shape index: {}]
  %s2 = inlined_call_operand.vmem [shape: f32[2,32], index: 2, kind: input, shape index: {}]
  %s3 = inlined_call_operand.vmem [shape: bf16[2,6,32,16], index: 3, kind: input, shape index: {}]
  %s4 = inlined_call_operand.vmem [shape: bf16[2,2,16,32], index: 4, kind: input, shape index: {}]
  %s5 = inlined_call_operand.vmem [shape: f32[2,32], index: 5, kind: input, shape index: {}]
  %s6 = inlined_call_operand.vmem [shape: f32[2,32], index: 6, kind: input, shape index: {}]
  %s7 = inlined_call_operand.vmem [shape: bf16[2,32,256], index: 7, kind: input, shape index: {}]
  %s8 = inlined_call_operand.vmem [shape: f32[2,256], index: 8, kind: input, shape index: {}]
  %s9 = inlined_call_operand.vmem [shape: bf16[2,128,32], index: 9, kind: input, shape index: {}]
  %s10 = inlined_call_operand.vmem [shape: f32[2,32], index: 10, kind: input, shape index: {}]
  %s11 = inlined_call_operand.vmem [shape: f32[1,32], index: 11, kind: input, shape index: {}]
  %s12 = inlined_call_operand.vmem [shape: f32[1,32], index: 12, kind: input, shape index: {}]
  %s13 = inlined_call_operand.vmem [shape: bf16[32,1], index: 13, kind: input, shape index: {}]
  %s14 = inlined_call_operand.<no memory space> [shape: f32[1,1], index: 14, kind: input, shape index: {}]
  %s15 = inlined_call_operand.vmem [shape: f32[2,1,1], index: 15, kind: output, shape index: {}]
  %s16 = sld [smem:[#allocation0]]
  $region70: #{tpu_custom_call.1} parent=0
    _
  %s18 = ssub.s32 1, %s16
  %s19 = scalar_select 0, %s18, %s16
  %v20 = vstv %s14
  %21 = vst [vmem:[#allocation2] sm:$0x1] %v20
  // Predicated region
  $region2: #{tpu_custom_call.1} parent=0 // pred_check
    _
  $region3: #{tpu_custom_call.1} parent=0 // pred_check_branch
    %23 = sbr.rel (0) target = $region5
  $region4: #{tpu_custom_call.1} parent=0 // pred_region
    _
  $region5: #{tpu_custom_call.1} parent=0 // pred_fallthru
    _
  // Predicated region
  $region6: #{tpu_custom_call.1} parent=0 // pred_check
    _
  $region7: #{tpu_custom_call.1} parent=0 // pred_check_branch
    %25 = sbr.rel (0) target = $region9
  $region8: #{tpu_custom_call.1} parent=0 // pred_region
    _
  $region9: #{tpu_custom_call.1} parent=0 // pred_fallthru
    _
  // Predicated region
  $region10: #{tpu_custom_call.1} parent=0 // pred_check
    _
  $region11: #{tpu_custom_call.1} parent=0 // pred_check_branch
    %27 = sbr.rel (0) target = $region13
  $region12: #{tpu_custom_call.1} parent=0 // pred_region
    _
  $region13: #{tpu_custom_call.1} parent=0 // pred_fallthru
    _
  // Predicated region
  $region14: #{tpu_custom_call.1} parent=0 // pred_check
    _
  $region15: #{tpu_custom_call.1} parent=0 // pred_check_branch
    %29 = sbr.rel (0) target = $region17
  $region16: #{tpu_custom_call.1} parent=0 // pred_region
    _
  $region17: #{tpu_custom_call.1} parent=0 // pred_fallthru
    _
  // Predicated region
  $region18: #{tpu_custom_call.1} parent=0 // pred_check
    _
  $region19: #{tpu_custom_call.1} parent=0 // pred_check_branch
    %31 = sbr.rel (0) target = $region21
  $region20: #{tpu_custom_call.1} parent=0 // pred_region
    _
  $region21: #{tpu_custom_call.1} parent=0 // pred_fallthru
    _
  // Predicated region
  $region22: #{tpu_custom_call.1} parent=0 // pred_check
    _
  $region23: #{tpu_custom_call.1} parent=0 // pred_check_branch
    %33 = sbr.rel (0) target = $region25
  $region24: #{tpu_custom_call.1} parent=0 // pred_region
    _
  $region25: #{tpu_custom_call.1} parent=0 // pred_fallthru
    _
  // Predicated region
  $region26: #{tpu_custom_call.1} parent=0 // pred_check
    _
  $region27: #{tpu_custom_call.1} parent=0 // pred_check_branch
    %35 = sbr.rel (0) target = $region29
  $region28: #{tpu_custom_call.1} parent=0 // pred_region
    _
  $region29: #{tpu_custom_call.1} parent=0 // pred_fallthru
    _
  // Predicated region
  $region30: #{tpu_custom_call.1} parent=0 // pred_check
    _
  $region31: #{tpu_custom_call.1} parent=0 // pred_check_branch
    %37 = sbr.rel (0) target = $region33
  $region32: #{tpu_custom_call.1} parent=0 // pred_region
    _
  $region33: #{tpu_custom_call.1} parent=0 // pred_fallthru
    _
  // Predicated region
  $region34: #{tpu_custom_call.1} parent=0 // pred_check
    _
  $region35: #{tpu_custom_call.1} parent=0 // pred_check_branch
    %39 = sbr.rel (0) target = $region37
  $region36: #{tpu_custom_call.1} parent=0 // pred_region
    _
  $region37: #{tpu_custom_call.1} parent=0 // pred_fallthru
    _
  // Predicated region
  $region38: #{tpu_custom_call.1} parent=0 // pred_check
    _
  $region39: #{tpu_custom_call.1} parent=0 // pred_check_branch
    %41 = sbr.rel (0) target = $region41
  $region40: #{tpu_custom_call.1} parent=0 // pred_region
    _
  $region41: #{tpu_custom_call.1} parent=0 // pred_fallthru
    _
  // Predicated region
  $region42: #{tpu_custom_call.1} parent=0 // pred_check
    _
  $region43: #{tpu_custom_call.1} parent=0 // pred_check_branch
    %43 = sbr.rel (0) target = $region45
  $region44: #{tpu_custom_call.1} parent=0 // pred_region
    _
  $region45: #{tpu_custom_call.1} parent=0 // pred_fallthru
    _
  // Predicated region
  $region46: #{tpu_custom_call.1} parent=0 // pred_check
    _
  $region47: #{tpu_custom_call.1} parent=0 // pred_check_branch
    %45 = sbr.rel (0) target = $region49
  $region48: #{tpu_custom_call.1} parent=0 // pred_region
    _
  $region49: #{tpu_custom_call.1} parent=0 // pred_fallthru
    _
  // Predicated region
  $region50: #{tpu_custom_call.1} parent=0 // pred_check
    _
  $region51: #{tpu_custom_call.1} parent=0 // pred_check_branch
    %47 = sbr.rel (0) target = $region53
  $region52: #{tpu_custom_call.1} parent=0 // pred_region
    _
  $region53: #{tpu_custom_call.1} parent=0 // pred_fallthru
    _
  // Predicated region
  $region54: #{tpu_custom_call.1} parent=0 // pred_check
    _
  $region55: #{tpu_custom_call.1} parent=0 // pred_check_branch
    %49 = sbr.rel (0) target = $region57
  $region56: #{tpu_custom_call.1} parent=0 // pred_region
    _
  $region57: #{tpu_custom_call.1} parent=0 // pred_fallthru
    _
  // Predicated region
  $region58: #{tpu_custom_call.1} parent=0 // pred_check
    _
  $region59: #{tpu_custom_call.1} parent=0 // pred_check_branch
    %51 = sbr.rel (0) target = $region61
  $region60: #{tpu_custom_call.1} parent=0 // pred_region
    _
  $region61: #{tpu_custom_call.1} parent=0 // pred_fallthru
    _
  %v53 = vld [vmem:[%s0] sm:$0xff]
  %v54 = vld [vmem:[%s0 + $0x8] sm:$0xff]
  %v55 = vld [vmem:[%s1] sm:$0x1]
  %v56 = vld [vmem:[%s2] sm:$0x1]
  %vm57 = vcmask 261120
  %v58 = vsel %vm57, %v53, 0.0
  %59 = vadd.xlane.f32.xlu0 %v58
  %v60 = vpop.xlane.xlu0 %59
  %v61 = vsel %vm57, %v54, 0.0
  %62 = vadd.xlane.f32.xlu0 %v61
  %v63 = vpop.xlane.xlu0 %62
  %v64 = vrcp.pop 32.0
  %v65 = vmul.f32 %v60, %v64
  %v66 = vmul.f32 %v63, %v64
  %v67 = vsub.f32 %v53, %v65
  %v68 = vsub.f32 %v54, %v66
  %v69 = vmul.f32 %v67, %v67
  %v70 = vmul.f32 %v68, %v68
  %v71 = vsel %vm57, %v69, 0.0
  %72 = vadd.xlane.f32.xlu0 %v71
  %v73 = vpop.xlane.xlu0 %72
  %v74 = vsel %vm57, %v70, 0.0
  %75 = vadd.xlane.f32.xlu0 %v74
  %v76 = vpop.xlane.xlu0 %75
  %v77 = vmul.f32 %v73, %v64
  %v78 = vmul.f32 %v76, %v64
  %v79 = vadd.f32 %v77, 1e-05
  %v80 = vadd.f32 %v78, 1e-05
  %v81 = vrsqrt.pop %v79
  %v82 = vrsqrt.pop %v80
  %v83 = vmul.f32 %v67, %v81
  %v84 = vmul.f32 %v68, %v82
  %v85 = vlaneseq
  %v86 = vshrl.u32 %v85, 7
  %v87 = vsub.s32 0, %v86
  %v88 = vrot.slane %v55, %v87
  %v89 = vmul.f32 %v83, %v88
  %v90 = vmul.f32 %v84, %v88
  %v91 = vlaneseq
  %v92 = vshrl.u32 %v91, 7
  %v93 = vsub.s32 0, %v92
  %v94 = vrot.slane %v56, %v93
  %v95 = vadd.f32 %v89, %v94
  %v96 = vadd.f32 %v90, %v94
  %v97 = vpack.c.bf16 %v96, %v95
  %v98 = vld [vmem:[%s3] sm:$0xf]
  %v99 = vld [vmem:[%s3 + $0x4] sm:$0xf]
  %v100 = vld [vmem:[%s3 + $0x8] sm:$0xf]
  %v101 = vld [vmem:[%s3 + $0xc] sm:$0xf]
  %v102 = vld [vmem:[%s3 + $0x10] sm:$0xf]
  %v103 = vld [vmem:[%s3 + $0x14] sm:$0xf]
  %v104 = vld [vmem:[%s3 + $0x18] sm:$0xf]
  %v105 = vld [vmem:[%s3 + $0x1c] sm:$0xf]
  %v106 = vld [vmem:[%s3 + $0x20] sm:$0xf]
  %v107 = vld [vmem:[%s3 + $0x24] sm:$0xf]
  %v108 = vld [vmem:[%s3 + $0x28] sm:$0xf]
  %v109 = vld [vmem:[%s3 + $0x2c] sm:$0xf]
  %v110 = vld [vmem:[%s3 + $0x30] sm:$0xf]
  %v111 = vld [vmem:[%s3 + $0x34] sm:$0xf]
  %v112 = vld [vmem:[%s3 + $0x38] sm:$0xf]
  %v113 = vld [vmem:[%s3 + $0x3c] sm:$0xf]
  %v114 = vld [vmem:[%s3 + $0x40] sm:$0xf]
  %v115 = vld [vmem:[%s3 + $0x44] sm:$0xf]
  %v116 = vld [vmem:[%s3 + $0x48] sm:$0xf]
  %v117 = vld [vmem:[%s3 + $0x4c] sm:$0xf]
  %v118 = vld [vmem:[%s3 + $0x50] sm:$0xf]
  %v119 = vld [vmem:[%s3 + $0x54] sm:$0xf]
  %v120 = vld [vmem:[%s3 + $0x58] sm:$0xf]
  %v121 = vld [vmem:[%s3 + $0x5c] sm:$0xf]
  %v126 = vunpack.c.l.b16 %v98
  %v127 = vunpack.c.l.b16 %v99
  %v128 = vunpack.c.l.b16 %v100
  %v129 = vunpack.c.l.b16 %v101
  %v130 = vpack.c.b16 %v127, %v126
  %v131 = vpack.c.b16 %v129, %v128
  %v135 = vsel %vm57, %v97, 0
  %137 = vmatprep.subr.bf16.mxu0 0
  %138 = vmatpush1.bf16.msra.mxu0 0
  %139 = vmatprep.subr.bf16.mxu0 0
  %140 = vmatpush1.bf16.msra.mxu0 0
  %141 = vmatprep.subr.bf16.mxu0 0
  %142 = vmatpush1.bf16.msra.mxu0 0
  %143 = vmatprep.subr.bf16.mxu0 0
  %144 = vmatpush1.bf16.msra.mxu0 0
  %145 = vmatprep.subr.bf16.mxu0 0
  %146 = vmatpush1.bf16.msra.mxu0 0
  %147 = vmatprep.subr.bf16.mxu0 0
  %148 = vmatpush1.bf16.msra.mxu0 0
  %149 = vmatprep.subr.bf16.mxu0 0
  %150 = vmatpush1.bf16.msra.mxu0 %v131
  %151 = vmatprep.subr.bf16.mxu0 0
  %152 = vmatpush1.bf16.msra.mxu0 %v130
  %153 = vmatprep.subr.bf16.mxu0 0
  %154 = vmatpush2.bf16.msra.mxu0 0
  %155 = vmatprep.subr.bf16.mxu0 0
  %156 = vmatpush2.bf16.msra.mxu0 0
  %157 = vmatprep.subr.bf16.mxu0 0
  %158 = vmatpush2.bf16.msra.mxu0 0
  %159 = vmatprep.subr.bf16.mxu0 0
  %160 = vmatpush2.bf16.msra.mxu0 0
  %161 = vmatprep.subr.bf16.mxu0 0
  %162 = vmatpush2.bf16.msra.mxu0 0
  %163 = vmatprep.subr.bf16.mxu0 0
  %164 = vmatpush2.bf16.msra.mxu0 0
  %165 = vmatprep.subr.bf16.mxu0 0
  %166 = vmatpush2.bf16.msra.mxu0 0
  %167 = vmatprep.subr.bf16.mxu0 0
  %168 = vmatpush2.bf16.msra.mxu0 0
  %169 = vmatprep.mubr.bf16.mxu0 0
  %170 = vmatmul.mubr.bf16.gmra.mxu0 %v135
  %v171 = vpop.f32.mrf.mxu0
  %v172 = vadd.f32 0.0, %v171
  %v173 = vpop.f32.mrf.mxu0
  %v174 = vpop.f32.mrf.mxu0
  %v175 = vadd.f32 0.0, %v174
  %v176 = vpop.f32.mrf.mxu0
  %177 = vdwg.mxu0
  %v182 = vunpack.c.l.b16 %v102
  %v183 = vunpack.c.l.b16 %v103
  %v184 = vunpack.c.l.b16 %v104
  %v185 = vunpack.c.l.b16 %v105
  %v186 = vpack.c.b16 %v183, %v182
  %v187 = vpack.c.b16 %v185, %v184
  %190 = vmatprep.subr.bf16.mxu0 0
  %191 = vmatpush1.bf16.msra.mxu0 0
  %192 = vmatprep.subr.bf16.mxu0 0
  %193 = vmatpush1.bf16.msra.mxu0 0
  %194 = vmatprep.subr.bf16.mxu0 0
  %195 = vmatpush1.bf16.msra.mxu0 0
  %196 = vmatprep.subr.bf16.mxu0 0
  %197 = vmatpush1.bf16.msra.mxu0 0
  %198 = vmatprep.subr.bf16.mxu0 0
  %199 = vmatpush1.bf16.msra.mxu0 0
  %200 = vmatprep.subr.bf16.mxu0 0
  %201 = vmatpush1.bf16.msra.mxu0 0
  %202 = vmatprep.subr.bf16.mxu0 0
  %203 = vmatpush1.bf16.msra.mxu0 %v187
  %204 = vmatprep.subr.bf16.mxu0 0
  %205 = vmatpush1.bf16.msra.mxu0 %v186
  %206 = vmatprep.subr.bf16.mxu0 0
  %207 = vmatpush2.bf16.msra.mxu0 0
  %208 = vmatprep.subr.bf16.mxu0 0
  %209 = vmatpush2.bf16.msra.mxu0 0
  %210 = vmatprep.subr.bf16.mxu0 0
  %211 = vmatpush2.bf16.msra.mxu0 0
  %212 = vmatprep.subr.bf16.mxu0 0
  %213 = vmatpush2.bf16.msra.mxu0 0
  %214 = vmatprep.subr.bf16.mxu0 0
  %215 = vmatpush2.bf16.msra.mxu0 0
  %216 = vmatprep.subr.bf16.mxu0 0
  %217 = vmatpush2.bf16.msra.mxu0 0
  %218 = vmatprep.subr.bf16.mxu0 0
  %219 = vmatpush2.bf16.msra.mxu0 0
  %220 = vmatprep.subr.bf16.mxu0 0
  %221 = vmatpush2.bf16.msra.mxu0 0
  %222 = vmatprep.mubr.bf16.mxu0 0
  %223 = vmatmul.mubr.bf16.gmra.mxu0 %v135
  %v224 = vpop.f32.mrf.mxu0
  %v225 = vadd.f32 0.0, %v224
  %v226 = vpop.f32.mrf.mxu0
  %v227 = vpop.f32.mrf.mxu0
  %v228 = vadd.f32 0.0, %v227
  %v229 = vpop.f32.mrf.mxu0
  %230 = vdwg.mxu0
  %v235 = vunpack.c.l.b16 %v106
  %v236 = vunpack.c.l.b16 %v107
  %v237 = vunpack.c.l.b16 %v108
  %v238 = vunpack.c.l.b16 %v109
  %v239 = vpack.c.b16 %v236, %v235
  %v240 = vpack.c.b16 %v238, %v237
  %243 = vmatprep.subr.bf16.mxu0 0
  %244 = vmatpush1.bf16.msra.mxu0 0
  %245 = vmatprep.subr.bf16.mxu0 0
  %246 = vmatpush1.bf16.msra.mxu0 0
  %247 = vmatprep.subr.bf16.mxu0 0
  %248 = vmatpush1.bf16.msra.mxu0 0
  %249 = vmatprep.subr.bf16.mxu0 0
  %250 = vmatpush1.bf16.msra.mxu0 0
  %251 = vmatprep.subr.bf16.mxu0 0
  %252 = vmatpush1.bf16.msra.mxu0 0
  %253 = vmatprep.subr.bf16.mxu0 0
  %254 = vmatpush1.bf16.msra.mxu0 0
  %255 = vmatprep.subr.bf16.mxu0 0
  %256 = vmatpush1.bf16.msra.mxu0 %v240
  %257 = vmatprep.subr.bf16.mxu0 0
  %258 = vmatpush1.bf16.msra.mxu0 %v239
  %259 = vmatprep.subr.bf16.mxu0 0
  %260 = vmatpush2.bf16.msra.mxu0 0
  %261 = vmatprep.subr.bf16.mxu0 0
  %262 = vmatpush2.bf16.msra.mxu0 0
  %263 = vmatprep.subr.bf16.mxu0 0
  %264 = vmatpush2.bf16.msra.mxu0 0
  %265 = vmatprep.subr.bf16.mxu0 0
  %266 = vmatpush2.bf16.msra.mxu0 0
  %267 = vmatprep.subr.bf16.mxu0 0
  %268 = vmatpush2.bf16.msra.mxu0 0
  %269 = vmatprep.subr.bf16.mxu0 0
  %270 = vmatpush2.bf16.msra.mxu0 0
  %271 = vmatprep.subr.bf16.mxu0 0
  %272 = vmatpush2.bf16.msra.mxu0 0
  %273 = vmatprep.subr.bf16.mxu0 0
  %274 = vmatpush2.bf16.msra.mxu0 0
  %275 = vmatprep.mubr.bf16.mxu0 0
  %276 = vmatmul.mubr.bf16.gmra.mxu0 %v135
  %v277 = vpop.f32.mrf.mxu0
  %v278 = vadd.f32 0.0, %v277
  %v279 = vpop.f32.mrf.mxu0
  %v280 = vpop.f32.mrf.mxu0
  %v281 = vadd.f32 0.0, %v280
  %v282 = vpop.f32.mrf.mxu0
  %283 = vdwg.mxu0
  %v288 = vunpack.c.l.b16 %v110
  %v289 = vunpack.c.l.b16 %v111
  %v290 = vunpack.c.l.b16 %v112
  %v291 = vunpack.c.l.b16 %v113
  %v292 = vpack.c.b16 %v289, %v288
  %v293 = vpack.c.b16 %v291, %v290
  %296 = vmatprep.subr.bf16.mxu0 0
  %297 = vmatpush1.bf16.msra.mxu0 0
  %298 = vmatprep.subr.bf16.mxu0 0
  %299 = vmatpush1.bf16.msra.mxu0 0
  %300 = vmatprep.subr.bf16.mxu0 0
  %301 = vmatpush1.bf16.msra.mxu0 0
  %302 = vmatprep.subr.bf16.mxu0 0
  %303 = vmatpush1.bf16.msra.mxu0 0
  %304 = vmatprep.subr.bf16.mxu0 0
  %305 = vmatpush1.bf16.msra.mxu0 0
  %306 = vmatprep.subr.bf16.mxu0 0
  %307 = vmatpush1.bf16.msra.mxu0 0
  %308 = vmatprep.subr.bf16.mxu0 0
  %309 = vmatpush1.bf16.msra.mxu0 %v293
  %310 = vmatprep.subr.bf16.mxu0 0
  %311 = vmatpush1.bf16.msra.mxu0 %v292
  %312 = vmatprep.subr.bf16.mxu0 0
  %313 = vmatpush2.bf16.msra.mxu0 0
  %314 = vmatprep.subr.bf16.mxu0 0
  %315 = vmatpush2.bf16.msra.mxu0 0
  %316 = vmatprep.subr.bf16.mxu0 0
  %317 = vmatpush2.bf16.msra.mxu0 0
  %318 = vmatprep.subr.bf16.mxu0 0
  %319 = vmatpush2.bf16.msra.mxu0 0
  %320 = vmatprep.subr.bf16.mxu0 0
  %321 = vmatpush2.bf16.msra.mxu0 0
  %322 = vmatprep.subr.bf16.mxu0 0
  %323 = vmatpush2.bf16.msra.mxu0 0
  %324 = vmatprep.subr.bf16.mxu0 0
  %325 = vmatpush2.bf16.msra.mxu0 0
  %326 = vmatprep.subr.bf16.mxu0 0
  %327 = vmatpush2.bf16.msra.mxu0 0
  %328 = vmatprep.mubr.bf16.mxu0 0
  %329 = vmatmul.mubr.bf16.gmra.mxu0 %v135
  %v330 = vpop.f32.mrf.mxu0
  %v331 = vadd.f32 0.0, %v330
  %v332 = vpop.f32.mrf.mxu0
  %v333 = vpop.f32.mrf.mxu0
  %v334 = vadd.f32 0.0, %v333
  %v335 = vpop.f32.mrf.mxu0
  %336 = vdwg.mxu0
  %v341 = vunpack.c.l.b16 %v114
  %v342 = vunpack.c.l.b16 %v115
  %v343 = vunpack.c.l.b16 %v116
  %v344 = vunpack.c.l.b16 %v117
  %v345 = vpack.c.b16 %v342, %v341
  %v346 = vpack.c.b16 %v344, %v343
  %349 = vmatprep.subr.bf16.mxu0 0
  %350 = vmatpush1.bf16.msra.mxu0 0
  %351 = vmatprep.subr.bf16.mxu0 0
  %352 = vmatpush1.bf16.msra.mxu0 0
  %353 = vmatprep.subr.bf16.mxu0 0
  %354 = vmatpush1.bf16.msra.mxu0 0
  %355 = vmatprep.subr.bf16.mxu0 0
  %356 = vmatpush1.bf16.msra.mxu0 0
  %357 = vmatprep.subr.bf16.mxu0 0
  %358 = vmatpush1.bf16.msra.mxu0 0
  %359 = vmatprep.subr.bf16.mxu0 0
  %360 = vmatpush1.bf16.msra.mxu0 0
  %361 = vmatprep.subr.bf16.mxu0 0
  %362 = vmatpush1.bf16.msra.mxu0 %v346
  %363 = vmatprep.subr.bf16.mxu0 0
  %364 = vmatpush1.bf16.msra.mxu0 %v345
  %365 = vmatprep.subr.bf16.mxu0 0
  %366 = vmatpush2.bf16.msra.mxu0 0
  %367 = vmatprep.subr.bf16.mxu0 0
  %368 = vmatpush2.bf16.msra.mxu0 0
  %369 = vmatprep.subr.bf16.mxu0 0
  %370 = vmatpush2.bf16.msra.mxu0 0
  %371 = vmatprep.subr.bf16.mxu0 0
  %372 = vmatpush2.bf16.msra.mxu0 0
  %373 = vmatprep.subr.bf16.mxu0 0
  %374 = vmatpush2.bf16.msra.mxu0 0
  %375 = vmatprep.subr.bf16.mxu0 0
  %376 = vmatpush2.bf16.msra.mxu0 0
  %377 = vmatprep.subr.bf16.mxu0 0
  %378 = vmatpush2.bf16.msra.mxu0 0
  %379 = vmatprep.subr.bf16.mxu0 0
  %380 = vmatpush2.bf16.msra.mxu0 0
  %381 = vmatprep.mubr.bf16.mxu0 0
  %382 = vmatmul.mubr.bf16.gmra.mxu0 %v135
  %v383 = vpop.f32.mrf.mxu0
  %v384 = vadd.f32 0.0, %v383
  %v385 = vpop.f32.mrf.mxu0
  %v386 = vpop.f32.mrf.mxu0
  %v387 = vadd.f32 0.0, %v386
  %v388 = vpop.f32.mrf.mxu0
  %389 = vdwg.mxu0
  %v394 = vunpack.c.l.b16 %v118
  %v395 = vunpack.c.l.b16 %v119
  %v396 = vunpack.c.l.b16 %v120
  %v397 = vunpack.c.l.b16 %v121
  %v398 = vpack.c.b16 %v395, %v394
  %v399 = vpack.c.b16 %v397, %v396
  %402 = vmatprep.subr.bf16.mxu0 0
  %403 = vmatpush1.bf16.msra.mxu0 0
  %404 = vmatprep.subr.bf16.mxu0 0
  %405 = vmatpush1.bf16.msra.mxu0 0
  %406 = vmatprep.subr.bf16.mxu0 0
  %407 = vmatpush1.bf16.msra.mxu0 0
  %408 = vmatprep.subr.bf16.mxu0 0
  %409 = vmatpush1.bf16.msra.mxu0 0
  %410 = vmatprep.subr.bf16.mxu0 0
  %411 = vmatpush1.bf16.msra.mxu0 0
  %412 = vmatprep.subr.bf16.mxu0 0
  %413 = vmatpush1.bf16.msra.mxu0 0
  %414 = vmatprep.subr.bf16.mxu0 0
  %415 = vmatpush1.bf16.msra.mxu0 %v399
  %416 = vmatprep.subr.bf16.mxu0 0
  %417 = vmatpush1.bf16.msra.mxu0 %v398
  %418 = vmatprep.subr.bf16.mxu0 0
  %419 = vmatpush2.bf16.msra.mxu0 0
  %420 = vmatprep.subr.bf16.mxu0 0
  %421 = vmatpush2.bf16.msra.mxu0 0
  %422 = vmatprep.subr.bf16.mxu0 0
  %423 = vmatpush2.bf16.msra.mxu0 0
  %424 = vmatprep.subr.bf16.mxu0 0
  %425 = vmatpush2.bf16.msra.mxu0 0
  %426 = vmatprep.subr.bf16.mxu0 0
  %427 = vmatpush2.bf16.msra.mxu0 0
  %428 = vmatprep.subr.bf16.mxu0 0
  %429 = vmatpush2.bf16.msra.mxu0 0
  %430 = vmatprep.subr.bf16.mxu0 0
  %431 = vmatpush2.bf16.msra.mxu0 0
  %432 = vmatprep.subr.bf16.mxu0 0
  %433 = vmatpush2.bf16.msra.mxu0 0
  %434 = vmatprep.mubr.bf16.mxu0 0
  %435 = vmatmul.mubr.bf16.gmra.mxu0 %v135
  %v436 = vpop.f32.mrf.mxu0
  %v437 = vadd.f32 0.0, %v436
  %v438 = vpop.f32.mrf.mxu0
  %v439 = vpop.f32.mrf.mxu0
  %v440 = vadd.f32 0.0, %v439
  %v441 = vpop.f32.mrf.mxu0
  %442 = vdwg.mxu0
  %v443 = vpack.c.bf16 %v172, %v172
  %v444 = vpack.c.bf16 %v175, %v175
  %v445 = vpack.c.bf16 %v225, %v225
  %v446 = vpack.c.bf16 %v228, %v228
  %v447 = vpack.c.bf16 %v278, %v278
  %v448 = vpack.c.bf16 %v281, %v281
  %v449 = vpack.c.bf16 %v331, %v331
  %v450 = vpack.c.bf16 %v334, %v334
  %v451 = vpack.c.bf16 %v384, %v384
  %v452 = vpack.c.bf16 %v387, %v387
  %v453 = vpack.c.bf16 %v437, %v437
  %v454 = vpack.c.bf16 %v440, %v440
  %vm455 = vcmask 130048
  %v457 = vsel %vm455, %v443, 0
  %v460 = vsel %vm455, %v447, 0
  %462 = vmatprep.subr.bf16.mxu0 0
  %463 = vmatpush1.bf16.xpose.msra.mxu0 0
  %464 = vmatprep.subr.bf16.mxu0 0
  %465 = vmatpush1.bf16.xpose.msra.mxu0 0
  %466 = vmatprep.subr.bf16.mxu0 0
  %467 = vmatpush1.bf16.xpose.msra.mxu0 0
  %468 = vmatprep.subr.bf16.mxu0 0
  %469 = vmatpush1.bf16.xpose.msra.mxu0 0
  %470 = vmatprep.subr.bf16.mxu0 0
  %471 = vmatpush1.bf16.xpose.msra.mxu0 0
  %472 = vmatprep.subr.bf16.mxu0 0
  %473 = vmatpush1.bf16.xpose.msra.mxu0 0
  %474 = vmatprep.subr.bf16.mxu0 0
  %475 = vmatpush1.bf16.xpose.msra.mxu0 0
  %476 = vmatprep.subr.bf16.mxu0 0
  %477 = vmatpush1.bf16.xpose.msra.mxu0 %v460
  %478 = vmatprep.subr.bf16.mxu0 0
  %479 = vmatpush2.bf16.xpose.msra.mxu0 0
  %480 = vmatprep.subr.bf16.mxu0 0
  %481 = vmatpush2.bf16.xpose.msra.mxu0 0
  %482 = vmatprep.subr.bf16.mxu0 0
  %483 = vmatpush2.bf16.xpose.msra.mxu0 0
  %484 = vmatprep.subr.bf16.mxu0 0
  %485 = vmatpush2.bf16.xpose.msra.mxu0 0
  %486 = vmatprep.subr.bf16.mxu0 0
  %487 = vmatpush2.bf16.xpose.msra.mxu0 0
  %488 = vmatprep.subr.bf16.mxu0 0
  %489 = vmatpush2.bf16.xpose.msra.mxu0 0
  %490 = vmatprep.subr.bf16.mxu0 0
  %491 = vmatpush2.bf16.xpose.msra.mxu0 0
  %492 = vmatprep.subr.bf16.mxu0 0
  %493 = vmatpush2.bf16.xpose.msra.mxu0 0
  %494 = vmatprep.mubr.bf16.mxu0 0
  %495 = vmatmul.mubr.bf16.gmra.mxu0 %v457
  %v496 = vpop.f32.mrf.mxu0
  %v497 = vadd.f32 0.0, %v496
  %v498 = vpop.f32.mrf.mxu0
  %v499 = vpop.f32.mrf.mxu0
  %v500 = vpop.f32.mrf.mxu0
  %501 = vdwg.mxu0
  %v503 = vsel %vm455, %v444, 0
  %v506 = vsel %vm455, %v448, 0
  %508 = vmatprep.subr.bf16.mxu0 0
  %509 = vmatpush1.bf16.xpose.msra.mxu0 0
  %510 = vmatprep.subr.bf16.mxu0 0
  %511 = vmatpush1.bf16.xpose.msra.mxu0 0
  %512 = vmatprep.subr.bf16.mxu0 0
  %513 = vmatpush1.bf16.xpose.msra.mxu0 0
  %514 = vmatprep.subr.bf16.mxu0 0
  %515 = vmatpush1.bf16.xpose.msra.mxu0 0
  %516 = vmatprep.subr.bf16.mxu0 0
  %517 = vmatpush1.bf16.xpose.msra.mxu0 0
  %518 = vmatprep.subr.bf16.mxu0 0
  %519 = vmatpush1.bf16.xpose.msra.mxu0 0
  %520 = vmatprep.subr.bf16.mxu0 0
  %521 = vmatpush1.bf16.xpose.msra.mxu0 0
  %522 = vmatprep.subr.bf16.mxu0 0
  %523 = vmatpush1.bf16.xpose.msra.mxu0 %v506
  %524 = vmatprep.subr.bf16.mxu0 0
  %525 = vmatpush2.bf16.xpose.msra.mxu0 0
  %526 = vmatprep.subr.bf16.mxu0 0
  %527 = vmatpush2.bf16.xpose.msra.mxu0 0
  %528 = vmatprep.subr.bf16.mxu0 0
  %529 = vmatpush2.bf16.xpose.msra.mxu0 0
  %530 = vmatprep.subr.bf16.mxu0 0
  %531 = vmatpush2.bf16.xpose.msra.mxu0 0
  %532 = vmatprep.subr.bf16.mxu0 0
  %533 = vmatpush2.bf16.xpose.msra.mxu0 0
  %534 = vmatprep.subr.bf16.mxu0 0
  %535 = vmatpush2.bf16.xpose.msra.mxu0 0
  %536 = vmatprep.subr.bf16.mxu0 0
  %537 = vmatpush2.bf16.xpose.msra.mxu0 0
  %538 = vmatprep.subr.bf16.mxu0 0
  %539 = vmatpush2.bf16.xpose.msra.mxu0 0
  %540 = vmatprep.mubr.bf16.mxu0 0
  %541 = vmatmul.mubr.bf16.gmra.mxu0 %v503
  %v542 = vpop.f32.mrf.mxu0
  %v543 = vadd.f32 0.0, %v542
  %v544 = vpop.f32.mrf.mxu0
  %v545 = vpop.f32.mrf.mxu0
  %v546 = vpop.f32.mrf.mxu0
  %547 = vdwg.mxu0
  %v549 = vsel %vm455, %v445, 0
  %v552 = vsel %vm455, %v449, 0
  %554 = vmatprep.subr.bf16.mxu0 0
  %555 = vmatpush1.bf16.xpose.msra.mxu0 0
  %556 = vmatprep.subr.bf16.mxu0 0
  %557 = vmatpush1.bf16.xpose.msra.mxu0 0
  %558 = vmatprep.subr.bf16.mxu0 0
  %559 = vmatpush1.bf16.xpose.msra.mxu0 0
  %560 = vmatprep.subr.bf16.mxu0 0
  %561 = vmatpush1.bf16.xpose.msra.mxu0 0
  %562 = vmatprep.subr.bf16.mxu0 0
  %563 = vmatpush1.bf16.xpose.msra.mxu0 0
  %564 = vmatprep.subr.bf16.mxu0 0
  %565 = vmatpush1.bf16.xpose.msra.mxu0 0
  %566 = vmatprep.subr.bf16.mxu0 0
  %567 = vmatpush1.bf16.xpose.msra.mxu0 0
  %568 = vmatprep.subr.bf16.mxu0 0
  %569 = vmatpush1.bf16.xpose.msra.mxu0 %v552
  %570 = vmatprep.subr.bf16.mxu0 0
  %571 = vmatpush2.bf16.xpose.msra.mxu0 0
  %572 = vmatprep.subr.bf16.mxu0 0
  %573 = vmatpush2.bf16.xpose.msra.mxu0 0
  %574 = vmatprep.subr.bf16.mxu0 0
  %575 = vmatpush2.bf16.xpose.msra.mxu0 0
  %576 = vmatprep.subr.bf16.mxu0 0
  %577 = vmatpush2.bf16.xpose.msra.mxu0 0
  %578 = vmatprep.subr.bf16.mxu0 0
  %579 = vmatpush2.bf16.xpose.msra.mxu0 0
  %580 = vmatprep.subr.bf16.mxu0 0
  %581 = vmatpush2.bf16.xpose.msra.mxu0 0
  %582 = vmatprep.subr.bf16.mxu0 0
  %583 = vmatpush2.bf16.xpose.msra.mxu0 0
  %584 = vmatprep.subr.bf16.mxu0 0
  %585 = vmatpush2.bf16.xpose.msra.mxu0 0
  %586 = vmatprep.mubr.bf16.mxu0 0
  %587 = vmatmul.mubr.bf16.gmra.mxu0 %v549
  %v588 = vpop.f32.mrf.mxu0
  %v589 = vadd.f32 0.0, %v588
  %v590 = vpop.f32.mrf.mxu0
  %v591 = vpop.f32.mrf.mxu0
  %v592 = vpop.f32.mrf.mxu0
  %593 = vdwg.mxu0
  %v595 = vsel %vm455, %v446, 0
  %v598 = vsel %vm455, %v450, 0
  %600 = vmatprep.subr.bf16.mxu0 0
  %601 = vmatpush1.bf16.xpose.msra.mxu0 0
  %602 = vmatprep.subr.bf16.mxu0 0
  %603 = vmatpush1.bf16.xpose.msra.mxu0 0
  %604 = vmatprep.subr.bf16.mxu0 0
  %605 = vmatpush1.bf16.xpose.msra.mxu0 0
  %606 = vmatprep.subr.bf16.mxu0 0
  %607 = vmatpush1.bf16.xpose.msra.mxu0 0
  %608 = vmatprep.subr.bf16.mxu0 0
  %609 = vmatpush1.bf16.xpose.msra.mxu0 0
  %610 = vmatprep.subr.bf16.mxu0 0
  %611 = vmatpush1.bf16.xpose.msra.mxu0 0
  %612 = vmatprep.subr.bf16.mxu0 0
  %613 = vmatpush1.bf16.xpose.msra.mxu0 0
  %614 = vmatprep.subr.bf16.mxu0 0
  %615 = vmatpush1.bf16.xpose.msra.mxu0 %v598
  %616 = vmatprep.subr.bf16.mxu0 0
  %617 = vmatpush2.bf16.xpose.msra.mxu0 0
  %618 = vmatprep.subr.bf16.mxu0 0
  %619 = vmatpush2.bf16.xpose.msra.mxu0 0
  %620 = vmatprep.subr.bf16.mxu0 0
  %621 = vmatpush2.bf16.xpose.msra.mxu0 0
  %622 = vmatprep.subr.bf16.mxu0 0
  %623 = vmatpush2.bf16.xpose.msra.mxu0 0
  %624 = vmatprep.subr.bf16.mxu0 0
  %625 = vmatpush2.bf16.xpose.msra.mxu0 0
  %626 = vmatprep.subr.bf16.mxu0 0
  %627 = vmatpush2.bf16.xpose.msra.mxu0 0
  %628 = vmatprep.subr.bf16.mxu0 0
  %629 = vmatpush2.bf16.xpose.msra.mxu0 0
  %630 = vmatprep.subr.bf16.mxu0 0
  %631 = vmatpush2.bf16.xpose.msra.mxu0 0
  %632 = vmatprep.mubr.bf16.mxu0 0
  %633 = vmatmul.mubr.bf16.gmra.mxu0 %v595
  %v634 = vpop.f32.mrf.mxu0
  %v635 = vadd.f32 0.0, %v634
  %v636 = vpop.f32.mrf.mxu0
  %v637 = vpop.f32.mrf.mxu0
  %v638 = vpop.f32.mrf.mxu0
  %639 = vdwg.mxu0
  %vm640 = vcmask 64512
  %v641 = vsel %vm640, %v497, -inf
  %642 = vmax.xlane.f32.xlu0 %v641
  %v643 = vpop.xlane.xlu0 %642
  %v644 = vsel %vm640, %v543, -inf
  %645 = vmax.xlane.f32.xlu0 %v644
  %v646 = vpop.xlane.xlu0 %645
  %v647 = vsel %vm640, %v589, -inf
  %648 = vmax.xlane.f32.xlu0 %v647
  %v649 = vpop.xlane.xlu0 %648
  %v650 = vsel %vm640, %v635, -inf
  %651 = vmax.xlane.f32.xlu0 %v650
  %v652 = vpop.xlane.xlu0 %651
  %v653 = vsub.f32 %v497, %v643
  %v654 = vsub.f32 %v543, %v646
  %v655 = vsub.f32 %v589, %v649
  %v656 = vsub.f32 %v635, %v652
  %v657 = vmul.f32 %v653, 1.442695
  %v658 = vpow.pop %v657
  %v659 = vmul.f32 %v654, 1.442695
  %v660 = vpow.pop %v659
  %v661 = vmul.f32 %v655, 1.442695
  %v662 = vpow.pop %v661
  %v663 = vmul.f32 %v656, 1.442695
  %v664 = vpow.pop %v663
  %v665 = vsel %vm640, %v658, 0.0
  %666 = vadd.xlane.f32.xlu0 %v665
  %v667 = vpop.xlane.xlu0 %666
  %v668 = vsel %vm640, %v660, 0.0
  %669 = vadd.xlane.f32.xlu0 %v668
  %v670 = vpop.xlane.xlu0 %669
  %v671 = vsel %vm640, %v662, 0.0
  %672 = vadd.xlane.f32.xlu0 %v671
  %v673 = vpop.xlane.xlu0 %672
  %v674 = vsel %vm640, %v664, 0.0
  %675 = vadd.xlane.f32.xlu0 %v674
  %v676 = vpop.xlane.xlu0 %675
  %v677 = vrcp.pop %v667
  %v678 = vrcp.pop %v670
  %v679 = vrcp.pop %v673
  %v680 = vrcp.pop %v676
  %v681 = vmul.f32 %v658, %v677
  %v682 = vmul.f32 %v660, %v678
  %v683 = vmul.f32 %v662, %v679
  %v684 = vmul.f32 %v664, %v680
  %v685 = vpack.c.bf16 %v681, %v681
  %v686 = vpack.c.bf16 %v682, %v682
  %v687 = vpack.c.bf16 %v683, %v683
  %v688 = vpack.c.bf16 %v684, %v684
  %v690 = vsel %vm640, %v685, 0
  %vm692 = vcmask 1043456
  %v694 = vsel %vm692, %v451, 0
  %696 = vmatprep.subr.bf16.mxu0 0
  %697 = vmatpush1.bf16.msra.mxu0 0
  %698 = vmatprep.subr.bf16.mxu0 0
  %699 = vmatpush1.bf16.msra.mxu0 0
  %700 = vmatprep.subr.bf16.mxu0 0
  %701 = vmatpush1.bf16.msra.mxu0 0
  %702 = vmatprep.subr.bf16.mxu0 0
  %703 = vmatpush1.bf16.msra.mxu0 0
  %704 = vmatprep.subr.bf16.mxu0 0
  %705 = vmatpush1.bf16.msra.mxu0 0
  %706 = vmatprep.subr.bf16.mxu0 0
  %707 = vmatpush1.bf16.msra.mxu0 0
  %708 = vmatprep.subr.bf16.mxu0 0
  %709 = vmatpush1.bf16.msra.mxu0 0
  %710 = vmatprep.subr.bf16.mxu0 0
  %711 = vmatpush1.bf16.msra.mxu0 %v694
  %712 = vmatprep.subr.bf16.mxu0 0
  %713 = vmatpush2.bf16.msra.mxu0 0
  %714 = vmatprep.subr.bf16.mxu0 0
  %715 = vmatpush2.bf16.msra.mxu0 0
  %716 = vmatprep.subr.bf16.mxu0 0
  %717 = vmatpush2.bf16.msra.mxu0 0
  %718 = vmatprep.subr.bf16.mxu0 0
  %719 = vmatpush2.bf16.msra.mxu0 0
  %720 = vmatprep.subr.bf16.mxu0 0
  %721 = vmatpush2.bf16.msra.mxu0 0
  %722 = vmatprep.subr.bf16.mxu0 0
  %723 = vmatpush2.bf16.msra.mxu0 0
  %724 = vmatprep.subr.bf16.mxu0 0
  %725 = vmatpush2.bf16.msra.mxu0 0
  %726 = vmatprep.subr.bf16.mxu0 0
  %727 = vmatpush2.bf16.msra.mxu0 0
  %728 = vmatprep.mubr.bf16.mxu0 0
  %729 = vmatmul.mubr.bf16.gmra.mxu0 %v690
  %v730 = vpop.f32.mrf.mxu0
  %v731 = vadd.f32 0.0, %v730
  %v732 = vpop.f32.mrf.mxu0
  %v733 = vpop.f32.mrf.mxu0
  %v734 = vpop.f32.mrf.mxu0
  %735 = vdwg.mxu0
  %v737 = vsel %vm640, %v686, 0
  %v740 = vsel %vm692, %v452, 0
  %742 = vmatprep.subr.bf16.mxu0 0
  %743 = vmatpush1.bf16.msra.mxu0 0
  %744 = vmatprep.subr.bf16.mxu0 0
  %745 = vmatpush1.bf16.msra.mxu0 0
  %746 = vmatprep.subr.bf16.mxu0 0
  %747 = vmatpush1.bf16.msra.mxu0 0
  %748 = vmatprep.subr.bf16.mxu0 0
  %749 = vmatpush1.bf16.msra.mxu0 0
  %750 = vmatprep.subr.bf16.mxu0 0
  %751 = vmatpush1.bf16.msra.mxu0 0
  %752 = vmatprep.subr.bf16.mxu0 0
  %753 = vmatpush1.bf16.msra.mxu0 0
  %754 = vmatprep.subr.bf16.mxu0 0
  %755 = vmatpush1.bf16.msra.mxu0 0
  %756 = vmatprep.subr.bf16.mxu0 0
  %757 = vmatpush1.bf16.msra.mxu0 %v740
  %758 = vmatprep.subr.bf16.mxu0 0
  %759 = vmatpush2.bf16.msra.mxu0 0
  %760 = vmatprep.subr.bf16.mxu0 0
  %761 = vmatpush2.bf16.msra.mxu0 0
  %762 = vmatprep.subr.bf16.mxu0 0
  %763 = vmatpush2.bf16.msra.mxu0 0
  %764 = vmatprep.subr.bf16.mxu0 0
  %765 = vmatpush2.bf16.msra.mxu0 0
  %766 = vmatprep.subr.bf16.mxu0 0
  %767 = vmatpush2.bf16.msra.mxu0 0
  %768 = vmatprep.subr.bf16.mxu0 0
  %769 = vmatpush2.bf16.msra.mxu0 0
  %770 = vmatprep.subr.bf16.mxu0 0
  %771 = vmatpush2.bf16.msra.mxu0 0
  %772 = vmatprep.subr.bf16.mxu0 0
  %773 = vmatpush2.bf16.msra.mxu0 0
  %774 = vmatprep.mubr.bf16.mxu0 0
  %775 = vmatmul.mubr.bf16.gmra.mxu0 %v737
  %v776 = vpop.f32.mrf.mxu0
  %v777 = vadd.f32 0.0, %v776
  %v778 = vpop.f32.mrf.mxu0
  %v779 = vpop.f32.mrf.mxu0
  %v780 = vpop.f32.mrf.mxu0
  %781 = vdwg.mxu0
  %v783 = vsel %vm640, %v687, 0
  %v786 = vsel %vm692, %v453, 0
  %788 = vmatprep.subr.bf16.mxu0 0
  %789 = vmatpush1.bf16.msra.mxu0 0
  %790 = vmatprep.subr.bf16.mxu0 0
  %791 = vmatpush1.bf16.msra.mxu0 0
  %792 = vmatprep.subr.bf16.mxu0 0
  %793 = vmatpush1.bf16.msra.mxu0 0
  %794 = vmatprep.subr.bf16.mxu0 0
  %795 = vmatpush1.bf16.msra.mxu0 0
  %796 = vmatprep.subr.bf16.mxu0 0
  %797 = vmatpush1.bf16.msra.mxu0 0
  %798 = vmatprep.subr.bf16.mxu0 0
  %799 = vmatpush1.bf16.msra.mxu0 0
  %800 = vmatprep.subr.bf16.mxu0 0
  %801 = vmatpush1.bf16.msra.mxu0 0
  %802 = vmatprep.subr.bf16.mxu0 0
  %803 = vmatpush1.bf16.msra.mxu0 %v786
  %804 = vmatprep.subr.bf16.mxu0 0
  %805 = vmatpush2.bf16.msra.mxu0 0
  %806 = vmatprep.subr.bf16.mxu0 0
  %807 = vmatpush2.bf16.msra.mxu0 0
  %808 = vmatprep.subr.bf16.mxu0 0
  %809 = vmatpush2.bf16.msra.mxu0 0
  %810 = vmatprep.subr.bf16.mxu0 0
  %811 = vmatpush2.bf16.msra.mxu0 0
  %812 = vmatprep.subr.bf16.mxu0 0
  %813 = vmatpush2.bf16.msra.mxu0 0
  %814 = vmatprep.subr.bf16.mxu0 0
  %815 = vmatpush2.bf16.msra.mxu0 0
  %816 = vmatprep.subr.bf16.mxu0 0
  %817 = vmatpush2.bf16.msra.mxu0 0
  %818 = vmatprep.subr.bf16.mxu0 0
  %819 = vmatpush2.bf16.msra.mxu0 0
  %820 = vmatprep.mubr.bf16.mxu0 0
  %821 = vmatmul.mubr.bf16.gmra.mxu0 %v783
  %v822 = vpop.f32.mrf.mxu0
  %v823 = vadd.f32 0.0, %v822
  %v824 = vpop.f32.mrf.mxu0
  %v825 = vpop.f32.mrf.mxu0
  %v826 = vpop.f32.mrf.mxu0
  %827 = vdwg.mxu0
  %v829 = vsel %vm640, %v688, 0
  %v832 = vsel %vm692, %v454, 0
  %834 = vmatprep.subr.bf16.mxu0 0
  %835 = vmatpush1.bf16.msra.mxu0 0
  %836 = vmatprep.subr.bf16.mxu0 0
  %837 = vmatpush1.bf16.msra.mxu0 0
  %838 = vmatprep.subr.bf16.mxu0 0
  %839 = vmatpush1.bf16.msra.mxu0 0
  %840 = vmatprep.subr.bf16.mxu0 0
  %841 = vmatpush1.bf16.msra.mxu0 0
  %842 = vmatprep.subr.bf16.mxu0 0
  %843 = vmatpush1.bf16.msra.mxu0 0
  %844 = vmatprep.subr.bf16.mxu0 0
  %845 = vmatpush1.bf16.msra.mxu0 0
  %846 = vmatprep.subr.bf16.mxu0 0
  %847 = vmatpush1.bf16.msra.mxu0 0
  %848 = vmatprep.subr.bf16.mxu0 0
  %849 = vmatpush1.bf16.msra.mxu0 %v832
  %850 = vmatprep.subr.bf16.mxu0 0
  %851 = vmatpush2.bf16.msra.mxu0 0
  %852 = vmatprep.subr.bf16.mxu0 0
  %853 = vmatpush2.bf16.msra.mxu0 0
  %854 = vmatprep.subr.bf16.mxu0 0
  %855 = vmatpush2.bf16.msra.mxu0 0
  %856 = vmatprep.subr.bf16.mxu0 0
  %857 = vmatpush2.bf16.msra.mxu0 0
  %858 = vmatprep.subr.bf16.mxu0 0
  %859 = vmatpush2.bf16.msra.mxu0 0
  %860 = vmatprep.subr.bf16.mxu0 0
  %861 = vmatpush2.bf16.msra.mxu0 0
  %862 = vmatprep.subr.bf16.mxu0 0
  %863 = vmatpush2.bf16.msra.mxu0 0
  %864 = vmatprep.subr.bf16.mxu0 0
  %865 = vmatpush2.bf16.msra.mxu0 0
  %866 = vmatprep.mubr.bf16.mxu0 0
  %867 = vmatmul.mubr.bf16.gmra.mxu0 %v829
  %v868 = vpop.f32.mrf.mxu0
  %v869 = vadd.f32 0.0, %v868
  %v870 = vpop.f32.mrf.mxu0
  %v871 = vpop.f32.mrf.mxu0
  %v872 = vpop.f32.mrf.mxu0
  %873 = vdwg.mxu0
  %v874 = vpack.c.bf16 %v777, %v731
  %v875 = vpack.c.bf16 %v869, %v823
  %v876 = vld [vmem:[%s4] sm:$0xf]
  %v877 = vld [vmem:[%s4 + $0x4] sm:$0xf]
  %s878 = scalar_lea.vmem %s4, 8
  %v879 = vld [vmem:[%s878] sm:$0xf]
  %v880 = vld [vmem:[%s878 + $0x4] sm:$0xf]
  %v883 = vunpack.c.l.b16 %v879
  %v884 = vunpack.c.l.b16 %v880
  %v885 = vpack.c.b16 %v884, %v883
  %v888 = vsel %vm455, %v875, 0
  %890 = vmatprep.subr.bf16.mxu0 0
  %891 = vmatpush1.bf16.msra.mxu0 0
  %892 = vmatprep.subr.bf16.mxu0 0
  %893 = vmatpush1.bf16.msra.mxu0 0
  %894 = vmatprep.subr.bf16.mxu0 0
  %895 = vmatpush1.bf16.msra.mxu0 0
  %896 = vmatprep.subr.bf16.mxu0 0
  %897 = vmatpush1.bf16.msra.mxu0 0
  %898 = vmatprep.subr.bf16.mxu0 0
  %899 = vmatpush1.bf16.msra.mxu0 0
  %900 = vmatprep.subr.bf16.mxu0 0
  %901 = vmatpush1.bf16.msra.mxu0 0
  %902 = vmatprep.subr.bf16.mxu0 0
  %903 = vmatpush1.bf16.msra.mxu0 0
  %904 = vmatprep.subr.bf16.mxu0 0
  %905 = vmatpush1.bf16.msra.mxu0 %v885
  %906 = vmatprep.subr.bf16.mxu0 0
  %907 = vmatpush2.bf16.msra.mxu0 0
  %908 = vmatprep.subr.bf16.mxu0 0
  %909 = vmatpush2.bf16.msra.mxu0 0
  %910 = vmatprep.subr.bf16.mxu0 0
  %911 = vmatpush2.bf16.msra.mxu0 0
  %912 = vmatprep.subr.bf16.mxu0 0
  %913 = vmatpush2.bf16.msra.mxu0 0
  %914 = vmatprep.subr.bf16.mxu0 0
  %915 = vmatpush2.bf16.msra.mxu0 0
  %916 = vmatprep.subr.bf16.mxu0 0
  %917 = vmatpush2.bf16.msra.mxu0 0
  %918 = vmatprep.subr.bf16.mxu0 0
  %919 = vmatpush2.bf16.msra.mxu0 0
  %920 = vmatprep.subr.bf16.mxu0 0
  %921 = vmatpush2.bf16.msra.mxu0 0
  %922 = vmatprep.mubr.bf16.mxu0 0
  %923 = vmatmul.mubr.bf16.gmra.mxu0 %v888
  %v924 = vpop.f32.mrf.mxu0
  %v925 = vadd.f32 0.0, %v924
  %v926 = vpop.f32.mrf.mxu0
  %v927 = vpop.f32.mrf.mxu0
  %v928 = vadd.f32 0.0, %v927
  %v929 = vpop.f32.mrf.mxu0
  %930 = vdwg.mxu0
  %v933 = vunpack.c.l.b16 %v876
  %v934 = vunpack.c.l.b16 %v877
  %v935 = vpack.c.b16 %v934, %v933
  %v938 = vsel %vm455, %v874, 0
  %940 = vmatprep.subr.bf16.mxu0 0
  %941 = vmatpush1.bf16.msra.mxu0 0
  %942 = vmatprep.subr.bf16.mxu0 0
  %943 = vmatpush1.bf16.msra.mxu0 0
  %944 = vmatprep.subr.bf16.mxu0 0
  %945 = vmatpush1.bf16.msra.mxu0 0
  %946 = vmatprep.subr.bf16.mxu0 0
  %947 = vmatpush1.bf16.msra.mxu0 0
  %948 = vmatprep.subr.bf16.mxu0 0
  %949 = vmatpush1.bf16.msra.mxu0 0
  %950 = vmatprep.subr.bf16.mxu0 0
  %951 = vmatpush1.bf16.msra.mxu0 0
  %952 = vmatprep.subr.bf16.mxu0 0
  %953 = vmatpush1.bf16.msra.mxu0 0
  %954 = vmatprep.subr.bf16.mxu0 0
  %955 = vmatpush1.bf16.msra.mxu0 %v935
  %956 = vmatprep.subr.bf16.mxu0 0
  %957 = vmatpush2.bf16.msra.mxu0 0
  %958 = vmatprep.subr.bf16.mxu0 0
  %959 = vmatpush2.bf16.msra.mxu0 0
  %960 = vmatprep.subr.bf16.mxu0 0
  %961 = vmatpush2.bf16.msra.mxu0 0
  %962 = vmatprep.subr.bf16.mxu0 0
  %963 = vmatpush2.bf16.msra.mxu0 0
  %964 = vmatprep.subr.bf16.mxu0 0
  %965 = vmatpush2.bf16.msra.mxu0 0
  %966 = vmatprep.subr.bf16.mxu0 0
  %967 = vmatpush2.bf16.msra.mxu0 0
  %968 = vmatprep.subr.bf16.mxu0 0
  %969 = vmatpush2.bf16.msra.mxu0 0
  %970 = vmatprep.subr.bf16.mxu0 0
  %971 = vmatpush2.bf16.msra.mxu0 0
  %972 = vmatprep.mubr.bf16.mxu0 0
  %973 = vmatmul.mubr.bf16.gmra.mxu0 %v938
  %v974 = vpop.f32.mrf.mxu0
  %v975 = vadd.f32 %v925, %v974
  %v976 = vpop.f32.mrf.mxu0
  %v977 = vpop.f32.mrf.mxu0
  %v978 = vadd.f32 %v928, %v977
  %v979 = vpop.f32.mrf.mxu0
  %980 = vdwg.mxu0
  %v981 = vadd.f32 %v975, %v53
  %v982 = vadd.f32 %v978, %v54
  %v983 = vld [vmem:[%s5] sm:$0x1]
  %v984 = vld [vmem:[%s6] sm:$0x1]
  %v985 = vsel %vm57, %v981, 0.0
  %986 = vadd.xlane.f32.xlu0 %v985
  %v987 = vpop.xlane.xlu0 %986
  %v988 = vsel %vm57, %v982, 0.0
  %989 = vadd.xlane.f32.xlu0 %v988
  %v990 = vpop.xlane.xlu0 %989
  %v991 = vmul.f32 %v987, %v64
  %v992 = vmul.f32 %v990, %v64
  %v993 = vsub.f32 %v981, %v991
  %v994 = vsub.f32 %v982, %v992
  %v995 = vmul.f32 %v993, %v993
  %v996 = vmul.f32 %v994, %v994
  %v997 = vsel %vm57, %v995, 0.0
  %998 = vadd.xlane.f32.xlu0 %v997
  %v999 = vpop.xlane.xlu0 %998
  %v1000 = vsel %vm57, %v996, 0.0
  %1001 = vadd.xlane.f32.xlu0 %v1000
  %v1002 = vpop.xlane.xlu0 %1001
  %v1003 = vmul.f32 %v999, %v64
  %v1004 = vmul.f32 %v1002, %v64
  %v1005 = vadd.f32 %v1003, 1e-05
  %v1006 = vadd.f32 %v1004, 1e-05
  %v1007 = vrsqrt.pop %v1005
  %v1008 = vrsqrt.pop %v1006
  %v1009 = vmul.f32 %v993, %v1007
  %v1010 = vmul.f32 %v994, %v1008
  %v1011 = vlaneseq
  %v1012 = vshrl.u32 %v1011, 7
  %v1013 = vsub.s32 0, %v1012
  %v1014 = vrot.slane %v983, %v1013
  %v1015 = vmul.f32 %v1009, %v1014
  %v1016 = vmul.f32 %v1010, %v1014
  %v1017 = vlaneseq
  %v1018 = vshrl.u32 %v1017, 7
  %v1019 = vsub.s32 0, %v1018
  %v1020 = vrot.slane %v984, %v1019
  %v1021 = vadd.f32 %v1015, %v1020
  %v1022 = vadd.f32 %v1016, %v1020
  %v1023 = vpack.c.bf16 %v1022, %v1021
  %v1024 = vld [vmem:[%s7] sm:$0xff]
  %v1025 = vld [vmem:[%s7 + $0x8] sm:$0xff]
  %v1026 = vld [vmem:[%s7 + $0x10] sm:$0xff]
  %v1027 = vld [vmem:[%s7 + $0x18] sm:$0xff]
  %v1028 = vld [vmem:[%s8] ss:$2 sm:$0x3]
  %v1030 = vlaneseq
  %v1031 = vshrl.u32 %v1030, 7
  %v1032 = vsub.s32 0, %v1031
  %v1033 = vrot.slane %v1028, %v1032
  %v1034 = vlaneseq
  %v1035 = vshrl.u32 %v1034, 7
  %v1036 = vsub.s32 1, %v1035
  %v1037 = vrot.slane %v1028, %v1036
  %v1044 = vunpack.c.l.b16 %v1024
  %v1045 = vunpack.c.h.b16 %v1024
  %v1046 = vunpack.c.l.b16 %v1025
  %v1047 = vunpack.c.h.b16 %v1025
  %v1048 = vunpack.c.l.b16 %v1026
  %v1049 = vunpack.c.h.b16 %v1026
  %v1050 = vunpack.c.l.b16 %v1027
  %v1051 = vunpack.c.h.b16 %v1027
  %v1052 = vpack.c.b16 %v1046, %v1044
  %v1053 = vpack.c.b16 %v1047, %v1045
  %v1054 = vpack.c.b16 %v1050, %v1048
  %v1055 = vpack.c.b16 %v1051, %v1049
  %v1061 = vsel %vm57, %v1023, 0
  %1063 = vmatprep.subr.bf16.mxu0 0
  %1064 = vmatpush1.bf16.msra.mxu0 0
  %1065 = vmatprep.subr.bf16.mxu0 0
  %1066 = vmatpush1.bf16.msra.mxu0 0
  %1067 = vmatprep.subr.bf16.mxu0 0
  %1068 = vmatpush1.bf16.msra.mxu0 0
  %1069 = vmatprep.subr.bf16.mxu0 0
  %1070 = vmatpush1.bf16.msra.mxu0 0
  %1071 = vmatprep.subr.bf16.mxu0 0
  %1072 = vmatpush1.bf16.msra.mxu0 0
  %1073 = vmatprep.subr.bf16.mxu0 0
  %1074 = vmatpush1.bf16.msra.mxu0 0
  %1075 = vmatprep.subr.bf16.mxu0 %v1055
  %1076 = vmatpush1.bf16.msra.mxu0 %v1054
  %1077 = vmatprep.subr.bf16.mxu0 %v1053
  %1078 = vmatpush1.bf16.msra.mxu0 %v1052
  %1079 = vmatprep.subr.bf16.mxu0 0
  %1080 = vmatpush2.bf16.msra.mxu0 0
  %1081 = vmatprep.subr.bf16.mxu0 0
  %1082 = vmatpush2.bf16.msra.mxu0 0
  %1083 = vmatprep.subr.bf16.mxu0 0
  %1084 = vmatpush2.bf16.msra.mxu0 0
  %1085 = vmatprep.subr.bf16.mxu0 0
  %1086 = vmatpush2.bf16.msra.mxu0 0
  %1087 = vmatprep.subr.bf16.mxu0 0
  %1088 = vmatpush2.bf16.msra.mxu0 0
  %1089 = vmatprep.subr.bf16.mxu0 0
  %1090 = vmatpush2.bf16.msra.mxu0 0
  %1091 = vmatprep.subr.bf16.mxu0 0
  %1092 = vmatpush2.bf16.msra.mxu0 0
  %1093 = vmatprep.subr.bf16.mxu0 0
  %1094 = vmatpush2.bf16.msra.mxu0 0
  %1095 = vmatprep.mubr.bf16.mxu0 0
  %1096 = vmatmul.mubr.bf16.gmra.mxu0 %v1061
  %v1097 = vpop.f32.mrf.mxu0
  %v1098 = vadd.f32 %v1033, %v1097
  %v1099 = vpop.f32.mrf.mxu0
  %v1100 = vadd.f32 %v1037, %v1099
  %v1101 = vpop.f32.mrf.mxu0
  %v1102 = vadd.f32 %v1033, %v1101
  %v1103 = vpop.f32.mrf.mxu0
  %v1104 = vadd.f32 %v1037, %v1103
  %1105 = vdwg.mxu0
  %v1106 = vmul.f32 %v1100, 0.5
  %v1107 = vmul.f32 %v1104, 0.5
  %v1108 = vmul.f32 %v1100, 0.70710677
  %v1109 = vmul.f32 %v1104, 0.70710677
  %v1110 = verf.f32.pop %v1108
  %v1111 = verf.f32.pop %v1109
  %v1112 = vadd.f32 %v1110, 1.0
  %v1113 = vadd.f32 %v1111, 1.0
  %v1114 = vmul.f32 %v1106, %v1112
  %v1115 = vmul.f32 %v1107, %v1113
  %v1116 = vmul.f32 %v1098, %v1114
  %v1117 = vmul.f32 %v1102, %v1115
  %v1118 = vpack.c.bf16 %v1117, %v1116
  %v1119 = vld [vmem:[%s9] sm:$0xf]
  %v1120 = vld [vmem:[%s9 + $0x4] sm:$0xf]
  %v1121 = vld [vmem:[%s9 + $0x8] sm:$0xf]
  %v1122 = vld [vmem:[%s9 + $0xc] sm:$0xf]
  %v1123 = vld [vmem:[%s9 + $0x10] sm:$0xf]
  %v1124 = vld [vmem:[%s9 + $0x14] sm:$0xf]
  %v1125 = vld [vmem:[%s9 + $0x18] sm:$0xf]
  %v1126 = vld [vmem:[%s9 + $0x1c] sm:$0xf]
  %v1127 = vld [vmem:[%s9 + $0x20] sm:$0xf]
  %v1128 = vld [vmem:[%s9 + $0x24] sm:$0xf]
  %v1129 = vld [vmem:[%s9 + $0x28] sm:$0xf]
  %v1130 = vld [vmem:[%s9 + $0x2c] sm:$0xf]
  %v1131 = vld [vmem:[%s9 + $0x30] sm:$0xf]
  %v1132 = vld [vmem:[%s9 + $0x34] sm:$0xf]
  %v1133 = vld [vmem:[%s9 + $0x38] sm:$0xf]
  %v1134 = vld [vmem:[%s9 + $0x3c] sm:$0xf]
  %v1135 = vld [vmem:[%s10] sm:$0x1]
  %v1136 = vlaneseq
  %v1137 = vshrl.u32 %v1136, 7
  %v1138 = vsub.s32 0, %v1137
  %v1139 = vrot.slane %v1135, %v1138
  %v1156 = vunpack.c.l.b16 %v1119
  %v1157 = vunpack.c.l.b16 %v1120
  %v1158 = vunpack.c.l.b16 %v1121
  %v1159 = vunpack.c.l.b16 %v1122
  %v1160 = vunpack.c.l.b16 %v1123
  %v1161 = vunpack.c.l.b16 %v1124
  %v1162 = vunpack.c.l.b16 %v1125
  %v1163 = vunpack.c.l.b16 %v1126
  %v1164 = vunpack.c.l.b16 %v1127
  %v1165 = vunpack.c.l.b16 %v1128
  %v1166 = vunpack.c.l.b16 %v1129
  %v1167 = vunpack.c.l.b16 %v1130
  %v1168 = vunpack.c.l.b16 %v1131
  %v1169 = vunpack.c.l.b16 %v1132
  %v1170 = vunpack.c.l.b16 %v1133
  %v1171 = vunpack.c.l.b16 %v1134
  %v1172 = vpack.c.b16 %v1157, %v1156
  %v1173 = vpack.c.b16 %v1159, %v1158
  %v1174 = vpack.c.b16 %v1161, %v1160
  %v1175 = vpack.c.b16 %v1163, %v1162
  %v1176 = vpack.c.b16 %v1165, %v1164
  %v1177 = vpack.c.b16 %v1167, %v1166
  %v1178 = vpack.c.b16 %v1169, %v1168
  %v1179 = vpack.c.b16 %v1171, %v1170
  %1188 = vmatprep.subr.bf16.mxu0 0
  %1189 = vmatpush1.bf16.msra.mxu0 %v1179
  %1190 = vmatprep.subr.bf16.mxu0 0
  %1191 = vmatpush1.bf16.msra.mxu0 %v1178
  %1192 = vmatprep.subr.bf16.mxu0 0
  %1193 = vmatpush1.bf16.msra.mxu0 %v1177
  %1194 = vmatprep.subr.bf16.mxu0 0
  %1195 = vmatpush1.bf16.msra.mxu0 %v1176
  %1196 = vmatprep.subr.bf16.mxu0 0
  %1197 = vmatpush1.bf16.msra.mxu0 %v1175
  %1198 = vmatprep.subr.bf16.mxu0 0
  %1199 = vmatpush1.bf16.msra.mxu0 %v1174
  %1200 = vmatprep.subr.bf16.mxu0 0
  %1201 = vmatpush1.bf16.msra.mxu0 %v1173
  %1202 = vmatprep.subr.bf16.mxu0 0
  %1203 = vmatpush1.bf16.msra.mxu0 %v1172
  %1204 = vmatprep.subr.bf16.mxu0 0
  %1205 = vmatpush2.bf16.msra.mxu0 0
  %1206 = vmatprep.subr.bf16.mxu0 0
  %1207 = vmatpush2.bf16.msra.mxu0 0
  %1208 = vmatprep.subr.bf16.mxu0 0
  %1209 = vmatpush2.bf16.msra.mxu0 0
  %1210 = vmatprep.subr.bf16.mxu0 0
  %1211 = vmatpush2.bf16.msra.mxu0 0
  %1212 = vmatprep.subr.bf16.mxu0 0
  %1213 = vmatpush2.bf16.msra.mxu0 0
  %1214 = vmatprep.subr.bf16.mxu0 0
  %1215 = vmatpush2.bf16.msra.mxu0 0
  %1216 = vmatprep.subr.bf16.mxu0 0
  %1217 = vmatpush2.bf16.msra.mxu0 0
  %1218 = vmatprep.subr.bf16.mxu0 0
  %1219 = vmatpush2.bf16.msra.mxu0 0
  %1220 = vmatprep.mubr.bf16.mxu0 0
  %1221 = vmatmul.mubr.bf16.gmra.mxu0 %v1118
  %v1222 = vpop.f32.mrf.mxu0
  %v1223 = vadd.f32 %v1139, %v1222
  %v1224 = vpop.f32.mrf.mxu0
  %v1225 = vpop.f32.mrf.mxu0
  %v1226 = vadd.f32 %v1139, %v1225
  %v1227 = vpop.f32.mrf.mxu0
  %1228 = vdwg.mxu0
  %v1229 = vadd.f32 %v1223, %v981
  %v1230 = vadd.f32 %v1226, %v982
  %v1231 = vld [vmem:[%s1 + $0x1] sm:$0x1]
  %v1232 = vld [vmem:[%s2 + $0x1] sm:$0x1]
  %v1233 = vsel %vm57, %v1229, 0.0
  %1234 = vadd.xlane.f32.xlu0 %v1233
  %v1235 = vpop.xlane.xlu0 %1234
  %v1236 = vsel %vm57, %v1230, 0.0
  %1237 = vadd.xlane.f32.xlu0 %v1236
  %v1238 = vpop.xlane.xlu0 %1237
  %v1239 = vmul.f32 %v1235, %v64
  %v1240 = vmul.f32 %v1238, %v64
  %v1241 = vsub.f32 %v1229, %v1239
  %v1242 = vsub.f32 %v1230, %v1240
  %v1243 = vmul.f32 %v1241, %v1241
  %v1244 = vmul.f32 %v1242, %v1242
  %v1245 = vsel %vm57, %v1243, 0.0
  %1246 = vadd.xlane.f32.xlu0 %v1245
  %v1247 = vpop.xlane.xlu0 %1246
  %v1248 = vsel %vm57, %v1244, 0.0
  %1249 = vadd.xlane.f32.xlu0 %v1248
  %v1250 = vpop.xlane.xlu0 %1249
  %v1251 = vmul.f32 %v1247, %v64
  %v1252 = vmul.f32 %v1250, %v64
  %v1253 = vadd.f32 %v1251, 1e-05
  %v1254 = vadd.f32 %v1252, 1e-05
  %v1255 = vrsqrt.pop %v1253
  %v1256 = vrsqrt.pop %v1254
  %v1257 = vmul.f32 %v1241, %v1255
  %v1258 = vmul.f32 %v1242, %v1256
  %v1259 = vlaneseq
  %v1260 = vshrl.u32 %v1259, 7
  %v1261 = vsub.s32 0, %v1260
  %v1262 = vrot.slane %v1231, %v1261
  %v1263 = vmul.f32 %v1257, %v1262
  %v1264 = vmul.f32 %v1258, %v1262
  %v1265 = vlaneseq
  %v1266 = vshrl.u32 %v1265, 7
  %v1267 = vsub.s32 0, %v1266
  %v1268 = vrot.slane %v1232, %v1267
  %v1269 = vadd.f32 %v1263, %v1268
  %v1270 = vadd.f32 %v1264, %v1268
  %v1271 = vpack.c.bf16 %v1270, %v1269
  %s1272 = scalar_lea.vmem %s3, 96
  %v1273 = vld [vmem:[%s1272] sm:$0xf]
  %v1274 = vld [vmem:[%s1272 + $0x4] sm:$0xf]
  %v1275 = vld [vmem:[%s1272 + $0x8] sm:$0xf]
  %v1276 = vld [vmem:[%s1272 + $0xc] sm:$0xf]
  %v1277 = vld [vmem:[%s1272 + $0x10] sm:$0xf]
  %v1278 = vld [vmem:[%s1272 + $0x14] sm:$0xf]
  %v1279 = vld [vmem:[%s1272 + $0x18] sm:$0xf]
  %v1280 = vld [vmem:[%s1272 + $0x1c] sm:$0xf]
  %v1281 = vld [vmem:[%s1272 + $0x20] sm:$0xf]
  %v1282 = vld [vmem:[%s1272 + $0x24] sm:$0xf]
  %v1283 = vld [vmem:[%s1272 + $0x28] sm:$0xf]
  %v1284 = vld [vmem:[%s1272 + $0x2c] sm:$0xf]
  %v1285 = vld [vmem:[%s1272 + $0x30] sm:$0xf]
  %v1286 = vld [vmem:[%s1272 + $0x34] sm:$0xf]
  %v1287 = vld [vmem:[%s1272 + $0x38] sm:$0xf]
  %v1288 = vld [vmem:[%s1272 + $0x3c] sm:$0xf]
  %v1289 = vld [vmem:[%s1272 + $0x40] sm:$0xf]
  %v1290 = vld [vmem:[%s1272 + $0x44] sm:$0xf]
  %v1291 = vld [vmem:[%s1272 + $0x48] sm:$0xf]
  %v1292 = vld [vmem:[%s1272 + $0x4c] sm:$0xf]
  %v1293 = vld [vmem:[%s1272 + $0x50] sm:$0xf]
  %v1294 = vld [vmem:[%s1272 + $0x54] sm:$0xf]
  %v1295 = vld [vmem:[%s1272 + $0x58] sm:$0xf]
  %v1296 = vld [vmem:[%s1272 + $0x5c] sm:$0xf]
  %v1301 = vunpack.c.l.b16 %v1273
  %v1302 = vunpack.c.l.b16 %v1274
  %v1303 = vunpack.c.l.b16 %v1275
  %v1304 = vunpack.c.l.b16 %v1276
  %v1305 = vpack.c.b16 %v1302, %v1301
  %v1306 = vpack.c.b16 %v1304, %v1303
  %v1310 = vsel %vm57, %v1271, 0
  %1312 = vmatprep.subr.bf16.mxu0 0
  %1313 = vmatpush1.bf16.msra.mxu0 0
  %1314 = vmatprep.subr.bf16.mxu0 0
  %1315 = vmatpush1.bf16.msra.mxu0 0
  %1316 = vmatprep.subr.bf16.mxu0 0
  %1317 = vmatpush1.bf16.msra.mxu0 0
  %1318 = vmatprep.subr.bf16.mxu0 0
  %1319 = vmatpush1.bf16.msra.mxu0 0
  %1320 = vmatprep.subr.bf16.mxu0 0
  %1321 = vmatpush1.bf16.msra.mxu0 0
  %1322 = vmatprep.subr.bf16.mxu0 0
  %1323 = vmatpush1.bf16.msra.mxu0 0
  %1324 = vmatprep.subr.bf16.mxu0 0
  %1325 = vmatpush1.bf16.msra.mxu0 %v1306
  %1326 = vmatprep.subr.bf16.mxu0 0
  %1327 = vmatpush1.bf16.msra.mxu0 %v1305
  %1328 = vmatprep.subr.bf16.mxu0 0
  %1329 = vmatpush2.bf16.msra.mxu0 0
  %1330 = vmatprep.subr.bf16.mxu0 0
  %1331 = vmatpush2.bf16.msra.mxu0 0
  %1332 = vmatprep.subr.bf16.mxu0 0
  %1333 = vmatpush2.bf16.msra.mxu0 0
  %1334 = vmatprep.subr.bf16.mxu0 0
  %1335 = vmatpush2.bf16.msra.mxu0 0
  %1336 = vmatprep.subr.bf16.mxu0 0
  %1337 = vmatpush2.bf16.msra.mxu0 0
  %1338 = vmatprep.subr.bf16.mxu0 0
  %1339 = vmatpush2.bf16.msra.mxu0 0
  %1340 = vmatprep.subr.bf16.mxu0 0
  %1341 = vmatpush2.bf16.msra.mxu0 0
  %1342 = vmatprep.subr.bf16.mxu0 0
  %1343 = vmatpush2.bf16.msra.mxu0 0
  %1344 = vmatprep.mubr.bf16.mxu0 0
  %1345 = vmatmul.mubr.bf16.gmra.mxu0 %v1310
  %v1346 = vpop.f32.mrf.mxu0
  %v1347 = vadd.f32 0.0, %v1346
  %v1348 = vpop.f32.mrf.mxu0
  %v1349 = vpop.f32.mrf.mxu0
  %v1350 = vadd.f32 0.0, %v1349
  %v1351 = vpop.f32.mrf.mxu0
  %1352 = vdwg.mxu0
  %v1357 = vunpack.c.l.b16 %v1277
  %v1358 = vunpack.c.l.b16 %v1278
  %v1359 = vunpack.c.l.b16 %v1279
  %v1360 = vunpack.c.l.b16 %v1280
  %v1361 = vpack.c.b16 %v1358, %v1357
  %v1362 = vpack.c.b16 %v1360, %v1359
  %1365 = vmatprep.subr.bf16.mxu0 0
  %1366 = vmatpush1.bf16.msra.mxu0 0
  %1367 = vmatprep.subr.bf16.mxu0 0
  %1368 = vmatpush1.bf16.msra.mxu0 0
  %1369 = vmatprep.subr.bf16.mxu0 0
  %1370 = vmatpush1.bf16.msra.mxu0 0
  %1371 = vmatprep.subr.bf16.mxu0 0
  %1372 = vmatpush1.bf16.msra.mxu0 0
  %1373 = vmatprep.subr.bf16.mxu0 0
  %1374 = vmatpush1.bf16.msra.mxu0 0
  %1375 = vmatprep.subr.bf16.mxu0 0
  %1376 = vmatpush1.bf16.msra.mxu0 0
  %1377 = vmatprep.subr.bf16.mxu0 0
  %1378 = vmatpush1.bf16.msra.mxu0 %v1362
  %1379 = vmatprep.subr.bf16.mxu0 0
  %1380 = vmatpush1.bf16.msra.mxu0 %v1361
  %1381 = vmatprep.subr.bf16.mxu0 0
  %1382 = vmatpush2.bf16.msra.mxu0 0
  %1383 = vmatprep.subr.bf16.mxu0 0
  %1384 = vmatpush2.bf16.msra.mxu0 0
  %1385 = vmatprep.subr.bf16.mxu0 0
  %1386 = vmatpush2.bf16.msra.mxu0 0
  %1387 = vmatprep.subr.bf16.mxu0 0
  %1388 = vmatpush2.bf16.msra.mxu0 0
  %1389 = vmatprep.subr.bf16.mxu0 0
  %1390 = vmatpush2.bf16.msra.mxu0 0
  %1391 = vmatprep.subr.bf16.mxu0 0
  %1392 = vmatpush2.bf16.msra.mxu0 0
  %1393 = vmatprep.subr.bf16.mxu0 0
  %1394 = vmatpush2.bf16.msra.mxu0 0
  %1395 = vmatprep.subr.bf16.mxu0 0
  %1396 = vmatpush2.bf16.msra.mxu0 0
  %1397 = vmatprep.mubr.bf16.mxu0 0
  %1398 = vmatmul.mubr.bf16.gmra.mxu0 %v1310
  %v1399 = vpop.f32.mrf.mxu0
  %v1400 = vadd.f32 0.0, %v1399
  %v1401 = vpop.f32.mrf.mxu0
  %v1402 = vpop.f32.mrf.mxu0
  %v1403 = vadd.f32 0.0, %v1402
  %v1404 = vpop.f32.mrf.mxu0
  %1405 = vdwg.mxu0
  %v1410 = vunpack.c.l.b16 %v1281
  %v1411 = vunpack.c.l.b16 %v1282
  %v1412 = vunpack.c.l.b16 %v1283
  %v1413 = vunpack.c.l.b16 %v1284
  %v1414 = vpack.c.b16 %v1411, %v1410
  %v1415 = vpack.c.b16 %v1413, %v1412
  %1418 = vmatprep.subr.bf16.mxu0 0
  %1419 = vmatpush1.bf16.msra.mxu0 0
  %1420 = vmatprep.subr.bf16.mxu0 0
  %1421 = vmatpush1.bf16.msra.mxu0 0
  %1422 = vmatprep.subr.bf16.mxu0 0
  %1423 = vmatpush1.bf16.msra.mxu0 0
  %1424 = vmatprep.subr.bf16.mxu0 0
  %1425 = vmatpush1.bf16.msra.mxu0 0
  %1426 = vmatprep.subr.bf16.mxu0 0
  %1427 = vmatpush1.bf16.msra.mxu0 0
  %1428 = vmatprep.subr.bf16.mxu0 0
  %1429 = vmatpush1.bf16.msra.mxu0 0
  %1430 = vmatprep.subr.bf16.mxu0 0
  %1431 = vmatpush1.bf16.msra.mxu0 %v1415
  %1432 = vmatprep.subr.bf16.mxu0 0
  %1433 = vmatpush1.bf16.msra.mxu0 %v1414
  %1434 = vmatprep.subr.bf16.mxu0 0
  %1435 = vmatpush2.bf16.msra.mxu0 0
  %1436 = vmatprep.subr.bf16.mxu0 0
  %1437 = vmatpush2.bf16.msra.mxu0 0
  %1438 = vmatprep.subr.bf16.mxu0 0
  %1439 = vmatpush2.bf16.msra.mxu0 0
  %1440 = vmatprep.subr.bf16.mxu0 0
  %1441 = vmatpush2.bf16.msra.mxu0 0
  %1442 = vmatprep.subr.bf16.mxu0 0
  %1443 = vmatpush2.bf16.msra.mxu0 0
  %1444 = vmatprep.subr.bf16.mxu0 0
  %1445 = vmatpush2.bf16.msra.mxu0 0
  %1446 = vmatprep.subr.bf16.mxu0 0
  %1447 = vmatpush2.bf16.msra.mxu0 0
  %1448 = vmatprep.subr.bf16.mxu0 0
  %1449 = vmatpush2.bf16.msra.mxu0 0
  %1450 = vmatprep.mubr.bf16.mxu0 0
  %1451 = vmatmul.mubr.bf16.gmra.mxu0 %v1310
  %v1452 = vpop.f32.mrf.mxu0
  %v1453 = vadd.f32 0.0, %v1452
  %v1454 = vpop.f32.mrf.mxu0
  %v1455 = vpop.f32.mrf.mxu0
  %v1456 = vadd.f32 0.0, %v1455
  %v1457 = vpop.f32.mrf.mxu0
  %1458 = vdwg.mxu0
  %v1463 = vunpack.c.l.b16 %v1285
  %v1464 = vunpack.c.l.b16 %v1286
  %v1465 = vunpack.c.l.b16 %v1287
  %v1466 = vunpack.c.l.b16 %v1288
  %v1467 = vpack.c.b16 %v1464, %v1463
  %v1468 = vpack.c.b16 %v1466, %v1465
  %1471 = vmatprep.subr.bf16.mxu0 0
  %1472 = vmatpush1.bf16.msra.mxu0 0
  %1473 = vmatprep.subr.bf16.mxu0 0
  %1474 = vmatpush1.bf16.msra.mxu0 0
  %1475 = vmatprep.subr.bf16.mxu0 0
  %1476 = vmatpush1.bf16.msra.mxu0 0
  %1477 = vmatprep.subr.bf16.mxu0 0
  %1478 = vmatpush1.bf16.msra.mxu0 0
  %1479 = vmatprep.subr.bf16.mxu0 0
  %1480 = vmatpush1.bf16.msra.mxu0 0
  %1481 = vmatprep.subr.bf16.mxu0 0
  %1482 = vmatpush1.bf16.msra.mxu0 0
  %1483 = vmatprep.subr.bf16.mxu0 0
  %1484 = vmatpush1.bf16.msra.mxu0 %v1468
  %1485 = vmatprep.subr.bf16.mxu0 0
  %1486 = vmatpush1.bf16.msra.mxu0 %v1467
  %1487 = vmatprep.subr.bf16.mxu0 0
  %1488 = vmatpush2.bf16.msra.mxu0 0
  %1489 = vmatprep.subr.bf16.mxu0 0
  %1490 = vmatpush2.bf16.msra.mxu0 0
  %1491 = vmatprep.subr.bf16.mxu0 0
  %1492 = vmatpush2.bf16.msra.mxu0 0
  %1493 = vmatprep.subr.bf16.mxu0 0
  %1494 = vmatpush2.bf16.msra.mxu0 0
  %1495 = vmatprep.subr.bf16.mxu0 0
  %1496 = vmatpush2.bf16.msra.mxu0 0
  %1497 = vmatprep.subr.bf16.mxu0 0
  %1498 = vmatpush2.bf16.msra.mxu0 0
  %1499 = vmatprep.subr.bf16.mxu0 0
  %1500 = vmatpush2.bf16.msra.mxu0 0
  %1501 = vmatprep.subr.bf16.mxu0 0
  %1502 = vmatpush2.bf16.msra.mxu0 0
  %1503 = vmatprep.mubr.bf16.mxu0 0
  %1504 = vmatmul.mubr.bf16.gmra.mxu0 %v1310
  %v1505 = vpop.f32.mrf.mxu0
  %v1506 = vadd.f32 0.0, %v1505
  %v1507 = vpop.f32.mrf.mxu0
  %v1508 = vpop.f32.mrf.mxu0
  %v1509 = vadd.f32 0.0, %v1508
  %v1510 = vpop.f32.mrf.mxu0
  %1511 = vdwg.mxu0
  %v1516 = vunpack.c.l.b16 %v1289
  %v1517 = vunpack.c.l.b16 %v1290
  %v1518 = vunpack.c.l.b16 %v1291
  %v1519 = vunpack.c.l.b16 %v1292
  %v1520 = vpack.c.b16 %v1517, %v1516
  %v1521 = vpack.c.b16 %v1519, %v1518
  %1524 = vmatprep.subr.bf16.mxu0 0
  %1525 = vmatpush1.bf16.msra.mxu0 0
  %1526 = vmatprep.subr.bf16.mxu0 0
  %1527 = vmatpush1.bf16.msra.mxu0 0
  %1528 = vmatprep.subr.bf16.mxu0 0
  %1529 = vmatpush1.bf16.msra.mxu0 0
  %1530 = vmatprep.subr.bf16.mxu0 0
  %1531 = vmatpush1.bf16.msra.mxu0 0
  %1532 = vmatprep.subr.bf16.mxu0 0
  %1533 = vmatpush1.bf16.msra.mxu0 0
  %1534 = vmatprep.subr.bf16.mxu0 0
  %1535 = vmatpush1.bf16.msra.mxu0 0
  %1536 = vmatprep.subr.bf16.mxu0 0
  %1537 = vmatpush1.bf16.msra.mxu0 %v1521
  %1538 = vmatprep.subr.bf16.mxu0 0
  %1539 = vmatpush1.bf16.msra.mxu0 %v1520
  %1540 = vmatprep.subr.bf16.mxu0 0
  %1541 = vmatpush2.bf16.msra.mxu0 0
  %1542 = vmatprep.subr.bf16.mxu0 0
  %1543 = vmatpush2.bf16.msra.mxu0 0
  %1544 = vmatprep.subr.bf16.mxu0 0
  %1545 = vmatpush2.bf16.msra.mxu0 0
  %1546 = vmatprep.subr.bf16.mxu0 0
  %1547 = vmatpush2.bf16.msra.mxu0 0
  %1548 = vmatprep.subr.bf16.mxu0 0
  %1549 = vmatpush2.bf16.msra.mxu0 0
  %1550 = vmatprep.subr.bf16.mxu0 0
  %1551 = vmatpush2.bf16.msra.mxu0 0
  %1552 = vmatprep.subr.bf16.mxu0 0
  %1553 = vmatpush2.bf16.msra.mxu0 0
  %1554 = vmatprep.subr.bf16.mxu0 0
  %1555 = vmatpush2.bf16.msra.mxu0 0
  %1556 = vmatprep.mubr.bf16.mxu0 0
  %1557 = vmatmul.mubr.bf16.gmra.mxu0 %v1310
  %v1558 = vpop.f32.mrf.mxu0
  %v1559 = vadd.f32 0.0, %v1558
  %v1560 = vpop.f32.mrf.mxu0
  %v1561 = vpop.f32.mrf.mxu0
  %v1562 = vadd.f32 0.0, %v1561
  %v1563 = vpop.f32.mrf.mxu0
  %1564 = vdwg.mxu0
  %v1569 = vunpack.c.l.b16 %v1293
  %v1570 = vunpack.c.l.b16 %v1294
  %v1571 = vunpack.c.l.b16 %v1295
  %v1572 = vunpack.c.l.b16 %v1296
  %v1573 = vpack.c.b16 %v1570, %v1569
  %v1574 = vpack.c.b16 %v1572, %v1571
  %1577 = vmatprep.subr.bf16.mxu0 0
  %1578 = vmatpush1.bf16.msra.mxu0 0
  %1579 = vmatprep.subr.bf16.mxu0 0
  %1580 = vmatpush1.bf16.msra.mxu0 0
  %1581 = vmatprep.subr.bf16.mxu0 0
  %1582 = vmatpush1.bf16.msra.mxu0 0
  %1583 = vmatprep.subr.bf16.mxu0 0
  %1584 = vmatpush1.bf16.msra.mxu0 0
  %1585 = vmatprep.subr.bf16.mxu0 0
  %1586 = vmatpush1.bf16.msra.mxu0 0
  %1587 = vmatprep.subr.bf16.mxu0 0
  %1588 = vmatpush1.bf16.msra.mxu0 0
  %1589 = vmatprep.subr.bf16.mxu0 0
  %1590 = vmatpush1.bf16.msra.mxu0 %v1574
  %1591 = vmatprep.subr.bf16.mxu0 0
  %1592 = vmatpush1.bf16.msra.mxu0 %v1573
  %1593 = vmatprep.subr.bf16.mxu0 0
  %1594 = vmatpush2.bf16.msra.mxu0 0
  %1595 = vmatprep.subr.bf16.mxu0 0
  %1596 = vmatpush2.bf16.msra.mxu0 0
  %1597 = vmatprep.subr.bf16.mxu0 0
  %1598 = vmatpush2.bf16.msra.mxu0 0
  %1599 = vmatprep.subr.bf16.mxu0 0
  %1600 = vmatpush2.bf16.msra.mxu0 0
  %1601 = vmatprep.subr.bf16.mxu0 0
  %1602 = vmatpush2.bf16.msra.mxu0 0
  %1603 = vmatprep.subr.bf16.mxu0 0
  %1604 = vmatpush2.bf16.msra.mxu0 0
  %1605 = vmatprep.subr.bf16.mxu0 0
  %1606 = vmatpush2.bf16.msra.mxu0 0
  %1607 = vmatprep.subr.bf16.mxu0 0
  %1608 = vmatpush2.bf16.msra.mxu0 0
  %1609 = vmatprep.mubr.bf16.mxu0 0
  %1610 = vmatmul.mubr.bf16.gmra.mxu0 %v1310
  %v1611 = vpop.f32.mrf.mxu0
  %v1612 = vadd.f32 0.0, %v1611
  %v1613 = vpop.f32.mrf.mxu0
  %v1614 = vpop.f32.mrf.mxu0
  %v1615 = vadd.f32 0.0, %v1614
  %v1616 = vpop.f32.mrf.mxu0
  %1617 = vdwg.mxu0
  %v1618 = vpack.c.bf16 %v1347, %v1347
  %v1619 = vpack.c.bf16 %v1350, %v1350
  %v1620 = vpack.c.bf16 %v1400, %v1400
  %v1621 = vpack.c.bf16 %v1403, %v1403
  %v1622 = vpack.c.bf16 %v1453, %v1453
  %v1623 = vpack.c.bf16 %v1456, %v1456
  %v1624 = vpack.c.bf16 %v1506, %v1506
  %v1625 = vpack.c.bf16 %v1509, %v1509
  %v1626 = vpack.c.bf16 %v1559, %v1559
  %v1627 = vpack.c.bf16 %v1562, %v1562
  %v1628 = vpack.c.bf16 %v1612, %v1612
  %v1629 = vpack.c.bf16 %v1615, %v1615
  %v1631 = vsel %vm455, %v1618, 0
  %v1634 = vsel %vm455, %v1622, 0
  %1636 = vmatprep.subr.bf16.mxu0 0
  %1637 = vmatpush1.bf16.xpose.msra.mxu0 0
  %1638 = vmatprep.subr.bf16.mxu0 0
  %1639 = vmatpush1.bf16.xpose.msra.mxu0 0
  %1640 = vmatprep.subr.bf16.mxu0 0
  %1641 = vmatpush1.bf16.xpose.msra.mxu0 0
  %1642 = vmatprep.subr.bf16.mxu0 0
  %1643 = vmatpush1.bf16.xpose.msra.mxu0 0
  %1644 = vmatprep.subr.bf16.mxu0 0
  %1645 = vmatpush1.bf16.xpose.msra.mxu0 0
  %1646 = vmatprep.subr.bf16.mxu0 0
  %1647 = vmatpush1.bf16.xpose.msra.mxu0 0
  %1648 = vmatprep.subr.bf16.mxu0 0
  %1649 = vmatpush1.bf16.xpose.msra.mxu0 0
  %1650 = vmatprep.subr.bf16.mxu0 0
  %1651 = vmatpush1.bf16.xpose.msra.mxu0 %v1634
  %1652 = vmatprep.subr.bf16.mxu0 0
  %1653 = vmatpush2.bf16.xpose.msra.mxu0 0
  %1654 = vmatprep.subr.bf16.mxu0 0
  %1655 = vmatpush2.bf16.xpose.msra.mxu0 0
  %1656 = vmatprep.subr.bf16.mxu0 0
  %1657 = vmatpush2.bf16.xpose.msra.mxu0 0
  %1658 = vmatprep.subr.bf16.mxu0 0
  %1659 = vmatpush2.bf16.xpose.msra.mxu0 0
  %1660 = vmatprep.subr.bf16.mxu0 0
  %1661 = vmatpush2.bf16.xpose.msra.mxu0 0
  %1662 = vmatprep.subr.bf16.mxu0 0
  %1663 = vmatpush2.bf16.xpose.msra.mxu0 0
  %1664 = vmatprep.subr.bf16.mxu0 0
  %1665 = vmatpush2.bf16.xpose.msra.mxu0 0
  %1666 = vmatprep.subr.bf16.mxu0 0
  %1667 = vmatpush2.bf16.xpose.msra.mxu0 0
  %1668 = vmatprep.mubr.bf16.mxu0 0
  %1669 = vmatmul.mubr.bf16.gmra.mxu0 %v1631
  %v1670 = vpop.f32.mrf.mxu0
  %v1671 = vadd.f32 0.0, %v1670
  %v1672 = vpop.f32.mrf.mxu0
  %v1673 = vpop.f32.mrf.mxu0
  %v1674 = vpop.f32.mrf.mxu0
  %1675 = vdwg.mxu0
  %v1677 = vsel %vm455, %v1619, 0
  %v1680 = vsel %vm455, %v1623, 0
  %1682 = vmatprep.subr.bf16.mxu0 0
  %1683 = vmatpush1.bf16.xpose.msra.mxu0 0
  %1684 = vmatprep.subr.bf16.mxu0 0
  %1685 = vmatpush1.bf16.xpose.msra.mxu0 0
  %1686 = vmatprep.subr.bf16.mxu0 0
  %1687 = vmatpush1.bf16.xpose.msra.mxu0 0
  %1688 = vmatprep.subr.bf16.mxu0 0
  %1689 = vmatpush1.bf16.xpose.msra.mxu0 0
  %1690 = vmatprep.subr.bf16.mxu0 0
  %1691 = vmatpush1.bf16.xpose.msra.mxu0 0
  %1692 = vmatprep.subr.bf16.mxu0 0
  %1693 = vmatpush1.bf16.xpose.msra.mxu0 0
  %1694 = vmatprep.subr.bf16.mxu0 0
  %1695 = vmatpush1.bf16.xpose.msra.mxu0 0
  %1696 = vmatprep.subr.bf16.mxu0 0
  %1697 = vmatpush1.bf16.xpose.msra.mxu0 %v1680
  %1698 = vmatprep.subr.bf16.mxu0 0
  %1699 = vmatpush2.bf16.xpose.msra.mxu0 0
  %1700 = vmatprep.subr.bf16.mxu0 0
  %1701 = vmatpush2.bf16.xpose.msra.mxu0 0
  %1702 = vmatprep.subr.bf16.mxu0 0
  %1703 = vmatpush2.bf16.xpose.msra.mxu0 0
  %1704 = vmatprep.subr.bf16.mxu0 0
  %1705 = vmatpush2.bf16.xpose.msra.mxu0 0
  %1706 = vmatprep.subr.bf16.mxu0 0
  %1707 = vmatpush2.bf16.xpose.msra.mxu0 0
  %1708 = vmatprep.subr.bf16.mxu0 0
  %1709 = vmatpush2.bf16.xpose.msra.mxu0 0
  %1710 = vmatprep.subr.bf16.mxu0 0
  %1711 = vmatpush2.bf16.xpose.msra.mxu0 0
  %1712 = vmatprep.subr.bf16.mxu0 0
  %1713 = vmatpush2.bf16.xpose.msra.mxu0 0
  %1714 = vmatprep.mubr.bf16.mxu0 0
  %1715 = vmatmul.mubr.bf16.gmra.mxu0 %v1677
  %v1716 = vpop.f32.mrf.mxu0
  %v1717 = vadd.f32 0.0, %v1716
  %v1718 = vpop.f32.mrf.mxu0
  %v1719 = vpop.f32.mrf.mxu0
  %v1720 = vpop.f32.mrf.mxu0
  %1721 = vdwg.mxu0
  %v1723 = vsel %vm455, %v1620, 0
  %v1726 = vsel %vm455, %v1624, 0
  %1728 = vmatprep.subr.bf16.mxu0 0
  %1729 = vmatpush1.bf16.xpose.msra.mxu0 0
  %1730 = vmatprep.subr.bf16.mxu0 0
  %1731 = vmatpush1.bf16.xpose.msra.mxu0 0
  %1732 = vmatprep.subr.bf16.mxu0 0
  %1733 = vmatpush1.bf16.xpose.msra.mxu0 0
  %1734 = vmatprep.subr.bf16.mxu0 0
  %1735 = vmatpush1.bf16.xpose.msra.mxu0 0
  %1736 = vmatprep.subr.bf16.mxu0 0
  %1737 = vmatpush1.bf16.xpose.msra.mxu0 0
  %1738 = vmatprep.subr.bf16.mxu0 0
  %1739 = vmatpush1.bf16.xpose.msra.mxu0 0
  %1740 = vmatprep.subr.bf16.mxu0 0
  %1741 = vmatpush1.bf16.xpose.msra.mxu0 0
  %1742 = vmatprep.subr.bf16.mxu0 0
  %1743 = vmatpush1.bf16.xpose.msra.mxu0 %v1726
  %1744 = vmatprep.subr.bf16.mxu0 0
  %1745 = vmatpush2.bf16.xpose.msra.mxu0 0
  %1746 = vmatprep.subr.bf16.mxu0 0
  %1747 = vmatpush2.bf16.xpose.msra.mxu0 0
  %1748 = vmatprep.subr.bf16.mxu0 0
  %1749 = vmatpush2.bf16.xpose.msra.mxu0 0
  %1750 = vmatprep.subr.bf16.mxu0 0
  %1751 = vmatpush2.bf16.xpose.msra.mxu0 0
  %1752 = vmatprep.subr.bf16.mxu0 0
  %1753 = vmatpush2.bf16.xpose.msra.mxu0 0
  %1754 = vmatprep.subr.bf16.mxu0 0
  %1755 = vmatpush2.bf16.xpose.msra.mxu0 0
  %1756 = vmatprep.subr.bf16.mxu0 0
  %1757 = vmatpush2.bf16.xpose.msra.mxu0 0
  %1758 = vmatprep.subr.bf16.mxu0 0
  %1759 = vmatpush2.bf16.xpose.msra.mxu0 0
  %1760 = vmatprep.mubr.bf16.mxu0 0
  %1761 = vmatmul.mubr.bf16.gmra.mxu0 %v1723
  %v1762 = vpop.f32.mrf.mxu0
  %v1763 = vadd.f32 0.0, %v1762
  %v1764 = vpop.f32.mrf.mxu0
  %v1765 = vpop.f32.mrf.mxu0
  %v1766 = vpop.f32.mrf.mxu0
  %1767 = vdwg.mxu0
  %v1769 = vsel %vm455, %v1621, 0
  %v1772 = vsel %vm455, %v1625, 0
  %1774 = vmatprep.subr.bf16.mxu0 0
  %1775 = vmatpush1.bf16.xpose.msra.mxu0 0
  %1776 = vmatprep.subr.bf16.mxu0 0
  %1777 = vmatpush1.bf16.xpose.msra.mxu0 0
  %1778 = vmatprep.subr.bf16.mxu0 0
  %1779 = vmatpush1.bf16.xpose.msra.mxu0 0
  %1780 = vmatprep.subr.bf16.mxu0 0
  %1781 = vmatpush1.bf16.xpose.msra.mxu0 0
  %1782 = vmatprep.subr.bf16.mxu0 0
  %1783 = vmatpush1.bf16.xpose.msra.mxu0 0
  %1784 = vmatprep.subr.bf16.mxu0 0
  %1785 = vmatpush1.bf16.xpose.msra.mxu0 0
  %1786 = vmatprep.subr.bf16.mxu0 0
  %1787 = vmatpush1.bf16.xpose.msra.mxu0 0
  %1788 = vmatprep.subr.bf16.mxu0 0
  %1789 = vmatpush1.bf16.xpose.msra.mxu0 %v1772
  %1790 = vmatprep.subr.bf16.mxu0 0
  %1791 = vmatpush2.bf16.xpose.msra.mxu0 0
  %1792 = vmatprep.subr.bf16.mxu0 0
  %1793 = vmatpush2.bf16.xpose.msra.mxu0 0
  %1794 = vmatprep.subr.bf16.mxu0 0
  %1795 = vmatpush2.bf16.xpose.msra.mxu0 0
  %1796 = vmatprep.subr.bf16.mxu0 0
  %1797 = vmatpush2.bf16.xpose.msra.mxu0 0
  %1798 = vmatprep.subr.bf16.mxu0 0
  %1799 = vmatpush2.bf16.xpose.msra.mxu0 0
  %1800 = vmatprep.subr.bf16.mxu0 0
  %1801 = vmatpush2.bf16.xpose.msra.mxu0 0
  %1802 = vmatprep.subr.bf16.mxu0 0
  %1803 = vmatpush2.bf16.xpose.msra.mxu0 0
  %1804 = vmatprep.subr.bf16.mxu0 0
  %1805 = vmatpush2.bf16.xpose.msra.mxu0 0
  %1806 = vmatprep.mubr.bf16.mxu0 0
  %1807 = vmatmul.mubr.bf16.gmra.mxu0 %v1769
  %v1808 = vpop.f32.mrf.mxu0
  %v1809 = vadd.f32 0.0, %v1808
  %v1810 = vpop.f32.mrf.mxu0
  %v1811 = vpop.f32.mrf.mxu0
  %v1812 = vpop.f32.mrf.mxu0
  %1813 = vdwg.mxu0
  %v1814 = vsel %vm640, %v1671, -inf
  %1815 = vmax.xlane.f32.xlu0 %v1814
  %v1816 = vpop.xlane.xlu0 %1815
  %v1817 = vsel %vm640, %v1717, -inf
  %1818 = vmax.xlane.f32.xlu0 %v1817
  %v1819 = vpop.xlane.xlu0 %1818
  %v1820 = vsel %vm640, %v1763, -inf
  %1821 = vmax.xlane.f32.xlu0 %v1820
  %v1822 = vpop.xlane.xlu0 %1821
  %v1823 = vsel %vm640, %v1809, -inf
  %1824 = vmax.xlane.f32.xlu0 %v1823
  %v1825 = vpop.xlane.xlu0 %1824
  %v1826 = vsub.f32 %v1671, %v1816
  %v1827 = vsub.f32 %v1717, %v1819
  %v1828 = vsub.f32 %v1763, %v1822
  %v1829 = vsub.f32 %v1809, %v1825
  %v1830 = vmul.f32 %v1826, 1.442695
  %v1831 = vpow.pop %v1830
  %v1832 = vmul.f32 %v1827, 1.442695
  %v1833 = vpow.pop %v1832
  %v1834 = vmul.f32 %v1828, 1.442695
  %v1835 = vpow.pop %v1834
  %v1836 = vmul.f32 %v1829, 1.442695
  %v1837 = vpow.pop %v1836
  %v1838 = vsel %vm640, %v1831, 0.0
  %1839 = vadd.xlane.f32.xlu0 %v1838
  %v1840 = vpop.xlane.xlu0 %1839
  %v1841 = vsel %vm640, %v1833, 0.0
  %1842 = vadd.xlane.f32.xlu0 %v1841
  %v1843 = vpop.xlane.xlu0 %1842
  %v1844 = vsel %vm640, %v1835, 0.0
  %1845 = vadd.xlane.f32.xlu0 %v1844
  %v1846 = vpop.xlane.xlu0 %1845
  %v1847 = vsel %vm640, %v1837, 0.0
  %1848 = vadd.xlane.f32.xlu0 %v1847
  %v1849 = vpop.xlane.xlu0 %1848
  %v1850 = vrcp.pop %v1840
  %v1851 = vrcp.pop %v1843
  %v1852 = vrcp.pop %v1846
  %v1853 = vrcp.pop %v1849
  %v1854 = vmul.f32 %v1831, %v1850
  %v1855 = vmul.f32 %v1833, %v1851
  %v1856 = vmul.f32 %v1835, %v1852
  %v1857 = vmul.f32 %v1837, %v1853
  %v1858 = vpack.c.bf16 %v1854, %v1854
  %v1859 = vpack.c.bf16 %v1855, %v1855
  %v1860 = vpack.c.bf16 %v1856, %v1856
  %v1861 = vpack.c.bf16 %v1857, %v1857
  %v1863 = vsel %vm640, %v1858, 0
  %v1866 = vsel %vm692, %v1626, 0
  %1868 = vmatprep.subr.bf16.mxu0 0
  %1869 = vmatpush1.bf16.msra.mxu0 0
  %1870 = vmatprep.subr.bf16.mxu0 0
  %1871 = vmatpush1.bf16.msra.mxu0 0
  %1872 = vmatprep.subr.bf16.mxu0 0
  %1873 = vmatpush1.bf16.msra.mxu0 0
  %1874 = vmatprep.subr.bf16.mxu0 0
  %1875 = vmatpush1.bf16.msra.mxu0 0
  %1876 = vmatprep.subr.bf16.mxu0 0
  %1877 = vmatpush1.bf16.msra.mxu0 0
  %1878 = vmatprep.subr.bf16.mxu0 0
  %1879 = vmatpush1.bf16.msra.mxu0 0
  %1880 = vmatprep.subr.bf16.mxu0 0
  %1881 = vmatpush1.bf16.msra.mxu0 0
  %1882 = vmatprep.subr.bf16.mxu0 0
  %1883 = vmatpush1.bf16.msra.mxu0 %v1866
  %1884 = vmatprep.subr.bf16.mxu0 0
  %1885 = vmatpush2.bf16.msra.mxu0 0
  %1886 = vmatprep.subr.bf16.mxu0 0
  %1887 = vmatpush2.bf16.msra.mxu0 0
  %1888 = vmatprep.subr.bf16.mxu0 0
  %1889 = vmatpush2.bf16.msra.mxu0 0
  %1890 = vmatprep.subr.bf16.mxu0 0
  %1891 = vmatpush2.bf16.msra.mxu0 0
  %1892 = vmatprep.subr.bf16.mxu0 0
  %1893 = vmatpush2.bf16.msra.mxu0 0
  %1894 = vmatprep.subr.bf16.mxu0 0
  %1895 = vmatpush2.bf16.msra.mxu0 0
  %1896 = vmatprep.subr.bf16.mxu0 0
  %1897 = vmatpush2.bf16.msra.mxu0 0
  %1898 = vmatprep.subr.bf16.mxu0 0
  %1899 = vmatpush2.bf16.msra.mxu0 0
  %1900 = vmatprep.mubr.bf16.mxu0 0
  %1901 = vmatmul.mubr.bf16.gmra.mxu0 %v1863
  %v1902 = vpop.f32.mrf.mxu0
  %v1903 = vadd.f32 0.0, %v1902
  %v1904 = vpop.f32.mrf.mxu0
  %v1905 = vpop.f32.mrf.mxu0
  %v1906 = vpop.f32.mrf.mxu0
  %1907 = vdwg.mxu0
  %v1909 = vsel %vm640, %v1859, 0
  %v1912 = vsel %vm692, %v1627, 0
  %1914 = vmatprep.subr.bf16.mxu0 0
  %1915 = vmatpush1.bf16.msra.mxu0 0
  %1916 = vmatprep.subr.bf16.mxu0 0
  %1917 = vmatpush1.bf16.msra.mxu0 0
  %1918 = vmatprep.subr.bf16.mxu0 0
  %1919 = vmatpush1.bf16.msra.mxu0 0
  %1920 = vmatprep.subr.bf16.mxu0 0
  %1921 = vmatpush1.bf16.msra.mxu0 0
  %1922 = vmatprep.subr.bf16.mxu0 0
  %1923 = vmatpush1.bf16.msra.mxu0 0
  %1924 = vmatprep.subr.bf16.mxu0 0
  %1925 = vmatpush1.bf16.msra.mxu0 0
  %1926 = vmatprep.subr.bf16.mxu0 0
  %1927 = vmatpush1.bf16.msra.mxu0 0
  %1928 = vmatprep.subr.bf16.mxu0 0
  %1929 = vmatpush1.bf16.msra.mxu0 %v1912
  %1930 = vmatprep.subr.bf16.mxu0 0
  %1931 = vmatpush2.bf16.msra.mxu0 0
  %1932 = vmatprep.subr.bf16.mxu0 0
  %1933 = vmatpush2.bf16.msra.mxu0 0
  %1934 = vmatprep.subr.bf16.mxu0 0
  %1935 = vmatpush2.bf16.msra.mxu0 0
  %1936 = vmatprep.subr.bf16.mxu0 0
  %1937 = vmatpush2.bf16.msra.mxu0 0
  %1938 = vmatprep.subr.bf16.mxu0 0
  %1939 = vmatpush2.bf16.msra.mxu0 0
  %1940 = vmatprep.subr.bf16.mxu0 0
  %1941 = vmatpush2.bf16.msra.mxu0 0
  %1942 = vmatprep.subr.bf16.mxu0 0
  %1943 = vmatpush2.bf16.msra.mxu0 0
  %1944 = vmatprep.subr.bf16.mxu0 0
  %1945 = vmatpush2.bf16.msra.mxu0 0
  %1946 = vmatprep.mubr.bf16.mxu0 0
  %1947 = vmatmul.mubr.bf16.gmra.mxu0 %v1909
  %v1948 = vpop.f32.mrf.mxu0
  %v1949 = vadd.f32 0.0, %v1948
  %v1950 = vpop.f32.mrf.mxu0
  %v1951 = vpop.f32.mrf.mxu0
  %v1952 = vpop.f32.mrf.mxu0
  %1953 = vdwg.mxu0
  %v1955 = vsel %vm640, %v1860, 0
  %v1958 = vsel %vm692, %v1628, 0
  %1960 = vmatprep.subr.bf16.mxu0 0
  %1961 = vmatpush1.bf16.msra.mxu0 0
  %1962 = vmatprep.subr.bf16.mxu0 0
  %1963 = vmatpush1.bf16.msra.mxu0 0
  %1964 = vmatprep.subr.bf16.mxu0 0
  %1965 = vmatpush1.bf16.msra.mxu0 0
  %1966 = vmatprep.subr.bf16.mxu0 0
  %1967 = vmatpush1.bf16.msra.mxu0 0
  %1968 = vmatprep.subr.bf16.mxu0 0
  %1969 = vmatpush1.bf16.msra.mxu0 0
  %1970 = vmatprep.subr.bf16.mxu0 0
  %1971 = vmatpush1.bf16.msra.mxu0 0
  %1972 = vmatprep.subr.bf16.mxu0 0
  %1973 = vmatpush1.bf16.msra.mxu0 0
  %1974 = vmatprep.subr.bf16.mxu0 0
  %1975 = vmatpush1.bf16.msra.mxu0 %v1958
  %1976 = vmatprep.subr.bf16.mxu0 0
  %1977 = vmatpush2.bf16.msra.mxu0 0
  %1978 = vmatprep.subr.bf16.mxu0 0
  %1979 = vmatpush2.bf16.msra.mxu0 0
  %1980 = vmatprep.subr.bf16.mxu0 0
  %1981 = vmatpush2.bf16.msra.mxu0 0
  %1982 = vmatprep.subr.bf16.mxu0 0
  %1983 = vmatpush2.bf16.msra.mxu0 0
  %1984 = vmatprep.subr.bf16.mxu0 0
  %1985 = vmatpush2.bf16.msra.mxu0 0
  %1986 = vmatprep.subr.bf16.mxu0 0
  %1987 = vmatpush2.bf16.msra.mxu0 0
  %1988 = vmatprep.subr.bf16.mxu0 0
  %1989 = vmatpush2.bf16.msra.mxu0 0
  %1990 = vmatprep.subr.bf16.mxu0 0
  %1991 = vmatpush2.bf16.msra.mxu0 0
  %1992 = vmatprep.mubr.bf16.mxu0 0
  %1993 = vmatmul.mubr.bf16.gmra.mxu0 %v1955
  %v1994 = vpop.f32.mrf.mxu0
  %v1995 = vadd.f32 0.0, %v1994
  %v1996 = vpop.f32.mrf.mxu0
  %v1997 = vpop.f32.mrf.mxu0
  %v1998 = vpop.f32.mrf.mxu0
  %1999 = vdwg.mxu0
  %v2001 = vsel %vm640, %v1861, 0
  %v2004 = vsel %vm692, %v1629, 0
  %2006 = vmatprep.subr.bf16.mxu0 0
  %2007 = vmatpush1.bf16.msra.mxu0 0
  %2008 = vmatprep.subr.bf16.mxu0 0
  %2009 = vmatpush1.bf16.msra.mxu0 0
  %2010 = vmatprep.subr.bf16.mxu0 0
  %2011 = vmatpush1.bf16.msra.mxu0 0
  %2012 = vmatprep.subr.bf16.mxu0 0
  %2013 = vmatpush1.bf16.msra.mxu0 0
  %2014 = vmatprep.subr.bf16.mxu0 0
  %2015 = vmatpush1.bf16.msra.mxu0 0
  %2016 = vmatprep.subr.bf16.mxu0 0
  %2017 = vmatpush1.bf16.msra.mxu0 0
  %2018 = vmatprep.subr.bf16.mxu0 0
  %2019 = vmatpush1.bf16.msra.mxu0 0
  %2020 = vmatprep.subr.bf16.mxu0 0
  %2021 = vmatpush1.bf16.msra.mxu0 %v2004
  %2022 = vmatprep.subr.bf16.mxu0 0
  %2023 = vmatpush2.bf16.msra.mxu0 0
  %2024 = vmatprep.subr.bf16.mxu0 0
  %2025 = vmatpush2.bf16.msra.mxu0 0
  %2026 = vmatprep.subr.bf16.mxu0 0
  %2027 = vmatpush2.bf16.msra.mxu0 0
  %2028 = vmatprep.subr.bf16.mxu0 0
  %2029 = vmatpush2.bf16.msra.mxu0 0
  %2030 = vmatprep.subr.bf16.mxu0 0
  %2031 = vmatpush2.bf16.msra.mxu0 0
  %2032 = vmatprep.subr.bf16.mxu0 0
  %2033 = vmatpush2.bf16.msra.mxu0 0
  %2034 = vmatprep.subr.bf16.mxu0 0
  %2035 = vmatpush2.bf16.msra.mxu0 0
  %2036 = vmatprep.subr.bf16.mxu0 0
  %2037 = vmatpush2.bf16.msra.mxu0 0
  %2038 = vmatprep.mubr.bf16.mxu0 0
  %2039 = vmatmul.mubr.bf16.gmra.mxu0 %v2001
  %v2040 = vpop.f32.mrf.mxu0
  %v2041 = vadd.f32 0.0, %v2040
  %v2042 = vpop.f32.mrf.mxu0
  %v2043 = vpop.f32.mrf.mxu0
  %v2044 = vpop.f32.mrf.mxu0
  %2045 = vdwg.mxu0
  %v2046 = vpack.c.bf16 %v1949, %v1903
  %v2047 = vpack.c.bf16 %v2041, %v1995
  %s2048 = scalar_lea.vmem %s4, 16
  %v2049 = vld [vmem:[%s2048] sm:$0xf]
  %v2050 = vld [vmem:[%s2048 + $0x4] sm:$0xf]
  %s2051 = scalar_lea.vmem %s4, 24
  %v2052 = vld [vmem:[%s2051] sm:$0xf]
  %v2053 = vld [vmem:[%s2051 + $0x4] sm:$0xf]
  %v2056 = vunpack.c.l.b16 %v2052
  %v2057 = vunpack.c.l.b16 %v2053
  %v2058 = vpack.c.b16 %v2057, %v2056
  %v2061 = vsel %vm455, %v2047, 0
  %2063 = vmatprep.subr.bf16.mxu0 0
  %2064 = vmatpush1.bf16.msra.mxu0 0
  %2065 = vmatprep.subr.bf16.mxu0 0
  %2066 = vmatpush1.bf16.msra.mxu0 0
  %2067 = vmatprep.subr.bf16.mxu0 0
  %2068 = vmatpush1.bf16.msra.mxu0 0
  %2069 = vmatprep.subr.bf16.mxu0 0
  %2070 = vmatpush1.bf16.msra.mxu0 0
  %2071 = vmatprep.subr.bf16.mxu0 0
  %2072 = vmatpush1.bf16.msra.mxu0 0
  %2073 = vmatprep.subr.bf16.mxu0 0
  %2074 = vmatpush1.bf16.msra.mxu0 0
  %2075 = vmatprep.subr.bf16.mxu0 0
  %2076 = vmatpush1.bf16.msra.mxu0 0
  %2077 = vmatprep.subr.bf16.mxu0 0
  %2078 = vmatpush1.bf16.msra.mxu0 %v2058
  %2079 = vmatprep.subr.bf16.mxu0 0
  %2080 = vmatpush2.bf16.msra.mxu0 0
  %2081 = vmatprep.subr.bf16.mxu0 0
  %2082 = vmatpush2.bf16.msra.mxu0 0
  %2083 = vmatprep.subr.bf16.mxu0 0
  %2084 = vmatpush2.bf16.msra.mxu0 0
  %2085 = vmatprep.subr.bf16.mxu0 0
  %2086 = vmatpush2.bf16.msra.mxu0 0
  %2087 = vmatprep.subr.bf16.mxu0 0
  %2088 = vmatpush2.bf16.msra.mxu0 0
  %2089 = vmatprep.subr.bf16.mxu0 0
  %2090 = vmatpush2.bf16.msra.mxu0 0
  %2091 = vmatprep.subr.bf16.mxu0 0
  %2092 = vmatpush2.bf16.msra.mxu0 0
  %2093 = vmatprep.subr.bf16.mxu0 0
  %2094 = vmatpush2.bf16.msra.mxu0 0
  %2095 = vmatprep.mubr.bf16.mxu0 0
  %2096 = vmatmul.mubr.bf16.gmra.mxu0 %v2061
  %v2097 = vpop.f32.mrf.mxu0
  %v2098 = vadd.f32 0.0, %v2097
  %v2099 = vpop.f32.mrf.mxu0
  %v2100 = vpop.f32.mrf.mxu0
  %v2101 = vadd.f32 0.0, %v2100
  %v2102 = vpop.f32.mrf.mxu0
  %2103 = vdwg.mxu0
  %v2106 = vunpack.c.l.b16 %v2049
  %v2107 = vunpack.c.l.b16 %v2050
  %v2108 = vpack.c.b16 %v2107, %v2106
  %v2111 = vsel %vm455, %v2046, 0
  %2113 = vmatprep.subr.bf16.mxu0 0
  %2114 = vmatpush1.bf16.msra.mxu0 0
  %2115 = vmatprep.subr.bf16.mxu0 0
  %2116 = vmatpush1.bf16.msra.mxu0 0
  %2117 = vmatprep.subr.bf16.mxu0 0
  %2118 = vmatpush1.bf16.msra.mxu0 0
  %2119 = vmatprep.subr.bf16.mxu0 0
  %2120 = vmatpush1.bf16.msra.mxu0 0
  %2121 = vmatprep.subr.bf16.mxu0 0
  %2122 = vmatpush1.bf16.msra.mxu0 0
  %2123 = vmatprep.subr.bf16.mxu0 0
  %2124 = vmatpush1.bf16.msra.mxu0 0
  %2125 = vmatprep.subr.bf16.mxu0 0
  %2126 = vmatpush1.bf16.msra.mxu0 0
  %2127 = vmatprep.subr.bf16.mxu0 0
  %2128 = vmatpush1.bf16.msra.mxu0 %v2108
  %2129 = vmatprep.subr.bf16.mxu0 0
  %2130 = vmatpush2.bf16.msra.mxu0 0
  %2131 = vmatprep.subr.bf16.mxu0 0
  %2132 = vmatpush2.bf16.msra.mxu0 0
  %2133 = vmatprep.subr.bf16.mxu0 0
  %2134 = vmatpush2.bf16.msra.mxu0 0
  %2135 = vmatprep.subr.bf16.mxu0 0
  %2136 = vmatpush2.bf16.msra.mxu0 0
  %2137 = vmatprep.subr.bf16.mxu0 0
  %2138 = vmatpush2.bf16.msra.mxu0 0
  %2139 = vmatprep.subr.bf16.mxu0 0
  %2140 = vmatpush2.bf16.msra.mxu0 0
  %2141 = vmatprep.subr.bf16.mxu0 0
  %2142 = vmatpush2.bf16.msra.mxu0 0
  %2143 = vmatprep.subr.bf16.mxu0 0
  %2144 = vmatpush2.bf16.msra.mxu0 0
  %2145 = vmatprep.mubr.bf16.mxu0 0
  %2146 = vmatmul.mubr.bf16.gmra.mxu0 %v2111
  %v2147 = vpop.f32.mrf.mxu0
  %v2148 = vadd.f32 %v2098, %v2147
  %v2149 = vpop.f32.mrf.mxu0
  %v2150 = vpop.f32.mrf.mxu0
  %v2151 = vadd.f32 %v2101, %v2150
  %v2152 = vpop.f32.mrf.mxu0
  %2153 = vdwg.mxu0
  %v2154 = vadd.f32 %v2148, %v1229
  %v2155 = vadd.f32 %v2151, %v1230
  %v2156 = vld [vmem:[%s5 + $0x1] sm:$0x1]
  %v2157 = vld [vmem:[%s6 + $0x1] sm:$0x1]
  %v2158 = vsel %vm57, %v2154, 0.0
  %2159 = vadd.xlane.f32.xlu0 %v2158
  %v2160 = vpop.xlane.xlu0 %2159
  %v2161 = vsel %vm57, %v2155, 0.0
  %2162 = vadd.xlane.f32.xlu0 %v2161
  %v2163 = vpop.xlane.xlu0 %2162
  %v2164 = vmul.f32 %v2160, %v64
  %v2165 = vmul.f32 %v2163, %v64
  %v2166 = vsub.f32 %v2154, %v2164
  %v2167 = vsub.f32 %v2155, %v2165
  %v2168 = vmul.f32 %v2166, %v2166
  %v2169 = vmul.f32 %v2167, %v2167
  %v2170 = vsel %vm57, %v2168, 0.0
  %2171 = vadd.xlane.f32.xlu0 %v2170
  %v2172 = vpop.xlane.xlu0 %2171
  %v2173 = vsel %vm57, %v2169, 0.0
  %2174 = vadd.xlane.f32.xlu0 %v2173
  %v2175 = vpop.xlane.xlu0 %2174
  %v2176 = vmul.f32 %v2172, %v64
  %v2177 = vmul.f32 %v2175, %v64
  %v2178 = vadd.f32 %v2176, 1e-05
  %v2179 = vadd.f32 %v2177, 1e-05
  %v2180 = vrsqrt.pop %v2178
  %v2181 = vrsqrt.pop %v2179
  %v2182 = vmul.f32 %v2166, %v2180
  %v2183 = vmul.f32 %v2167, %v2181
  %v2184 = vlaneseq
  %v2185 = vshrl.u32 %v2184, 7
  %v2186 = vsub.s32 0, %v2185
  %v2187 = vrot.slane %v2156, %v2186
  %v2188 = vmul.f32 %v2182, %v2187
  %v2189 = vmul.f32 %v2183, %v2187
  %v2190 = vlaneseq
  %v2191 = vshrl.u32 %v2190, 7
  %v2192 = vsub.s32 0, %v2191
  %v2193 = vrot.slane %v2157, %v2192
  %v2194 = vadd.f32 %v2188, %v2193
  %v2195 = vadd.f32 %v2189, %v2193
  %v2196 = vpack.c.bf16 %v2195, %v2194
  %s2197 = scalar_lea.vmem %s7, 32
  %v2198 = vld [vmem:[%s2197] sm:$0xff]
  %v2199 = vld [vmem:[%s2197 + $0x8] sm:$0xff]
  %v2200 = vld [vmem:[%s2197 + $0x10] sm:$0xff]
  %v2201 = vld [vmem:[%s2197 + $0x18] sm:$0xff]
  %s2202 = scalar_lea.vmem %s8, 1
  %v2203 = vld [vmem:[%s2202] ss:$2 sm:$0x3]
  %v2205 = vlaneseq
  %v2206 = vshrl.u32 %v2205, 7
  %v2207 = vsub.s32 0, %v2206
  %v2208 = vrot.slane %v2203, %v2207
  %v2209 = vlaneseq
  %v2210 = vshrl.u32 %v2209, 7
  %v2211 = vsub.s32 1, %v2210
  %v2212 = vrot.slane %v2203, %v2211
  %v2219 = vunpack.c.l.b16 %v2198
  %v2220 = vunpack.c.h.b16 %v2198
  %v2221 = vunpack.c.l.b16 %v2199
  %v2222 = vunpack.c.h.b16 %v2199
  %v2223 = vunpack.c.l.b16 %v2200
  %v2224 = vunpack.c.h.b16 %v2200
  %v2225 = vunpack.c.l.b16 %v2201
  %v2226 = vunpack.c.h.b16 %v2201
  %v2227 = vpack.c.b16 %v2221, %v2219
  %v2228 = vpack.c.b16 %v2222, %v2220
  %v2229 = vpack.c.b16 %v2225, %v2223
  %v2230 = vpack.c.b16 %v2226, %v2224
  %v2236 = vsel %vm57, %v2196, 0
  %2238 = vmatprep.subr.bf16.mxu0 0
  %2239 = vmatpush1.bf16.msra.mxu0 0
  %2240 = vmatprep.subr.bf16.mxu0 0
  %2241 = vmatpush1.bf16.msra.mxu0 0
  %2242 = vmatprep.subr.bf16.mxu0 0
  %2243 = vmatpush1.bf16.msra.mxu0 0
  %2244 = vmatprep.subr.bf16.mxu0 0
  %2245 = vmatpush1.bf16.msra.mxu0 0
  %2246 = vmatprep.subr.bf16.mxu0 0
  %2247 = vmatpush1.bf16.msra.mxu0 0
  %2248 = vmatprep.subr.bf16.mxu0 0
  %2249 = vmatpush1.bf16.msra.mxu0 0
  %2250 = vmatprep.subr.bf16.mxu0 %v2230
  %2251 = vmatpush1.bf16.msra.mxu0 %v2229
  %2252 = vmatprep.subr.bf16.mxu0 %v2228
  %2253 = vmatpush1.bf16.msra.mxu0 %v2227
  %2254 = vmatprep.subr.bf16.mxu0 0
  %2255 = vmatpush2.bf16.msra.mxu0 0
  %2256 = vmatprep.subr.bf16.mxu0 0
  %2257 = vmatpush2.bf16.msra.mxu0 0
  %2258 = vmatprep.subr.bf16.mxu0 0
  %2259 = vmatpush2.bf16.msra.mxu0 0
  %2260 = vmatprep.subr.bf16.mxu0 0
  %2261 = vmatpush2.bf16.msra.mxu0 0
  %2262 = vmatprep.subr.bf16.mxu0 0
  %2263 = vmatpush2.bf16.msra.mxu0 0
  %2264 = vmatprep.subr.bf16.mxu0 0
  %2265 = vmatpush2.bf16.msra.mxu0 0
  %2266 = vmatprep.subr.bf16.mxu0 0
  %2267 = vmatpush2.bf16.msra.mxu0 0
  %2268 = vmatprep.subr.bf16.mxu0 0
  %2269 = vmatpush2.bf16.msra.mxu0 0
  %2270 = vmatprep.mubr.bf16.mxu0 0
  %2271 = vmatmul.mubr.bf16.gmra.mxu0 %v2236
  %v2272 = vpop.f32.mrf.mxu0
  %v2273 = vadd.f32 %v2208, %v2272
  %v2274 = vpop.f32.mrf.mxu0
  %v2275 = vadd.f32 %v2212, %v2274
  %v2276 = vpop.f32.mrf.mxu0
  %v2277 = vadd.f32 %v2208, %v2276
  %v2278 = vpop.f32.mrf.mxu0
  %v2279 = vadd.f32 %v2212, %v2278
  %2280 = vdwg.mxu0
  %v2281 = vmul.f32 %v2275, 0.5
  %v2282 = vmul.f32 %v2279, 0.5
  %v2283 = vmul.f32 %v2275, 0.70710677
  %v2284 = vmul.f32 %v2279, 0.70710677
  %v2285 = verf.f32.pop %v2283
  %v2286 = verf.f32.pop %v2284
  %v2287 = vadd.f32 %v2285, 1.0
  %v2288 = vadd.f32 %v2286, 1.0
  %v2289 = vmul.f32 %v2281, %v2287
  %v2290 = vmul.f32 %v2282, %v2288
  %v2291 = vmul.f32 %v2273, %v2289
  %v2292 = vmul.f32 %v2277, %v2290
  %v2293 = vpack.c.bf16 %v2292, %v2291
  %s2294 = scalar_lea.vmem %s9, 64
  %v2295 = vld [vmem:[%s2294] sm:$0xf]
  %v2296 = vld [vmem:[%s2294 + $0x4] sm:$0xf]
  %v2297 = vld [vmem:[%s2294 + $0x8] sm:$0xf]
  %v2298 = vld [vmem:[%s2294 + $0xc] sm:$0xf]
  %v2299 = vld [vmem:[%s2294 + $0x10] sm:$0xf]
  %v2300 = vld [vmem:[%s2294 + $0x14] sm:$0xf]
  %v2301 = vld [vmem:[%s2294 + $0x18] sm:$0xf]
  %v2302 = vld [vmem:[%s2294 + $0x1c] sm:$0xf]
  %v2303 = vld [vmem:[%s2294 + $0x20] sm:$0xf]
  %v2304 = vld [vmem:[%s2294 + $0x24] sm:$0xf]
  %v2305 = vld [vmem:[%s2294 + $0x28] sm:$0xf]
  %v2306 = vld [vmem:[%s2294 + $0x2c] sm:$0xf]
  %v2307 = vld [vmem:[%s2294 + $0x30] sm:$0xf]
  %v2308 = vld [vmem:[%s2294 + $0x34] sm:$0xf]
  %v2309 = vld [vmem:[%s2294 + $0x38] sm:$0xf]
  %v2310 = vld [vmem:[%s2294 + $0x3c] sm:$0xf]
  %v2311 = vld [vmem:[%s10 + $0x1] sm:$0x1]
  %v2312 = vlaneseq
  %v2313 = vshrl.u32 %v2312, 7
  %v2314 = vsub.s32 0, %v2313
  %v2315 = vrot.slane %v2311, %v2314
  %v2332 = vunpack.c.l.b16 %v2295
  %v2333 = vunpack.c.l.b16 %v2296
  %v2334 = vunpack.c.l.b16 %v2297
  %v2335 = vunpack.c.l.b16 %v2298
  %v2336 = vunpack.c.l.b16 %v2299
  %v2337 = vunpack.c.l.b16 %v2300
  %v2338 = vunpack.c.l.b16 %v2301
  %v2339 = vunpack.c.l.b16 %v2302
  %v2340 = vunpack.c.l.b16 %v2303
  %v2341 = vunpack.c.l.b16 %v2304
  %v2342 = vunpack.c.l.b16 %v2305
  %v2343 = vunpack.c.l.b16 %v2306
  %v2344 = vunpack.c.l.b16 %v2307
  %v2345 = vunpack.c.l.b16 %v2308
  %v2346 = vunpack.c.l.b16 %v2309
  %v2347 = vunpack.c.l.b16 %v2310
  %v2348 = vpack.c.b16 %v2333, %v2332
  %v2349 = vpack.c.b16 %v2335, %v2334
  %v2350 = vpack.c.b16 %v2337, %v2336
  %v2351 = vpack.c.b16 %v2339, %v2338
  %v2352 = vpack.c.b16 %v2341, %v2340
  %v2353 = vpack.c.b16 %v2343, %v2342
  %v2354 = vpack.c.b16 %v2345, %v2344
  %v2355 = vpack.c.b16 %v2347, %v2346
  %2364 = vmatprep.subr.bf16.mxu0 0
  %2365 = vmatpush1.bf16.msra.mxu0 %v2355
  %2366 = vmatprep.subr.bf16.mxu0 0
  %2367 = vmatpush1.bf16.msra.mxu0 %v2354
  %2368 = vmatprep.subr.bf16.mxu0 0
  %2369 = vmatpush1.bf16.msra.mxu0 %v2353
  %2370 = vmatprep.subr.bf16.mxu0 0
  %2371 = vmatpush1.bf16.msra.mxu0 %v2352
  %2372 = vmatprep.subr.bf16.mxu0 0
  %2373 = vmatpush1.bf16.msra.mxu0 %v2351
  %2374 = vmatprep.subr.bf16.mxu0 0
  %2375 = vmatpush1.bf16.msra.mxu0 %v2350
  %2376 = vmatprep.subr.bf16.mxu0 0
  %2377 = vmatpush1.bf16.msra.mxu0 %v2349
  %2378 = vmatprep.subr.bf16.mxu0 0
  %2379 = vmatpush1.bf16.msra.mxu0 %v2348
  %2380 = vmatprep.subr.bf16.mxu0 0
  %2381 = vmatpush2.bf16.msra.mxu0 0
  %2382 = vmatprep.subr.bf16.mxu0 0
  %2383 = vmatpush2.bf16.msra.mxu0 0
  %2384 = vmatprep.subr.bf16.mxu0 0
  %2385 = vmatpush2.bf16.msra.mxu0 0
  %2386 = vmatprep.subr.bf16.mxu0 0
  %2387 = vmatpush2.bf16.msra.mxu0 0
  %2388 = vmatprep.subr.bf16.mxu0 0
  %2389 = vmatpush2.bf16.msra.mxu0 0
  %2390 = vmatprep.subr.bf16.mxu0 0
  %2391 = vmatpush2.bf16.msra.mxu0 0
  %2392 = vmatprep.subr.bf16.mxu0 0
  %2393 = vmatpush2.bf16.msra.mxu0 0
  %2394 = vmatprep.subr.bf16.mxu0 0
  %2395 = vmatpush2.bf16.msra.mxu0 0
  %2396 = vmatprep.mubr.bf16.mxu0 0
  %2397 = vmatmul.mubr.bf16.gmra.mxu0 %v2293
  %v2398 = vpop.f32.mrf.mxu0
  %v2399 = vadd.f32 %v2315, %v2398
  %v2400 = vpop.f32.mrf.mxu0
  %v2401 = vpop.f32.mrf.mxu0
  %v2402 = vadd.f32 %v2315, %v2401
  %v2403 = vpop.f32.mrf.mxu0
  %2404 = vdwg.mxu0
  %v2405 = vadd.f32 %v2399, %v2154
  %v2406 = vadd.f32 %v2402, %v2155
  %v2408 = vrot.slane %v2406, 7
  %vm2410 = vcmask 1040384
  %v2411 = vsel %vm2410, %v2405, %v2408
  %v2412 = vld [vmem:[%s11] sm:$0x1]
  %v2413 = vld [vmem:[%s12] sm:$0x1]
  %vm2414 = vcmask 254976
  %v2415 = vsel %vm2414, %v2411, 0.0
  %2416 = vadd.xlane.f32.xlu0 %v2415
  %v2417 = vpop.xlane.xlu0 %2416
  %v2418 = vmul.f32 %v2417, %v64
  %v2419 = vsub.f32 %v2411, %v2418
  %v2420 = vmul.f32 %v2419, %v2419
  %v2421 = vsel %vm2414, %v2420, 0.0
  %2422 = vadd.xlane.f32.xlu0 %v2421
  %v2423 = vpop.xlane.xlu0 %2422
  %v2424 = vmul.f32 %v2423, %v64
  %v2425 = vadd.f32 %v2424, 1e-05
  %v2426 = vrsqrt.pop %v2425
  %v2427 = vmul.f32 %v2419, %v2426
  %v2429 = vlaneseq
  %v2430 = vshrl.u32 %v2429, 7
  %v2431 = vsub.s32 0, %v2430
  %v2432 = vrot.slane %v2412, %v2431
  %v2434 = vmul.f32 %v2427, %v2432
  %v2436 = vlaneseq
  %v2437 = vshrl.u32 %v2436, 7
  %v2438 = vsub.s32 0, %v2437
  %v2439 = vrot.slane %v2413, %v2438
  %v2441 = vadd.f32 %v2434, %v2439
  %v2442 = vmax.f32 %v2441, 0.0
  %v2443 = vpack.c.bf16 %v2442, %v2442
  %v2444 = vld [vmem:[%s13] sm:$0xf]
  %v2445 = vld [vmem:[%s13 + $0x4] sm:$0xf]
  %v2446 = vld [vmem:[%s13 + $0x8] sm:$0xf]
  %v2447 = vld [vmem:[%s13 + $0xc] sm:$0xf]
  %v2448 = vld [vmem:[#allocation2] sm:$0x1]
  %v2450 = vlaneseq
  %v2451 = vshrl.u32 %v2450, 7
  %v2452 = vsub.s32 0, %v2451
  %v2453 = vrot.slane %v2448, %v2452
  %v2459 = vunpack.c.l.b16 %v2444
  %v2460 = vunpack.c.l.b16 %v2445
  %v2461 = vunpack.c.l.b16 %v2446
  %v2462 = vunpack.c.l.b16 %v2447
  %v2463 = vpack.c.b16 %v2460, %v2459
  %v2464 = vpack.c.b16 %v2462, %v2461
  %v2468 = vsel %vm57, %v2443, 0
  %2470 = vmatprep.subr.bf16.mxu0 0
  %2471 = vmatpush1.bf16.msra.mxu0 0
  %2472 = vmatprep.subr.bf16.mxu0 0
  %2473 = vmatpush1.bf16.msra.mxu0 0
  %2474 = vmatprep.subr.bf16.mxu0 0
  %2475 = vmatpush1.bf16.msra.mxu0 0
  %2476 = vmatprep.subr.bf16.mxu0 0
  %2477 = vmatpush1.bf16.msra.mxu0 0
  %2478 = vmatprep.subr.bf16.mxu0 0
  %2479 = vmatpush1.bf16.msra.mxu0 0
  %2480 = vmatprep.subr.bf16.mxu0 0
  %2481 = vmatpush1.bf16.msra.mxu0 0
  %2482 = vmatprep.subr.bf16.mxu0 0
  %2483 = vmatpush1.bf16.msra.mxu0 %v2464
  %2484 = vmatprep.subr.bf16.mxu0 0
  %2485 = vmatpush1.bf16.msra.mxu0 %v2463
  %2486 = vmatprep.subr.bf16.mxu0 0
  %2487 = vmatpush2.bf16.msra.mxu0 0
  %2488 = vmatprep.subr.bf16.mxu0 0
  %2489 = vmatpush2.bf16.msra.mxu0 0
  %2490 = vmatprep.subr.bf16.mxu0 0
  %2491 = vmatpush2.bf16.msra.mxu0 0
  %2492 = vmatprep.subr.bf16.mxu0 0
  %2493 = vmatpush2.bf16.msra.mxu0 0
  %2494 = vmatprep.subr.bf16.mxu0 0
  %2495 = vmatpush2.bf16.msra.mxu0 0
  %2496 = vmatprep.subr.bf16.mxu0 0
  %2497 = vmatpush2.bf16.msra.mxu0 0
  %2498 = vmatprep.subr.bf16.mxu0 0
  %2499 = vmatpush2.bf16.msra.mxu0 0
  %2500 = vmatprep.subr.bf16.mxu0 0
  %2501 = vmatpush2.bf16.msra.mxu0 0
  %2502 = vmatprep.mubr.bf16.mxu0 0
  %2503 = vmatmul.mubr.bf16.gmra.mxu0 %v2468
  %v2504 = vpop.f32.mrf.mxu0
  %v2505 = vadd.f32 %v2453, %v2504
  %v2506 = vpop.f32.mrf.mxu0
  %v2507 = vpop.f32.mrf.mxu0
  %v2508 = vpop.f32.mrf.mxu0
  %2509 = vdwg.mxu0
  %v2512 = vunpack.c.l.s4 1966171168
  %v2513 = vunpack.c.0.s8 %v2512
  %v2514 = vlaneseq
  %v2515 = vshrl.u32 %v2514, 7
  %v2516 = vsub.s32 %v2513, %v2515
  %v2517 = vrot.slane %v2505, %v2516
  %v2518 = vcombine.high %v2517, %v2517
  %v2520 = vunpack.c.l.s4 1966171168
  %v2521 = vunpack.c.0.s8 %v2520
  %v2522 = vlaneseq
  %v2523 = vshrl.u32 %v2522, 7
  %v2524 = vsub.s32 %v2521, %v2523
  %v2525 = vrot.slane %v2517, %v2524
  %v2527 = vunpack.c.l.s4 1966171168
  %v2528 = vunpack.c.0.s8 %v2527
  %v2529 = vlaneseq
  %v2530 = vshrl.u32 %v2529, 7
  %v2531 = vsub.s32 %v2528, %v2530
  %v2532 = vrot.slane %v2518, %v2531
  %vm2535 = vcmask 0
  %2536 = vst.msk [vmem:[%s15] sm:$0x1] %vm2535, %v2525
  %2537 = vst.msk [vmem:[%s15 + $0x1] sm:$0x1] %vm2535, %v2532
  // Predicated region
  $region62: #{tpu_custom_call.1} parent=0 // pred_check
    _
  $region63: #{tpu_custom_call.1} parent=0 // pred_check_branch
    %2539 = sbr.rel (0) target = $region65
  $region64: #{tpu_custom_call.1} parent=0 // pred_region
    _
  $region65: #{tpu_custom_call.1} parent=0 // pred_fallthru
    _
  // Predicated region
  $region66: #{tpu_custom_call.1} parent=0 // pred_check
    _
  $region67: #{tpu_custom_call.1} parent=0 // pred_check_branch
    %2541 = sbr.rel (0) target = $region69
  $region68: #{tpu_custom_call.1} parent=0 // pred_region
    _
  $region69: #{tpu_custom_call.1} parent=0 // pred_fallthru
    _

</llo_original>
